<compile_context>
chip_gen: v5e
topology: v5e:2x2
jax: 0.10.0
libtpu: 0.0.40
codegen_flags: <defaults>
</compile_context>

<pallas_src>
import functools
import math

import jax
import jax.numpy as jnp
from jax import lax
from jax.experimental import pallas as pl
from jax.experimental.pallas import tpu as pltpu


LEAKY_SLOPE = 0.2
BN_EPS = 1e-5
VMEM_LIMIT = 32 * 1024 * 1024


def _round_up(x, m):
    return ((x + m - 1) // m) * m


def _cdiv(a, b):
    return (a + b - 1) // b


# ----------------------------------------------------------------------------
# Pallas kernels
# ----------------------------------------------------------------------------

def _mm_kernel(*refs, act, nk, tm, m_valid, with_stats):
    """Generic tiled matmul: y = act(x @ w + b), grid (M-par, N-par, K-arb).

    x/w are bf16 MXU operands, accumulation in f32 (VMEM scratch when nk > 1).
    Output cast to y_ref.dtype. Optional packed BN stats (row 0 = sum, row 1 = sum^2
    of the activated f32 output, masked so padded M rows do not contribute).
    """
    if with_stats:
        x_ref, w_ref, b_ref, y_ref, s_ref, acc_ref = refs
    else:
        x_ref, w_ref, b_ref, y_ref, acc_ref = refs
        s_ref = None

    def epilogue(acc):
        y = acc + b_ref[...]
        if act == "relu":
            y = jnp.maximum(y, 0.0)
        elif act == "leaky":
            y = jnp.where(y >= 0.0, y, LEAKY_SLOPE * y)
        y_ref[...] = y.astype(y_ref.dtype)
        if with_stats:
            row = pl.program_id(0) * tm + lax.broadcasted_iota(jnp.int32, (tm, 1), 0)
            mask = (row < m_valid).astype(jnp.float32)
            ym = y * mask
            s1 = jnp.sum(ym, axis=0, keepdims=True)          # (1, tn)
            s2 = jnp.sum(ym * ym, axis=0, keepdims=True)     # (1, tn)
            s_ref[...] = jnp.concatenate([s1, s2], axis=0)[None]   # (1, 2, tn)

    if nk == 1:
        epilogue(jnp.dot(x_ref[...], w_ref[...], preferred_element_type=jnp.float32))
    else:
        k = pl.program_id(2)

        @pl.when(k == 0)
        def _():
            acc_ref[...] = jnp.zeros_like(acc_ref)

        acc_ref[...] += jnp.dot(x_ref[...], w_ref[...], preferred_element_type=jnp.float32)

        @pl.when(k == nk - 1)
        def _():
            epilogue(acc_ref[...])


def _posterior_kernel(mean_ref, logvar_ref, noise_ref, z_ref, kl_ref):
    """z = mean + exp(0.5*clamp(logvar)) * noise ; kl = 0.5*sum(var + mean^2 - 1 - logvar)."""
    m = mean_ref[...]
    lv = jnp.clip(logvar_ref[...], -30.0, 20.0)
    std = jnp.exp(0.5 * lv)
    var = jnp.exp(lv)
    z_ref[...] = m + std * noise_ref[...]
    kl_ref[...] = 0.5 * jnp.sum(var + m * m - 1.0 - lv, axis=1, keepdims=True)


def _nll_kernel(x_ref, r_ref, o_ref):
    """Accumulate 0.5*sum((x - r)^2) over feature-dim tiles (constant added outside)."""
    @pl.when(pl.program_id(0) == 0)
    def _():
        o_ref[...] = jnp.zeros_like(o_ref)
    d = x_ref[...] - r_ref[...]
    o_ref[...] += 0.5 * jnp.sum(d * d, axis=1, keepdims=True)


# ----------------------------------------------------------------------------
# Pallas wrappers
# ----------------------------------------------------------------------------

def _tiling(m, tm_max, align=16):
    n_tiles = max(1, _cdiv(m, tm_max))
    tm = _round_up(_cdiv(m, n_tiles), align)
    mp = _round_up(m, tm)
    return tm, mp, mp // tm


def _choose_tn(np_, tn_max=512):
    tn = max(128, (min(np_, tn_max) // 128) * 128)
    while np_ % tn != 0:
        tn -= 128
    return tn


def _choose_tk(k, tk_max=2048):
    if k <= tk_max:
        return k, k, 1
    kp = _round_up(k, tk_max)
    return tk_max, kp, kp // tk_max


def pallas_matmul(x, w, b, *, act="none", with_stats=False, out_dtype=jnp.bfloat16,
                  tm_max=512, tn_max=512, tk_max=2048):
    """x:(M,K) bf16   w:(K,Np) bf16, Np%128==0   b:(1,Np) f32.

    Returns y:(Mp,Np) out_dtype (rows >= M are padding) and, if with_stats, per-column
    (sum, sum_sq) of the activated f32 output over the first M rows."""
    M, K = x.shape
    K2, Np = w.shape
    assert K == K2 and Np % 128 == 0

    tm, Mp, gm = _tiling(M, tm_max)
    tn = _choose_tn(Np, tn_max)
    gn = Np // tn
    tk, Kp, gk = _choose_tk(K, tk_max)

    if Mp != M or Kp != K:
        x = jnp.pad(x, ((0, Mp - M), (0, Kp - K)))
    if Kp != K:
        w = jnp.pad(w, ((0, Kp - K), (0, 0)))
    x = x.astype(jnp.bfloat16)
    w = w.astype(jnp.bfloat16)
    b = b.reshape(1, Np).astype(jnp.float32)

    kernel = functools.partial(_mm_kernel, act=act, nk=gk, tm=tm,
                               m_valid=M, with_stats=with_stats)
    in_specs = [
        pl.BlockSpec((tm, tk), lambda i, j, k: (i, k)),
        pl.BlockSpec((tk, tn), lambda i, j, k: (k, j)),
        pl.BlockSpec((1, tn), lambda i, j, k: (0, j)),
    ]
    y_shape = jax.ShapeDtypeStruct((Mp, Np), out_dtype)
    y_spec = pl.BlockSpec((tm, tn), lambda i, j, k: (i, j))
    scratch = [pltpu.VMEM((tm, tn), jnp.float32)]
    cparams = pltpu.CompilerParams(
        dimension_semantics=("parallel", "parallel", "arbitrary"),
        vmem_limit_bytes=VMEM_LIMIT)
    grid = (gm, gn, gk)

    if with_stats:
        s_shape = jax.ShapeDtypeStruct((gm, 2, Np), jnp.float32)
        s_spec = pl.BlockSpec((1, 2, tn), lambda i, j, k: (i, 0, j))
        y, s = pl.pallas_call(
            kernel, out_shape=(y_shape, s_shape), grid=grid,
            in_specs=in_specs, out_specs=(y_spec, s_spec),
            scratch_shapes=scratch, compiler_params=cparams,
        )(x, w, b)
        return y, s[:, 0, :].sum(axis=0), s[:, 1, :].sum(axis=0)

    y = pl.pallas_call(
        kernel, out_shape=y_shape, grid=grid, in_specs=in_specs,
        out_specs=y_spec, scratch_shapes=scratch, compiler_params=cparams,
    )(x, w, b)
    return y


def pallas_posterior_sample_kl(mean, logvar, noise):
    B, Z = mean.shape
    return pl.pallas_call(
        _posterior_kernel,
        out_shape=(
            jax.ShapeDtypeStruct((B, Z), jnp.float32),
            jax.ShapeDtypeStruct((B, 1), jnp.float32),
        ),
        in_specs=[pl.BlockSpec(memory_space=pltpu.MemorySpace.VMEM)] * 3,
        out_specs=(
            pl.BlockSpec(memory_space=pltpu.MemorySpace.VMEM),
            pl.BlockSpec(memory_space=pltpu.MemorySpace.VMEM),
        ),
    )(mean.astype(jnp.float32), logvar.astype(jnp.float32), noise.astype(jnp.float32))


def pallas_nll(x_flat, recon_flat, td_max=8192):
    """0.5*sum((x-r)^2, dim=1) + 0.5*D*log(2*pi), gridded over the feature dim."""
    B, D = x_flat.shape
    Dp = _round_up(D, 128)
    td = max(128, (min(Dp, td_max) // 128) * 128)
    while Dp % td != 0:
        td -= 128
    gd = Dp // td
    if Dp != D:
        x_flat = jnp.pad(x_flat, ((0, 0), (0, Dp - D)))
        recon_flat = jnp.pad(recon_flat, ((0, 0), (0, Dp - D)))
    out = pl.pallas_call(
        _nll_kernel,
        out_shape=jax.ShapeDtypeStruct((B, 1), jnp.float32),
        grid=(gd,),
        in_specs=[pl.BlockSpec((B, td), lambda d: (0, d)),
                  pl.BlockSpec((B, td), lambda d: (0, d))],
        out_specs=pl.BlockSpec((B, 1), lambda d: (0, 0)),
        compiler_params=pltpu.CompilerParams(dimension_semantics=("arbitrary",),
                                             vmem_limit_bytes=VMEM_LIMIT),
    )(x_flat.astype(jnp.float32), recon_flat.astype(jnp.float32))
    return out[:, 0] + 0.5 * D * math.log(2.0 * math.pi)


# ----------------------------------------------------------------------------
# XLA glue: patch extraction / depth-to-space (fused with the surrounding elementwise)
# ----------------------------------------------------------------------------

def im2col_s2(x_nhwc, k=4, stride=2, pad=1):
    """Patches for Conv2d(k, stride=2, padding=1). Column order (tap, channel) matches
    weight packing transpose(w_pt, (2,3,1,0)).reshape(k*k*Cin, Cout)."""
    N, H, W, C = x_nhwc.shape
    xp = jnp.pad(x_nhwc, ((0, 0), (pad, pad), (pad, pad), (0, 0)))
    Ho = (H + 2 * pad - k) // stride + 1
    Wo = (W + 2 * pad - k) // stride + 1
    taps = []
    for i in range(k):
        for j in range(k):
            taps.append(xp[:, i:i + stride * Ho:stride, j:j + stride * Wo:stride, :])
    patches = jnp.stack(taps, axis=3)                     # (N, Ho, Wo, k*k, C)
    return patches.reshape(N * Ho * Wo, k * k * C), Ho, Wo


def im2col_3x3(h_nhwc):
    """3x3 stride-1 patches of h padded by 1 (column order (tap, channel))."""
    N, H, W, C = h_nhwc.shape
    hp = jnp.pad(h_nhwc, ((0, 0), (1, 1), (1, 1), (0, 0)))
    taps = [hp[:, i:i + H, j:j + W, :] for i in range(3) for j in range(3)]
    patches = jnp.stack(taps, axis=3)                     # (N, H, W, 9, C)
    return patches.reshape(N * H * W, 9 * C)


def depth_to_space_2x(y_pad, m_valid, cout, N, H, W):
    """Output columns ordered (a, b, cout): pixel (2i+a, 2j+b) <- group a*2+b."""
    y = y_pad[:m_valid, :4 * cout].reshape(N, H, W, 2, 2, cout)
    y = jnp.transpose(y, (0, 1, 3, 2, 4, 5))
    return y.reshape(N, 2 * H, 2 * W, cout)


# ----------------------------------------------------------------------------
# Parameter init / packing
# ----------------------------------------------------------------------------

def _uniform(key, shape, bound):
    return jax.random.uniform(key, shape, jnp.float32, -bound, bound)


def _pack_matmul_weight(w_mat, b_vec):
    """Pad N (output cols) to a multiple of 128 (lane-dense stores); bf16 weight, f32 bias."""
    K, N = w_mat.shape
    Np = _round_up(N, 128)
    w = jnp.pad(w_mat, ((0, 0), (0, Np - N))).astype(jnp.bfloat16)
    b = jnp.pad(b_vec, (0, Np - N)).reshape(1, Np).astype(jnp.float32)
    return w, b


# Sub-pixel fold of UpsamplingNearest2d(2x) + Conv2d(3,1,padding=1):
# output(2i+a, 2j+b) = sum_{r,c in {0,1}} W_eff[a,b][r,c] . h_pad[i+a+r, j+b+c]
# where W_eff combines original kernel rows/cols per the tap groups below.
_TAP_GROUPS = {(0, 0): (0,), (0, 1): (1, 2), (1, 0): (0, 1), (1, 1): (2,)}


def pack_upsample_conv3x3(w_pt, b_pt):
    """w_pt:(Cout,Cin,3,3). Returns a (9*Cin, round_up(4*Cout,128)) matmul weight whose 4 output
    groups (a,b) reproduce conv3x3(upsample2x(h)); consume with im2col_3x3 + depth_to_space_2x."""
    cout, cin = w_pt.shape[0], w_pt.shape[1]
    w_big = jnp.zeros((9, cin, 4, cout), jnp.float32)
    for a in range(2):
        for b in range(2):
            for r in range(2):
                for c in range(2):
                    dr, dc = a + r, b + c
                    acc = jnp.zeros((cout, cin), jnp.float32)
                    for ky in _TAP_GROUPS[(a, r)]:
                        for kx in _TAP_GROUPS[(b, c)]:
                            acc = acc + w_pt[:, :, ky, kx]
                    w_big = w_big.at[dr * 3 + dc, :, a * 2 + b, :].set(acc.T)
    w_mat = w_big.reshape(9 * cin, 4 * cout)
    b_vec = jnp.tile(b_pt, 4)
    return _pack_matmul_weight(w_mat, b_vec)


def init_params(key, nc, nef, ndf, nz, isize):
    out_size = isize // 16
    params = {}
    keys = iter(jax.random.split(key, 64))

    # Encoder convs (4x4, stride 2, pad 1): nc -> nef -> 2nef -> 4nef -> 8nef
    enc_io = [(nc, nef), (nef, nef * 2), (nef * 2, nef * 4), (nef * 4, nef * 8)]
    for idx, (cin, cout) in enumerate(enc_io):
        bound = 1.0 / math.sqrt(cin * 4 * 4)
        w_pt = _uniform(next(keys), (cout, cin, 4, 4), bound)          # PyTorch layout
        w_mat = jnp.transpose(w_pt, (2, 3, 1, 0)).reshape(4 * 4 * cin, cout)
        b_pt = _uniform(next(keys), (cout,), bound)
        params[f"enc{idx}_w"], params[f"enc{idx}_b"] = _pack_matmul_weight(w_mat, b_pt)

    # mean / logvar linears fused into one matmul: (nef*8*out*out) -> 2*nz
    feat = nef * 8 * out_size * out_size
    bound = 1.0 / math.sqrt(feat)
    w_mean = _uniform(next(keys), (feat, nz), bound)
    b_mean = _uniform(next(keys), (nz,), bound)
    w_lv = _uniform(next(keys), (feat, nz), bound)
    b_lv = _uniform(next(keys), (nz,), bound)
    params["ml_w"], params["ml_b"] = _pack_matmul_weight(
        jnp.concatenate([w_mean, w_lv], axis=1), jnp.concatenate([b_mean, b_lv], axis=0))

    # decoder dense: nz -> ndf*8*out*out
    dfeat = ndf * 8 * out_size * out_size
    bound = 1.0 / math.sqrt(nz)
    params["dec_dense_w"], params["dec_dense_b"] = _pack_matmul_weight(
        _uniform(next(keys), (nz, dfeat), bound), _uniform(next(keys), (dfeat,), bound))

    # Decoder convs (3x3, stride 1, pad 1) on a 2x nearest-upsample, sub-pixel folded.
    dec_io = [(ndf * 8, ndf * 4), (ndf * 4, ndf * 2), (ndf * 2, ndf), (ndf, nc)]
    for idx, (cin, cout) in enumerate(dec_io):
        bound = 1.0 / math.sqrt(cin * 3 * 3)
        w_pt = _uniform(next(keys), (cout, cin, 3, 3), bound)
        b_pt = _uniform(next(keys), (cout,), bound)
        params[f"dec{idx}_w"], params[f"dec{idx}_b"] = pack_upsample_conv3x3(w_pt, b_pt)
    return params


# ----------------------------------------------------------------------------
# VAE forward
# ----------------------------------------------------------------------------

def vae_forward(params, x_nchw, noise, *, nc, nef, ndf, nz, isize):
    N = x_nchw.shape[0]
    out_size = isize // 16

    # ----- Encoder: 4 x (Conv4x4 s2 -> LeakyReLU(0.2) -> BatchNorm2d(batch stats)) -----
    enc_ch = [nef, nef * 2, nef * 4, nef * 8]
    h = jnp.transpose(x_nchw, (0, 2, 3, 1)).astype(jnp.bfloat16)       # NHWC bf16
    h_last = None
    for i in range(4):
        patches, Ho, Wo = im2col_s2(h, k=4, stride=2, pad=1)           # bf16 patches
        M, C = patches.shape[0], enc_ch[i]
        y_pad, s1, s2 = pallas_matmul(patches, params[f"enc{i}_w"], params[f"enc{i}_b"],
                                      act="leaky", with_stats=True, out_dtype=jnp.bfloat16)
        cnt = jnp.float32(M)
        mean_c = s1[:C] / cnt
        var_c = jnp.maximum(s2[:C] / cnt - mean_c * mean_c, 0.0)       # biased var (train mode)
        inv = lax.rsqrt(var_c + BN_EPS)
        scale, shift = inv, -mean_c * inv
        # BN normalize as a cheap XLA elementwise, fused into the next gather / flatten.
        yn = y_pad[:M, :C].astype(jnp.float32) * scale + shift
        if i < 3:
            h = yn.astype(jnp.bfloat16).reshape(N, Ho, Wo, C)
        else:
            h_last = yn.reshape(N, Ho, Wo, C)

    # flatten in PyTorch NCHW order
    feat = jnp.transpose(h_last, (0, 3, 1, 2)).reshape(N, -1).astype(jnp.bfloat16)

    # ----- fused mean/logvar projection (f32 output: tiny, feeds sampling/KL) -----
    ml = pallas_matmul(feat, params["ml_w"], params["ml_b"], act="none",
                       out_dtype=jnp.float32)
    mean = ml[:N, :nz]
    logvar = ml[:N, nz:2 * nz]
    z, kl = pallas_posterior_sample_kl(mean, logvar, noise)

    # ----- Decoder -----
    dfeat = ndf * 8 * out_size * out_size
    hd_flat = pallas_matmul(z.astype(jnp.bfloat16), params["dec_dense_w"],
                            params["dec_dense_b"], act="relu", out_dtype=jnp.bfloat16)
    hd = hd_flat[:N, :dfeat].reshape(N, ndf * 8, out_size, out_size)   # PyTorch .view -> NCHW
    hd = jnp.transpose(hd, (0, 2, 3, 1))                               # NHWC bf16

    dec_cout = [ndf * 4, ndf * 2, ndf, nc]
    H = W = out_size
    for i in range(4):
        patches = im2col_3x3(hd)                                       # (N*H*W, 9*Cin) bf16
        is_last = (i == 3)
        y_pad = pallas_matmul(patches, params[f"dec{i}_w"], params[f"dec{i}_b"],
                              act=("none" if is_last else "leaky"),
                              out_dtype=(jnp.float32 if is_last else jnp.bfloat16))
        hd = depth_to_space_2x(y_pad, N * H * W, dec_cout[i], N, H, W)
        H, W = 2 * H, 2 * W

    recon = jnp.transpose(hd, (0, 3, 1, 2))                            # NCHW f32

    # ----- recon.mode(), recon.nll(x), posterior.kl() -----
    nll = pallas_nll(x_nchw.reshape(N, -1), recon.reshape(N, -1))
    return recon, nll, kl.reshape(N)


# ----------------------------------------------------------------------------
# Main
# ----------------------------------------------------------------------------

if __name__ == "__main__":
    # Small config consistent with the module (input_size must be divisible by 16).
    batch = 2
    in_channels = 3
    nef = 8           # encoder_features
    ndf = 8           # decoder_features
    z_dim = 16
    isize = 32

    key = jax.random.PRNGKey(0)
    kx, knoise, kparams = jax.random.split(key, 3)

    x = jax.random.normal(kx, (batch, in_channels, isize, isize), jnp.float32)   # NCHW
    noise = jax.random.normal(knoise, (batch, z_dim), jnp.float32)               # reparam noise
    params = init_params(kparams, in_channels, nef, ndf, z_dim, isize)

    fwd = jax.jit(functools.partial(vae_forward, nc=in_channels, nef=nef, ndf=ndf,
                                    nz=z_dim, isize=isize))
    recon, nll, kl = fwd(params, x, noise)
    jax.block_until_ready((recon, nll, kl))

    assert recon.shape == (batch, in_channels, isize, isize)
    assert nll.shape == (batch,)
    assert kl.shape == (batch,)
    assert bool(jnp.all(jnp.isfinite(recon))) and bool(jnp.all(jnp.isfinite(nll))) \
        and bool(jnp.all(jnp.isfinite(kl)))

    print("KERNEL_OK")
</pallas_src>

<mosaic_0001>
module attributes {stable_mosaic.version = 11 : i64} {
  func.func @_mm_kernel(%arg0: i32, %arg1: i32, %arg2: i32, %arg3: memref<512x48xbf16, #tpu.memory_space<vmem>>, %arg4: memref<48x128xbf16, #tpu.memory_space<vmem>>, %arg5: memref<1x128xf32, #tpu.memory_space<vmem>>, %arg6: memref<512x128xbf16, #tpu.memory_space<vmem>>, %arg7: memref<1x2x128xf32, #tpu.memory_space<vmem>>, %arg8: memref<512x128xf32, #tpu.memory_space<vmem>>) attributes {dimension_semantics = [#tpu.dimension_semantics<parallel>, #tpu.dimension_semantics<parallel>, #tpu.dimension_semantics<arbitrary>], iteration_bounds = array<i64: 1, 1, 1>, scalar_prefetch = 0 : i64, scratch_operands = 1 : i64, tpu.core_type = #tpu.core_type<tc>, window_params = [{transform_indices = @transform_0, window_bounds = array<i64: 512, 48>}, {transform_indices = @transform_1, window_bounds = array<i64: 48, 128>}, {transform_indices = @transform_2, window_bounds = array<i64: 1, 128>}, {transform_indices = @transform_3, window_bounds = array<i64: 512, 128>}, {transform_indices = @transform_4, window_bounds = array<i64: 1, 2, 128>}]} {
    %c0 = arith.constant 0 : index
    %c0_0 = arith.constant 0 : index
    %0 = vector.load %arg3[%c0, %c0_0] : memref<512x48xbf16, #tpu.memory_space<vmem>>, vector<512x48xbf16>
    %c0_1 = arith.constant 0 : index
    %c0_2 = arith.constant 0 : index
    %1 = vector.load %arg4[%c0_1, %c0_2] : memref<48x128xbf16, #tpu.memory_space<vmem>>, vector<48x128xbf16>
    %cst = arith.constant dense<0.000000e+00> : vector<512x128xf32>
    %2 = tpu.matmul %0, %1, %cst {dimension_numbers = #tpu.dot_dimension_numbers<[1], [0], [0], [1], [0, 0, 1, 1], [], []>} : vector<512x48xbf16>, vector<48x128xbf16>, vector<512x128xf32> -> vector<512x128xf32>
    %c0_3 = arith.constant 0 : index
    %c0_4 = arith.constant 0 : index
    %3 = vector.load %arg5[%c0_3, %c0_4] : memref<1x128xf32, #tpu.memory_space<vmem>>, vector<1x128xf32>
    %4 = vector.broadcast %3 : vector<1x128xf32> to vector<512x128xf32>
    %5 = arith.addf %2, %4 : vector<512x128xf32>
    %cst_5 = arith.constant 0.000000e+00 : f32
    %6 = vector.broadcast %cst_5 : f32 to vector<512x128xf32>
    %7 = arith.cmpf oge, %5, %6 : vector<512x128xf32>
    %cst_6 = arith.constant 2.000000e-01 : f32
    %8 = vector.broadcast %cst_6 : f32 to vector<512x128xf32>
    %9 = arith.mulf %8, %5 : vector<512x128xf32>
    %10 = arith.select %7, %5, %9 : vector<512x128xi1>, vector<512x128xf32>
    %11 = arith.truncf %10 : vector<512x128xf32> to vector<512x128xbf16>
    %c0_7 = arith.constant 0 : index
    %c0_8 = arith.constant 0 : index
    %12 = vector.load %arg6[%c0_7, %c0_8] : memref<512x128xbf16, #tpu.memory_space<vmem>>, vector<512x128xbf16>
    tpu.vector_store %arg6[%c0_7, %c0_8], %11 {strides = array<i32>} : memref<512x128xbf16, #tpu.memory_space<vmem>>, vector<512x128xbf16>,
    %c512_i32 = arith.constant 512 : i32
    %13 = arith.muli %arg0, %c512_i32 : i32
    %14 = tpu.iota {dimensions = array<i32: 0>} : vector<512x1xi32>
    %15 = vector.broadcast %13 : i32 to vector<512x1xi32>
    %16 = arith.addi %15, %14 : vector<512x1xi32>
    %c512_i32_9 = arith.constant 512 : i32
    %17 = vector.broadcast %c512_i32_9 : i32 to vector<512x1xi32>
    %18 = arith.cmpi slt, %16, %17 : vector<512x1xi32>
    %19 = arith.extui %18 : vector<512x1xi1> to vector<512x1xi32>
    %20 = arith.sitofp %19 : vector<512x1xi32> to vector<512x1xf32>
    %21 = vector.broadcast %20 : vector<512x1xf32> to vector<512x128xf32>
    %22 = arith.mulf %10, %21 : vector<512x128xf32>
    %cst_10 = arith.constant dense<0.000000e+00> : vector<128xf32>
    %23 = vector.multi_reduction <add>, %22, %cst_10 [0] : vector<512x128xf32> to vector<128xf32>
    %24 = vector.shape_cast %23 : vector<128xf32> to vector<1x128xf32>
    %25 = arith.mulf %22, %22 : vector<512x128xf32>
    %cst_11 = arith.constant dense<0.000000e+00> : vector<128xf32>
    %26 = vector.multi_reduction <add>, %25, %cst_11 [0] : vector<512x128xf32> to vector<128xf32>
    %27 = vector.shape_cast %26 : vector<128xf32> to vector<1x128xf32>
    %28 = tpu.concatenate %24, %27 in 0 : vector<1x128xf32>, vector<1x128xf32> -> vector<2x128xf32>
    %29 = vector.shape_cast %28 : vector<2x128xf32> to vector<1x2x128xf32>
    %c0_12 = arith.constant 0 : index
    %c0_13 = arith.constant 0 : index
    %c0_14 = arith.constant 0 : index
    %30 = vector.load %arg7[%c0_12, %c0_13, %c0_14] : memref<1x2x128xf32, #tpu.memory_space<vmem>>, vector<1x2x128xf32>
    tpu.vector_store %arg7[%c0_12, %c0_13, %c0_14], %29 {strides = array<i32>} : memref<1x2x128xf32, #tpu.memory_space<vmem>>, vector<1x2x128xf32>,
    return
  }
  func.func @transform_0(%arg0: i32, %arg1: i32, %arg2: i32) -> (i32, i32) {
    %c0_i32 = arith.constant 0 : i32
    return %arg0, %arg2 : i32, i32
  }
  func.func @transform_1(%arg0: i32, %arg1: i32, %arg2: i32) -> (i32, i32) {
    %c0_i32 = arith.constant 0 : i32
    return %arg2, %arg1 : i32, i32
  }
  func.func @transform_2(%arg0: i32, %arg1: i32, %arg2: i32) -> (i32, i32) {
    %c0_i32 = arith.constant 0 : i32
    %c0_i32_0 = arith.constant 0 : i32
    return %c0_i32, %arg1 : i32, i32
  }
  func.func @transform_3(%arg0: i32, %arg1: i32, %arg2: i32) -> (i32, i32) {
    %c0_i32 = arith.constant 0 : i32
    return %arg0, %arg1 : i32, i32
  }
  func.func @transform_4(%arg0: i32, %arg1: i32, %arg2: i32) -> (i32, i32, i32) {
    %c0_i32 = arith.constant 0 : i32
    %c0_i32_0 = arith.constant 0 : i32
    return %arg0, %c0_i32, %arg1 : i32, i32, i32
  }
}

module attributes {stable_mosaic.version = 11 : i64} {
  func.func @_mm_kernel(%arg0: i32, %arg1: i32, %arg2: i32, %arg3: memref<128x128xbf16, #tpu.memory_space<vmem>>, %arg4: memref<128x128xbf16, #tpu.memory_space<vmem>>, %arg5: memref<1x128xf32, #tpu.memory_space<vmem>>, %arg6: memref<128x128xbf16, #tpu.memory_space<vmem>>, %arg7: memref<1x2x128xf32, #tpu.memory_space<vmem>>, %arg8: memref<128x128xf32, #tpu.memory_space<vmem>>) attributes {dimension_semantics = [#tpu.dimension_semantics<parallel>, #tpu.dimension_semantics<parallel>, #tpu.dimension_semantics<arbitrary>], iteration_bounds = array<i64: 1, 1, 1>, scalar_prefetch = 0 : i64, scratch_operands = 1 : i64, tpu.core_type = #tpu.core_type<tc>, window_params = [{transform_indices = @transform_0, window_bounds = array<i64: 128, 128>}, {transform_indices = @transform_1, window_bounds = array<i64: 128, 128>}, {transform_indices = @transform_2, window_bounds = array<i64: 1, 128>}, {transform_indices = @transform_3, window_bounds = array<i64: 128, 128>}, {transform_indices = @transform_4, window_bounds = array<i64: 1, 2, 128>}]} {
    %c0 = arith.constant 0 : index
    %c0_0 = arith.constant 0 : index
    %0 = vector.load %arg3[%c0, %c0_0] : memref<128x128xbf16, #tpu.memory_space<vmem>>, vector<128x128xbf16>
    %c0_1 = arith.constant 0 : index
    %c0_2 = arith.constant 0 : index
    %1 = vector.load %arg4[%c0_1, %c0_2] : memref<128x128xbf16, #tpu.memory_space<vmem>>, vector<128x128xbf16>
    %cst = arith.constant dense<0.000000e+00> : vector<128x128xf32>
    %2 = tpu.matmul %0, %1, %cst {dimension_numbers = #tpu.dot_dimension_numbers<[1], [0], [0], [1], [0, 0, 1, 1], [], []>} : vector<128x128xbf16>, vector<128x128xbf16>, vector<128x128xf32> -> vector<128x128xf32>
    %c0_3 = arith.constant 0 : index
    %c0_4 = arith.constant 0 : index
    %3 = vector.load %arg5[%c0_3, %c0_4] : memref<1x128xf32, #tpu.memory_space<vmem>>, vector<1x128xf32>
    %4 = vector.broadcast %3 : vector<1x128xf32> to vector<128x128xf32>
    %5 = arith.addf %2, %4 : vector<128x128xf32>
    %cst_5 = arith.constant 0.000000e+00 : f32
    %6 = vector.broadcast %cst_5 : f32 to vector<128x128xf32>
    %7 = arith.cmpf oge, %5, %6 : vector<128x128xf32>
    %cst_6 = arith.constant 2.000000e-01 : f32
    %8 = vector.broadcast %cst_6 : f32 to vector<128x128xf32>
    %9 = arith.mulf %8, %5 : vector<128x128xf32>
    %10 = arith.select %7, %5, %9 : vector<128x128xi1>, vector<128x128xf32>
    %11 = arith.truncf %10 : vector<128x128xf32> to vector<128x128xbf16>
    %c0_7 = arith.constant 0 : index
    %c0_8 = arith.constant 0 : index
    %12 = vector.load %arg6[%c0_7, %c0_8] : memref<128x128xbf16, #tpu.memory_space<vmem>>, vector<128x128xbf16>
    tpu.vector_store %arg6[%c0_7, %c0_8], %11 {strides = array<i32>} : memref<128x128xbf16, #tpu.memory_space<vmem>>, vector<128x128xbf16>,
    %c128_i32 = arith.constant 128 : i32
    %13 = arith.muli %arg0, %c128_i32 : i32
    %14 = tpu.iota {dimensions = array<i32: 0>} : vector<128x1xi32>
    %15 = vector.broadcast %13 : i32 to vector<128x1xi32>
    %16 = arith.addi %15, %14 : vector<128x1xi32>
    %c128_i32_9 = arith.constant 128 : i32
    %17 = vector.broadcast %c128_i32_9 : i32 to vector<128x1xi32>
    %18 = arith.cmpi slt, %16, %17 : vector<128x1xi32>
    %19 = arith.extui %18 : vector<128x1xi1> to vector<128x1xi32>
    %20 = arith.sitofp %19 : vector<128x1xi32> to vector<128x1xf32>
    %21 = vector.broadcast %20 : vector<128x1xf32> to vector<128x128xf32>
    %22 = arith.mulf %10, %21 : vector<128x128xf32>
    %cst_10 = arith.constant dense<0.000000e+00> : vector<128xf32>
    %23 = vector.multi_reduction <add>, %22, %cst_10 [0] : vector<128x128xf32> to vector<128xf32>
    %24 = vector.shape_cast %23 : vector<128xf32> to vector<1x128xf32>
    %25 = arith.mulf %22, %22 : vector<128x128xf32>
    %cst_11 = arith.constant dense<0.000000e+00> : vector<128xf32>
    %26 = vector.multi_reduction <add>, %25, %cst_11 [0] : vector<128x128xf32> to vector<128xf32>
    %27 = vector.shape_cast %26 : vector<128xf32> to vector<1x128xf32>
    %28 = tpu.concatenate %24, %27 in 0 : vector<1x128xf32>, vector<1x128xf32> -> vector<2x128xf32>
    %29 = vector.shape_cast %28 : vector<2x128xf32> to vector<1x2x128xf32>
    %c0_12 = arith.constant 0 : index
    %c0_13 = arith.constant 0 : index
    %c0_14 = arith.constant 0 : index
    %30 = vector.load %arg7[%c0_12, %c0_13, %c0_14] : memref<1x2x128xf32, #tpu.memory_space<vmem>>, vector<1x2x128xf32>
    tpu.vector_store %arg7[%c0_12, %c0_13, %c0_14], %29 {strides = array<i32>} : memref<1x2x128xf32, #tpu.memory_space<vmem>>, vector<1x2x128xf32>,
    return
  }
  func.func @transform_0(%arg0: i32, %arg1: i32, %arg2: i32) -> (i32, i32) {
    %c0_i32 = arith.constant 0 : i32
    return %arg0, %arg2 : i32, i32
  }
  func.func @transform_1(%arg0: i32, %arg1: i32, %arg2: i32) -> (i32, i32) {
    %c0_i32 = arith.constant 0 : i32
    return %arg2, %arg1 : i32, i32
  }
  func.func @transform_2(%arg0: i32, %arg1: i32, %arg2: i32) -> (i32, i32) {
    %c0_i32 = arith.constant 0 : i32
    %c0_i32_0 = arith.constant 0 : i32
    return %c0_i32, %arg1 : i32, i32
  }
  func.func @transform_3(%arg0: i32, %arg1: i32, %arg2: i32) -> (i32, i32) {
    %c0_i32 = arith.constant 0 : i32
    return %arg0, %arg1 : i32, i32
  }
  func.func @transform_4(%arg0: i32, %arg1: i32, %arg2: i32) -> (i32, i32, i32) {
    %c0_i32 = arith.constant 0 : i32
    %c0_i32_0 = arith.constant 0 : i32
    return %arg0, %c0_i32, %arg1 : i32, i32, i32
  }
}

module attributes {stable_mosaic.version = 11 : i64} {
  func.func @_mm_kernel(%arg0: i32, %arg1: i32, %arg2: i32, %arg3: memref<32x256xbf16, #tpu.memory_space<vmem>>, %arg4: memref<256x128xbf16, #tpu.memory_space<vmem>>, %arg5: memref<1x128xf32, #tpu.memory_space<vmem>>, %arg6: memref<32x128xbf16, #tpu.memory_space<vmem>>, %arg7: memref<1x2x128xf32, #tpu.memory_space<vmem>>, %arg8: memref<32x128xf32, #tpu.memory_space<vmem>>) attributes {dimension_semantics = [#tpu.dimension_semantics<parallel>, #tpu.dimension_semantics<parallel>, #tpu.dimension_semantics<arbitrary>], iteration_bounds = array<i64: 1, 1, 1>, scalar_prefetch = 0 : i64, scratch_operands = 1 : i64, tpu.core_type = #tpu.core_type<tc>, window_params = [{transform_indices = @transform_0, window_bounds = array<i64: 32, 256>}, {transform_indices = @transform_1, window_bounds = array<i64: 256, 128>}, {transform_indices = @transform_2, window_bounds = array<i64: 1, 128>}, {transform_indices = @transform_3, window_bounds = array<i64: 32, 128>}, {transform_indices = @transform_4, window_bounds = array<i64: 1, 2, 128>}]} {
    %c0 = arith.constant 0 : index
    %c0_0 = arith.constant 0 : index
    %0 = vector.load %arg3[%c0, %c0_0] : memref<32x256xbf16, #tpu.memory_space<vmem>>, vector<32x256xbf16>
    %c0_1 = arith.constant 0 : index
    %c0_2 = arith.constant 0 : index
    %1 = vector.load %arg4[%c0_1, %c0_2] : memref<256x128xbf16, #tpu.memory_space<vmem>>, vector<256x128xbf16>
    %cst = arith.constant dense<0.000000e+00> : vector<32x128xf32>
    %2 = tpu.matmul %0, %1, %cst {dimension_numbers = #tpu.dot_dimension_numbers<[1], [0], [0], [1], [0, 0, 1, 1], [], []>} : vector<32x256xbf16>, vector<256x128xbf16>, vector<32x128xf32> -> vector<32x128xf32>
    %c0_3 = arith.constant 0 : index
    %c0_4 = arith.constant 0 : index
    %3 = vector.load %arg5[%c0_3, %c0_4] : memref<1x128xf32, #tpu.memory_space<vmem>>, vector<1x128xf32>
    %4 = vector.broadcast %3 : vector<1x128xf32> to vector<32x128xf32>
    %5 = arith.addf %2, %4 : vector<32x128xf32>
    %cst_5 = arith.constant 0.000000e+00 : f32
    %6 = vector.broadcast %cst_5 : f32 to vector<32x128xf32>
    %7 = arith.cmpf oge, %5, %6 : vector<32x128xf32>
    %cst_6 = arith.constant 2.000000e-01 : f32
    %8 = vector.broadcast %cst_6 : f32 to vector<32x128xf32>
    %9 = arith.mulf %8, %5 : vector<32x128xf32>
    %10 = arith.select %7, %5, %9 : vector<32x128xi1>, vector<32x128xf32>
    %11 = arith.truncf %10 : vector<32x128xf32> to vector<32x128xbf16>
    %c0_7 = arith.constant 0 : index
    %c0_8 = arith.constant 0 : index
    %12 = vector.load %arg6[%c0_7, %c0_8] : memref<32x128xbf16, #tpu.memory_space<vmem>>, vector<32x128xbf16>
    tpu.vector_store %arg6[%c0_7, %c0_8], %11 {strides = array<i32>} : memref<32x128xbf16, #tpu.memory_space<vmem>>, vector<32x128xbf16>,
    %c32_i32 = arith.constant 32 : i32
    %13 = arith.muli %arg0, %c32_i32 : i32
    %14 = tpu.iota {dimensions = array<i32: 0>} : vector<32x1xi32>
    %15 = vector.broadcast %13 : i32 to vector<32x1xi32>
    %16 = arith.addi %15, %14 : vector<32x1xi32>
    %c32_i32_9 = arith.constant 32 : i32
    %17 = vector.broadcast %c32_i32_9 : i32 to vector<32x1xi32>
    %18 = arith.cmpi slt, %16, %17 : vector<32x1xi32>
    %19 = arith.extui %18 : vector<32x1xi1> to vector<32x1xi32>
    %20 = arith.sitofp %19 : vector<32x1xi32> to vector<32x1xf32>
    %21 = vector.broadcast %20 : vector<32x1xf32> to vector<32x128xf32>
    %22 = arith.mulf %10, %21 : vector<32x128xf32>
    %cst_10 = arith.constant dense<0.000000e+00> : vector<128xf32>
    %23 = vector.multi_reduction <add>, %22, %cst_10 [0] : vector<32x128xf32> to vector<128xf32>
    %24 = vector.shape_cast %23 : vector<128xf32> to vector<1x128xf32>
    %25 = arith.mulf %22, %22 : vector<32x128xf32>
    %cst_11 = arith.constant dense<0.000000e+00> : vector<128xf32>
    %26 = vector.multi_reduction <add>, %25, %cst_11 [0] : vector<32x128xf32> to vector<128xf32>
    %27 = vector.shape_cast %26 : vector<128xf32> to vector<1x128xf32>
    %28 = tpu.concatenate %24, %27 in 0 : vector<1x128xf32>, vector<1x128xf32> -> vector<2x128xf32>
    %29 = vector.shape_cast %28 : vector<2x128xf32> to vector<1x2x128xf32>
    %c0_12 = arith.constant 0 : index
    %c0_13 = arith.constant 0 : index
    %c0_14 = arith.constant 0 : index
    %30 = vector.load %arg7[%c0_12, %c0_13, %c0_14] : memref<1x2x128xf32, #tpu.memory_space<vmem>>, vector<1x2x128xf32>
    tpu.vector_store %arg7[%c0_12, %c0_13, %c0_14], %29 {strides = array<i32>} : memref<1x2x128xf32, #tpu.memory_space<vmem>>, vector<1x2x128xf32>,
    return
  }
  func.func @transform_0(%arg0: i32, %arg1: i32, %arg2: i32) -> (i32, i32) {
    %c0_i32 = arith.constant 0 : i32
    return %arg0, %arg2 : i32, i32
  }
  func.func @transform_1(%arg0: i32, %arg1: i32, %arg2: i32) -> (i32, i32) {
    %c0_i32 = arith.constant 0 : i32
    return %arg2, %arg1 : i32, i32
  }
  func.func @transform_2(%arg0: i32, %arg1: i32, %arg2: i32) -> (i32, i32) {
    %c0_i32 = arith.constant 0 : i32
    %c0_i32_0 = arith.constant 0 : i32
    return %c0_i32, %arg1 : i32, i32
  }
  func.func @transform_3(%arg0: i32, %arg1: i32, %arg2: i32) -> (i32, i32) {
    %c0_i32 = arith.constant 0 : i32
    return %arg0, %arg1 : i32, i32
  }
  func.func @transform_4(%arg0: i32, %arg1: i32, %arg2: i32) -> (i32, i32, i32) {
    %c0_i32 = arith.constant 0 : i32
    %c0_i32_0 = arith.constant 0 : i32
    return %arg0, %c0_i32, %arg1 : i32, i32, i32
  }
}

module attributes {stable_mosaic.version = 11 : i64} {
  func.func @_mm_kernel(%arg0: i32, %arg1: i32, %arg2: i32, %arg3: memref<16x512xbf16, #tpu.memory_space<vmem>>, %arg4: memref<512x128xbf16, #tpu.memory_space<vmem>>, %arg5: memref<1x128xf32, #tpu.memory_space<vmem>>, %arg6: memref<16x128xbf16, #tpu.memory_space<vmem>>, %arg7: memref<1x2x128xf32, #tpu.memory_space<vmem>>, %arg8: memref<16x128xf32, #tpu.memory_space<vmem>>) attributes {dimension_semantics = [#tpu.dimension_semantics<parallel>, #tpu.dimension_semantics<parallel>, #tpu.dimension_semantics<arbitrary>], iteration_bounds = array<i64: 1, 1, 1>, scalar_prefetch = 0 : i64, scratch_operands = 1 : i64, tpu.core_type = #tpu.core_type<tc>, window_params = [{transform_indices = @transform_0, window_bounds = array<i64: 16, 512>}, {transform_indices = @transform_1, window_bounds = array<i64: 512, 128>}, {transform_indices = @transform_2, window_bounds = array<i64: 1, 128>}, {transform_indices = @transform_3, window_bounds = array<i64: 16, 128>}, {transform_indices = @transform_4, window_bounds = array<i64: 1, 2, 128>}]} {
    %c0 = arith.constant 0 : index
    %c0_0 = arith.constant 0 : index
    %0 = vector.load %arg3[%c0, %c0_0] : memref<16x512xbf16, #tpu.memory_space<vmem>>, vector<16x512xbf16>
    %c0_1 = arith.constant 0 : index
    %c0_2 = arith.constant 0 : index
    %1 = vector.load %arg4[%c0_1, %c0_2] : memref<512x128xbf16, #tpu.memory_space<vmem>>, vector<512x128xbf16>
    %cst = arith.constant dense<0.000000e+00> : vector<16x128xf32>
    %2 = tpu.matmul %0, %1, %cst {dimension_numbers = #tpu.dot_dimension_numbers<[1], [0], [0], [1], [0, 0, 1, 1], [], []>} : vector<16x512xbf16>, vector<512x128xbf16>, vector<16x128xf32> -> vector<16x128xf32>
    %c0_3 = arith.constant 0 : index
    %c0_4 = arith.constant 0 : index
    %3 = vector.load %arg5[%c0_3, %c0_4] : memref<1x128xf32, #tpu.memory_space<vmem>>, vector<1x128xf32>
    %4 = vector.broadcast %3 : vector<1x128xf32> to vector<16x128xf32>
    %5 = arith.addf %2, %4 : vector<16x128xf32>
    %cst_5 = arith.constant 0.000000e+00 : f32
    %6 = vector.broadcast %cst_5 : f32 to vector<16x128xf32>
    %7 = arith.cmpf oge, %5, %6 : vector<16x128xf32>
    %cst_6 = arith.constant 2.000000e-01 : f32
    %8 = vector.broadcast %cst_6 : f32 to vector<16x128xf32>
    %9 = arith.mulf %8, %5 : vector<16x128xf32>
    %10 = arith.select %7, %5, %9 : vector<16x128xi1>, vector<16x128xf32>
    %11 = arith.truncf %10 : vector<16x128xf32> to vector<16x128xbf16>
    %c0_7 = arith.constant 0 : index
    %c0_8 = arith.constant 0 : index
    %12 = vector.load %arg6[%c0_7, %c0_8] : memref<16x128xbf16, #tpu.memory_space<vmem>>, vector<16x128xbf16>
    tpu.vector_store %arg6[%c0_7, %c0_8], %11 {strides = array<i32>} : memref<16x128xbf16, #tpu.memory_space<vmem>>, vector<16x128xbf16>,
    %c16_i32 = arith.constant 16 : i32
    %13 = arith.muli %arg0, %c16_i32 : i32
    %14 = tpu.iota {dimensions = array<i32: 0>} : vector<16x1xi32>
    %15 = vector.broadcast %13 : i32 to vector<16x1xi32>
    %16 = arith.addi %15, %14 : vector<16x1xi32>
    %c8_i32 = arith.constant 8 : i32
    %17 = vector.broadcast %c8_i32 : i32 to vector<16x1xi32>
    %18 = arith.cmpi slt, %16, %17 : vector<16x1xi32>
    %19 = arith.extui %18 : vector<16x1xi1> to vector<16x1xi32>
    %20 = arith.sitofp %19 : vector<16x1xi32> to vector<16x1xf32>
    %21 = vector.broadcast %20 : vector<16x1xf32> to vector<16x128xf32>
    %22 = arith.mulf %10, %21 : vector<16x128xf32>
    %cst_9 = arith.constant dense<0.000000e+00> : vector<128xf32>
    %23 = vector.multi_reduction <add>, %22, %cst_9 [0] : vector<16x128xf32> to vector<128xf32>
    %24 = vector.shape_cast %23 : vector<128xf32> to vector<1x128xf32>
    %25 = arith.mulf %22, %22 : vector<16x128xf32>
    %cst_10 = arith.constant dense<0.000000e+00> : vector<128xf32>
    %26 = vector.multi_reduction <add>, %25, %cst_10 [0] : vector<16x128xf32> to vector<128xf32>
    %27 = vector.shape_cast %26 : vector<128xf32> to vector<1x128xf32>
    %28 = tpu.concatenate %24, %27 in 0 : vector<1x128xf32>, vector<1x128xf32> -> vector<2x128xf32>
    %29 = vector.shape_cast %28 : vector<2x128xf32> to vector<1x2x128xf32>
    %c0_11 = arith.constant 0 : index
    %c0_12 = arith.constant 0 : index
    %c0_13 = arith.constant 0 : index
    %30 = vector.load %arg7[%c0_11, %c0_12, %c0_13] : memref<1x2x128xf32, #tpu.memory_space<vmem>>, vector<1x2x128xf32>
    tpu.vector_store %arg7[%c0_11, %c0_12, %c0_13], %29 {strides = array<i32>} : memref<1x2x128xf32, #tpu.memory_space<vmem>>, vector<1x2x128xf32>,
    return
  }
  func.func @transform_0(%arg0: i32, %arg1: i32, %arg2: i32) -> (i32, i32) {
    %c0_i32 = arith.constant 0 : i32
    return %arg0, %arg2 : i32, i32
  }
  func.func @transform_1(%arg0: i32, %arg1: i32, %arg2: i32) -> (i32, i32) {
    %c0_i32 = arith.constant 0 : i32
    return %arg2, %arg1 : i32, i32
  }
  func.func @transform_2(%arg0: i32, %arg1: i32, %arg2: i32) -> (i32, i32) {
    %c0_i32 = arith.constant 0 : i32
    %c0_i32_0 = arith.constant 0 : i32
    return %c0_i32, %arg1 : i32, i32
  }
  func.func @transform_3(%arg0: i32, %arg1: i32, %arg2: i32) -> (i32, i32) {
    %c0_i32 = arith.constant 0 : i32
    return %arg0, %arg1 : i32, i32
  }
  func.func @transform_4(%arg0: i32, %arg1: i32, %arg2: i32) -> (i32, i32, i32) {
    %c0_i32 = arith.constant 0 : i32
    %c0_i32_0 = arith.constant 0 : i32
    return %arg0, %c0_i32, %arg1 : i32, i32, i32
  }
}

module attributes {stable_mosaic.version = 11 : i64} {
  func.func @_mm_kernel(%arg0: i32, %arg1: i32, %arg2: i32, %arg3: memref<16x256xbf16, #tpu.memory_space<vmem>>, %arg4: memref<256x128xbf16, #tpu.memory_space<vmem>>, %arg5: memref<1x128xf32, #tpu.memory_space<vmem>>, %arg6: memref<16x128xf32, #tpu.memory_space<vmem>>, %arg7: memref<16x128xf32, #tpu.memory_space<vmem>>) attributes {dimension_semantics = [#tpu.dimension_semantics<parallel>, #tpu.dimension_semantics<parallel>, #tpu.dimension_semantics<arbitrary>], iteration_bounds = array<i64: 1, 1, 1>, scalar_prefetch = 0 : i64, scratch_operands = 1 : i64, tpu.core_type = #tpu.core_type<tc>, window_params = [{transform_indices = @transform_0, window_bounds = array<i64: 16, 256>}, {transform_indices = @transform_1, window_bounds = array<i64: 256, 128>}, {transform_indices = @transform_2, window_bounds = array<i64: 1, 128>}, {transform_indices = @transform_3, window_bounds = array<i64: 16, 128>}]} {
    %c0 = arith.constant 0 : index
    %c0_0 = arith.constant 0 : index
    %0 = vector.load %arg3[%c0, %c0_0] : memref<16x256xbf16, #tpu.memory_space<vmem>>, vector<16x256xbf16>
    %c0_1 = arith.constant 0 : index
    %c0_2 = arith.constant 0 : index
    %1 = vector.load %arg4[%c0_1, %c0_2] : memref<256x128xbf16, #tpu.memory_space<vmem>>, vector<256x128xbf16>
    %cst = arith.constant dense<0.000000e+00> : vector<16x128xf32>
    %2 = tpu.matmul %0, %1, %cst {dimension_numbers = #tpu.dot_dimension_numbers<[1], [0], [0], [1], [0, 0, 1, 1], [], []>} : vector<16x256xbf16>, vector<256x128xbf16>, vector<16x128xf32> -> vector<16x128xf32>
    %c0_3 = arith.constant 0 : index
    %c0_4 = arith.constant 0 : index
    %3 = vector.load %arg5[%c0_3, %c0_4] : memref<1x128xf32, #tpu.memory_space<vmem>>, vector<1x128xf32>
    %4 = vector.broadcast %3 : vector<1x128xf32> to vector<16x128xf32>
    %5 = arith.addf %2, %4 : vector<16x128xf32>
    %c0_5 = arith.constant 0 : index
    %c0_6 = arith.constant 0 : index
    %6 = vector.load %arg6[%c0_5, %c0_6] : memref<16x128xf32, #tpu.memory_space<vmem>>, vector<16x128xf32>
    tpu.vector_store %arg6[%c0_5, %c0_6], %5 {strides = array<i32>} : memref<16x128xf32, #tpu.memory_space<vmem>>, vector<16x128xf32>,
    return
  }
  func.func @transform_0(%arg0: i32, %arg1: i32, %arg2: i32) -> (i32, i32) {
    %c0_i32 = arith.constant 0 : i32
    return %arg0, %arg2 : i32, i32
  }
  func.func @transform_1(%arg0: i32, %arg1: i32, %arg2: i32) -> (i32, i32) {
    %c0_i32 = arith.constant 0 : i32
    return %arg2, %arg1 : i32, i32
  }
  func.func @transform_2(%arg0: i32, %arg1: i32, %arg2: i32) -> (i32, i32) {
    %c0_i32 = arith.constant 0 : i32
    %c0_i32_0 = arith.constant 0 : i32
    return %c0_i32, %arg1 : i32, i32
  }
  func.func @transform_3(%arg0: i32, %arg1: i32, %arg2: i32) -> (i32, i32) {
    %c0_i32 = arith.constant 0 : i32
    return %arg0, %arg1 : i32, i32
  }
}

module attributes {stable_mosaic.version = 11 : i64} {
  func.func @_posterior_kernel(%arg0: memref<2x16xf32, #tpu.memory_space<vmem>>, %arg1: memref<2x16xf32, #tpu.memory_space<vmem>>, %arg2: memref<2x16xf32, #tpu.memory_space<vmem>>, %arg3: memref<2x16xf32, #tpu.memory_space<vmem>>, %arg4: memref<2x1xf32, #tpu.memory_space<vmem>>) attributes {dimension_semantics = [], scalar_prefetch = 0 : i64, scratch_operands = 0 : i64, tpu.core_type = #tpu.core_type<tc>} {
    %c0 = arith.constant 0 : index
    %c0_0 = arith.constant 0 : index
    %0 = vector.load %arg0[%c0, %c0_0] : memref<2x16xf32, #tpu.memory_space<vmem>>, vector<2x16xf32>
    %c0_1 = arith.constant 0 : index
    %c0_2 = arith.constant 0 : index
    %1 = vector.load %arg1[%c0_1, %c0_2] : memref<2x16xf32, #tpu.memory_space<vmem>>, vector<2x16xf32>
    %cst = arith.constant -3.000000e+01 : f32
    %cst_3 = arith.constant 2.000000e+01 : f32
    %2 = vector.broadcast %cst : f32 to vector<2x16xf32>
    %3 = arith.maximumf %2, %1 : vector<2x16xf32>
    %4 = vector.broadcast %cst_3 : f32 to vector<2x16xf32>
    %5 = arith.minimumf %4, %3 : vector<2x16xf32>
    %cst_4 = arith.constant 5.000000e-01 : f32
    %6 = vector.broadcast %cst_4 : f32 to vector<2x16xf32>
    %7 = arith.mulf %6, %5 : vector<2x16xf32>
    %8 = math.exp %7 : vector<2x16xf32>
    %9 = math.exp %5 : vector<2x16xf32>
    %c0_5 = arith.constant 0 : index
    %c0_6 = arith.constant 0 : index
    %10 = vector.load %arg2[%c0_5, %c0_6] : memref<2x16xf32, #tpu.memory_space<vmem>>, vector<2x16xf32>
    %11 = arith.mulf %8, %10 : vector<2x16xf32>
    %12 = arith.addf %0, %11 : vector<2x16xf32>
    %c0_7 = arith.constant 0 : index
    %c0_8 = arith.constant 0 : index
    %13 = vector.load %arg3[%c0_7, %c0_8] : memref<2x16xf32, #tpu.memory_space<vmem>>, vector<2x16xf32>
    tpu.vector_store %arg3[%c0_7, %c0_8], %12 {strides = array<i32>} : memref<2x16xf32, #tpu.memory_space<vmem>>, vector<2x16xf32>,
    %14 = arith.mulf %0, %0 : vector<2x16xf32>
    %15 = arith.addf %9, %14 : vector<2x16xf32>
    %cst_9 = arith.constant 1.000000e+00 : f32
    %16 = vector.broadcast %cst_9 : f32 to vector<2x16xf32>
    %17 = arith.subf %15, %16 : vector<2x16xf32>
    %18 = arith.subf %17, %5 : vector<2x16xf32>
    %cst_10 = arith.constant dense<0.000000e+00> : vector<2xf32>
    %19 = vector.multi_reduction <add>, %18, %cst_10 [1] : vector<2x16xf32> to vector<2xf32>
    %20 = vector.shape_cast %19 : vector<2xf32> to vector<2x1xf32>
    %cst_11 = arith.constant 5.000000e-01 : f32
    %21 = vector.broadcast %cst_11 : f32 to vector<2x1xf32>
    %22 = arith.mulf %21, %20 : vector<2x1xf32>
    %c0_12 = arith.constant 0 : index
    %c0_13 = arith.constant 0 : index
    %23 = vector.load %arg4[%c0_12, %c0_13] : memref<2x1xf32, #tpu.memory_space<vmem>>, vector<2x1xf32>
    tpu.vector_store %arg4[%c0_12, %c0_13], %22 {strides = array<i32>} : memref<2x1xf32, #tpu.memory_space<vmem>>, vector<2x1xf32>,
    return
  }
}

module attributes {stable_mosaic.version = 11 : i64} {
  func.func @_mm_kernel(%arg0: i32, %arg1: i32, %arg2: i32, %arg3: memref<16x16xbf16, #tpu.memory_space<vmem>>, %arg4: memref<16x256xbf16, #tpu.memory_space<vmem>>, %arg5: memref<1x256xf32, #tpu.memory_space<vmem>>, %arg6: memref<16x256xbf16, #tpu.memory_space<vmem>>, %arg7: memref<16x256xf32, #tpu.memory_space<vmem>>) attributes {dimension_semantics = [#tpu.dimension_semantics<parallel>, #tpu.dimension_semantics<parallel>, #tpu.dimension_semantics<arbitrary>], iteration_bounds = array<i64: 1, 1, 1>, scalar_prefetch = 0 : i64, scratch_operands = 1 : i64, tpu.core_type = #tpu.core_type<tc>, window_params = [{transform_indices = @transform_0, window_bounds = array<i64: 16, 16>}, {transform_indices = @transform_1, window_bounds = array<i64: 16, 256>}, {transform_indices = @transform_2, window_bounds = array<i64: 1, 256>}, {transform_indices = @transform_3, window_bounds = array<i64: 16, 256>}]} {
    %c0 = arith.constant 0 : index
    %c0_0 = arith.constant 0 : index
    %0 = vector.load %arg3[%c0, %c0_0] : memref<16x16xbf16, #tpu.memory_space<vmem>>, vector<16x16xbf16>
    %c0_1 = arith.constant 0 : index
    %c0_2 = arith.constant 0 : index
    %1 = vector.load %arg4[%c0_1, %c0_2] : memref<16x256xbf16, #tpu.memory_space<vmem>>, vector<16x256xbf16>
    %cst = arith.constant dense<0.000000e+00> : vector<16x256xf32>
    %2 = tpu.matmul %0, %1, %cst {dimension_numbers = #tpu.dot_dimension_numbers<[1], [0], [0], [1], [0, 0, 1, 1], [], []>} : vector<16x16xbf16>, vector<16x256xbf16>, vector<16x256xf32> -> vector<16x256xf32>
    %c0_3 = arith.constant 0 : index
    %c0_4 = arith.constant 0 : index
    %3 = vector.load %arg5[%c0_3, %c0_4] : memref<1x256xf32, #tpu.memory_space<vmem>>, vector<1x256xf32>
    %4 = vector.broadcast %3 : vector<1x256xf32> to vector<16x256xf32>
    %5 = arith.addf %2, %4 : vector<16x256xf32>
    %cst_5 = arith.constant 0.000000e+00 : f32
    %6 = vector.broadcast %cst_5 : f32 to vector<16x256xf32>
    %7 = arith.maximumf %5, %6 : vector<16x256xf32>
    %8 = arith.truncf %7 : vector<16x256xf32> to vector<16x256xbf16>
    %c0_6 = arith.constant 0 : index
    %c0_7 = arith.constant 0 : index
    %9 = vector.load %arg6[%c0_6, %c0_7] : memref<16x256xbf16, #tpu.memory_space<vmem>>, vector<16x256xbf16>
    tpu.vector_store %arg6[%c0_6, %c0_7], %8 {strides = array<i32>} : memref<16x256xbf16, #tpu.memory_space<vmem>>, vector<16x256xbf16>,
    return
  }
  func.func @transform_0(%arg0: i32, %arg1: i32, %arg2: i32) -> (i32, i32) {
    %c0_i32 = arith.constant 0 : i32
    return %arg0, %arg2 : i32, i32
  }
  func.func @transform_1(%arg0: i32, %arg1: i32, %arg2: i32) -> (i32, i32) {
    %c0_i32 = arith.constant 0 : i32
    return %arg2, %arg1 : i32, i32
  }
  func.func @transform_2(%arg0: i32, %arg1: i32, %arg2: i32) -> (i32, i32) {
    %c0_i32 = arith.constant 0 : i32
    %c0_i32_0 = arith.constant 0 : i32
    return %c0_i32, %arg1 : i32, i32
  }
  func.func @transform_3(%arg0: i32, %arg1: i32, %arg2: i32) -> (i32, i32) {
    %c0_i32 = arith.constant 0 : i32
    return %arg0, %arg1 : i32, i32
  }
}

module attributes {stable_mosaic.version = 11 : i64} {
  func.func @_mm_kernel(%arg0: i32, %arg1: i32, %arg2: i32, %arg3: memref<16x576xbf16, #tpu.memory_space<vmem>>, %arg4: memref<576x128xbf16, #tpu.memory_space<vmem>>, %arg5: memref<1x128xf32, #tpu.memory_space<vmem>>, %arg6: memref<16x128xbf16, #tpu.memory_space<vmem>>, %arg7: memref<16x128xf32, #tpu.memory_space<vmem>>) attributes {dimension_semantics = [#tpu.dimension_semantics<parallel>, #tpu.dimension_semantics<parallel>, #tpu.dimension_semantics<arbitrary>], iteration_bounds = array<i64: 1, 1, 1>, scalar_prefetch = 0 : i64, scratch_operands = 1 : i64, tpu.core_type = #tpu.core_type<tc>, window_params = [{transform_indices = @transform_0, window_bounds = array<i64: 16, 576>}, {transform_indices = @transform_1, window_bounds = array<i64: 576, 128>}, {transform_indices = @transform_2, window_bounds = array<i64: 1, 128>}, {transform_indices = @transform_3, window_bounds = array<i64: 16, 128>}]} {
    %c0 = arith.constant 0 : index
    %c0_0 = arith.constant 0 : index
    %0 = vector.load %arg3[%c0, %c0_0] : memref<16x576xbf16, #tpu.memory_space<vmem>>, vector<16x576xbf16>
    %c0_1 = arith.constant 0 : index
    %c0_2 = arith.constant 0 : index
    %1 = vector.load %arg4[%c0_1, %c0_2] : memref<576x128xbf16, #tpu.memory_space<vmem>>, vector<576x128xbf16>
    %cst = arith.constant dense<0.000000e+00> : vector<16x128xf32>
    %2 = tpu.matmul %0, %1, %cst {dimension_numbers = #tpu.dot_dimension_numbers<[1], [0], [0], [1], [0, 0, 1, 1], [], []>} : vector<16x576xbf16>, vector<576x128xbf16>, vector<16x128xf32> -> vector<16x128xf32>
    %c0_3 = arith.constant 0 : index
    %c0_4 = arith.constant 0 : index
    %3 = vector.load %arg5[%c0_3, %c0_4] : memref<1x128xf32, #tpu.memory_space<vmem>>, vector<1x128xf32>
    %4 = vector.broadcast %3 : vector<1x128xf32> to vector<16x128xf32>
    %5 = arith.addf %2, %4 : vector<16x128xf32>
    %cst_5 = arith.constant 0.000000e+00 : f32
    %6 = vector.broadcast %cst_5 : f32 to vector<16x128xf32>
    %7 = arith.cmpf oge, %5, %6 : vector<16x128xf32>
    %cst_6 = arith.constant 2.000000e-01 : f32
    %8 = vector.broadcast %cst_6 : f32 to vector<16x128xf32>
    %9 = arith.mulf %8, %5 : vector<16x128xf32>
    %10 = arith.select %7, %5, %9 : vector<16x128xi1>, vector<16x128xf32>
    %11 = arith.truncf %10 : vector<16x128xf32> to vector<16x128xbf16>
    %c0_7 = arith.constant 0 : index
    %c0_8 = arith.constant 0 : index
    %12 = vector.load %arg6[%c0_7, %c0_8] : memref<16x128xbf16, #tpu.memory_space<vmem>>, vector<16x128xbf16>
    tpu.vector_store %arg6[%c0_7, %c0_8], %11 {strides = array<i32>} : memref<16x128xbf16, #tpu.memory_space<vmem>>, vector<16x128xbf16>,
    return
  }
  func.func @transform_0(%arg0: i32, %arg1: i32, %arg2: i32) -> (i32, i32) {
    %c0_i32 = arith.constant 0 : i32
    return %arg0, %arg2 : i32, i32
  }
  func.func @transform_1(%arg0: i32, %arg1: i32, %arg2: i32) -> (i32, i32) {
    %c0_i32 = arith.constant 0 : i32
    return %arg2, %arg1 : i32, i32
  }
  func.func @transform_2(%arg0: i32, %arg1: i32, %arg2: i32) -> (i32, i32) {
    %c0_i32 = arith.constant 0 : i32
    %c0_i32_0 = arith.constant 0 : i32
    return %c0_i32, %arg1 : i32, i32
  }
  func.func @transform_3(%arg0: i32, %arg1: i32, %arg2: i32) -> (i32, i32) {
    %c0_i32 = arith.constant 0 : i32
    return %arg0, %arg1 : i32, i32
  }
}

module attributes {stable_mosaic.version = 11 : i64} {
  func.func @_mm_kernel(%arg0: i32, %arg1: i32, %arg2: i32, %arg3: memref<32x288xbf16, #tpu.memory_space<vmem>>, %arg4: memref<288x128xbf16, #tpu.memory_space<vmem>>, %arg5: memref<1x128xf32, #tpu.memory_space<vmem>>, %arg6: memref<32x128xbf16, #tpu.memory_space<vmem>>, %arg7: memref<32x128xf32, #tpu.memory_space<vmem>>) attributes {dimension_semantics = [#tpu.dimension_semantics<parallel>, #tpu.dimension_semantics<parallel>, #tpu.dimension_semantics<arbitrary>], iteration_bounds = array<i64: 1, 1, 1>, scalar_prefetch = 0 : i64, scratch_operands = 1 : i64, tpu.core_type = #tpu.core_type<tc>, window_params = [{transform_indices = @transform_0, window_bounds = array<i64: 32, 288>}, {transform_indices = @transform_1, window_bounds = array<i64: 288, 128>}, {transform_indices = @transform_2, window_bounds = array<i64: 1, 128>}, {transform_indices = @transform_3, window_bounds = array<i64: 32, 128>}]} {
    %c0 = arith.constant 0 : index
    %c0_0 = arith.constant 0 : index
    %0 = vector.load %arg3[%c0, %c0_0] : memref<32x288xbf16, #tpu.memory_space<vmem>>, vector<32x288xbf16>
    %c0_1 = arith.constant 0 : index
    %c0_2 = arith.constant 0 : index
    %1 = vector.load %arg4[%c0_1, %c0_2] : memref<288x128xbf16, #tpu.memory_space<vmem>>, vector<288x128xbf16>
    %cst = arith.constant dense<0.000000e+00> : vector<32x128xf32>
    %2 = tpu.matmul %0, %1, %cst {dimension_numbers = #tpu.dot_dimension_numbers<[1], [0], [0], [1], [0, 0, 1, 1], [], []>} : vector<32x288xbf16>, vector<288x128xbf16>, vector<32x128xf32> -> vector<32x128xf32>
    %c0_3 = arith.constant 0 : index
    %c0_4 = arith.constant 0 : index
    %3 = vector.load %arg5[%c0_3, %c0_4] : memref<1x128xf32, #tpu.memory_space<vmem>>, vector<1x128xf32>
    %4 = vector.broadcast %3 : vector<1x128xf32> to vector<32x128xf32>
    %5 = arith.addf %2, %4 : vector<32x128xf32>
    %cst_5 = arith.constant 0.000000e+00 : f32
    %6 = vector.broadcast %cst_5 : f32 to vector<32x128xf32>
    %7 = arith.cmpf oge, %5, %6 : vector<32x128xf32>
    %cst_6 = arith.constant 2.000000e-01 : f32
    %8 = vector.broadcast %cst_6 : f32 to vector<32x128xf32>
    %9 = arith.mulf %8, %5 : vector<32x128xf32>
    %10 = arith.select %7, %5, %9 : vector<32x128xi1>, vector<32x128xf32>
    %11 = arith.truncf %10 : vector<32x128xf32> to vector<32x128xbf16>
    %c0_7 = arith.constant 0 : index
    %c0_8 = arith.constant 0 : index
    %12 = vector.load %arg6[%c0_7, %c0_8] : memref<32x128xbf16, #tpu.memory_space<vmem>>, vector<32x128xbf16>
    tpu.vector_store %arg6[%c0_7, %c0_8], %11 {strides = array<i32>} : memref<32x128xbf16, #tpu.memory_space<vmem>>, vector<32x128xbf16>,
    return
  }
  func.func @transform_0(%arg0: i32, %arg1: i32, %arg2: i32) -> (i32, i32) {
    %c0_i32 = arith.constant 0 : i32
    return %arg0, %arg2 : i32, i32
  }
  func.func @transform_1(%arg0: i32, %arg1: i32, %arg2: i32) -> (i32, i32) {
    %c0_i32 = arith.constant 0 : i32
    return %arg2, %arg1 : i32, i32
  }
  func.func @transform_2(%arg0: i32, %arg1: i32, %arg2: i32) -> (i32, i32) {
    %c0_i32 = arith.constant 0 : i32
    %c0_i32_0 = arith.constant 0 : i32
    return %c0_i32, %arg1 : i32, i32
  }
  func.func @transform_3(%arg0: i32, %arg1: i32, %arg2: i32) -> (i32, i32) {
    %c0_i32 = arith.constant 0 : i32
    return %arg0, %arg1 : i32, i32
  }
}

module attributes {stable_mosaic.version = 11 : i64} {
  func.func @_mm_kernel(%arg0: i32, %arg1: i32, %arg2: i32, %arg3: memref<128x144xbf16, #tpu.memory_space<vmem>>, %arg4: memref<144x128xbf16, #tpu.memory_space<vmem>>, %arg5: memref<1x128xf32, #tpu.memory_space<vmem>>, %arg6: memref<128x128xbf16, #tpu.memory_space<vmem>>, %arg7: memref<128x128xf32, #tpu.memory_space<vmem>>) attributes {dimension_semantics = [#tpu.dimension_semantics<parallel>, #tpu.dimension_semantics<parallel>, #tpu.dimension_semantics<arbitrary>], iteration_bounds = array<i64: 1, 1, 1>, scalar_prefetch = 0 : i64, scratch_operands = 1 : i64, tpu.core_type = #tpu.core_type<tc>, window_params = [{transform_indices = @transform_0, window_bounds = array<i64: 128, 144>}, {transform_indices = @transform_1, window_bounds = array<i64: 144, 128>}, {transform_indices = @transform_2, window_bounds = array<i64: 1, 128>}, {transform_indices = @transform_3, window_bounds = array<i64: 128, 128>}]} {
    %c0 = arith.constant 0 : index
    %c0_0 = arith.constant 0 : index
    %0 = vector.load %arg3[%c0, %c0_0] : memref<128x144xbf16, #tpu.memory_space<vmem>>, vector<128x144xbf16>
    %c0_1 = arith.constant 0 : index
    %c0_2 = arith.constant 0 : index
    %1 = vector.load %arg4[%c0_1, %c0_2] : memref<144x128xbf16, #tpu.memory_space<vmem>>, vector<144x128xbf16>
    %cst = arith.constant dense<0.000000e+00> : vector<128x128xf32>
    %2 = tpu.matmul %0, %1, %cst {dimension_numbers = #tpu.dot_dimension_numbers<[1], [0], [0], [1], [0, 0, 1, 1], [], []>} : vector<128x144xbf16>, vector<144x128xbf16>, vector<128x128xf32> -> vector<128x128xf32>
    %c0_3 = arith.constant 0 : index
    %c0_4 = arith.constant 0 : index
    %3 = vector.load %arg5[%c0_3, %c0_4] : memref<1x128xf32, #tpu.memory_space<vmem>>, vector<1x128xf32>
    %4 = vector.broadcast %3 : vector<1x128xf32> to vector<128x128xf32>
    %5 = arith.addf %2, %4 : vector<128x128xf32>
    %cst_5 = arith.constant 0.000000e+00 : f32
    %6 = vector.broadcast %cst_5 : f32 to vector<128x128xf32>
    %7 = arith.cmpf oge, %5, %6 : vector<128x128xf32>
    %cst_6 = arith.constant 2.000000e-01 : f32
    %8 = vector.broadcast %cst_6 : f32 to vector<128x128xf32>
    %9 = arith.mulf %8, %5 : vector<128x128xf32>
    %10 = arith.select %7, %5, %9 : vector<128x128xi1>, vector<128x128xf32>
    %11 = arith.truncf %10 : vector<128x128xf32> to vector<128x128xbf16>
    %c0_7 = arith.constant 0 : index
    %c0_8 = arith.constant 0 : index
    %12 = vector.load %arg6[%c0_7, %c0_8] : memref<128x128xbf16, #tpu.memory_space<vmem>>, vector<128x128xbf16>
    tpu.vector_store %arg6[%c0_7, %c0_8], %11 {strides = array<i32>} : memref<128x128xbf16, #tpu.memory_space<vmem>>, vector<128x128xbf16>,
    return
  }
  func.func @transform_0(%arg0: i32, %arg1: i32, %arg2: i32) -> (i32, i32) {
    %c0_i32 = arith.constant 0 : i32
    return %arg0, %arg2 : i32, i32
  }
  func.func @transform_1(%arg0: i32, %arg1: i32, %arg2: i32) -> (i32, i32) {
    %c0_i32 = arith.constant 0 : i32
    return %arg2, %arg1 : i32, i32
  }
  func.func @transform_2(%arg0: i32, %arg1: i32, %arg2: i32) -> (i32, i32) {
    %c0_i32 = arith.constant 0 : i32
    %c0_i32_0 = arith.constant 0 : i32
    return %c0_i32, %arg1 : i32, i32
  }
  func.func @transform_3(%arg0: i32, %arg1: i32, %arg2: i32) -> (i32, i32) {
    %c0_i32 = arith.constant 0 : i32
    return %arg0, %arg1 : i32, i32
  }
}

module attributes {stable_mosaic.version = 11 : i64} {
  func.func @_mm_kernel(%arg0: i32, %arg1: i32, %arg2: i32, %arg3: memref<512x72xbf16, #tpu.memory_space<vmem>>, %arg4: memref<72x128xbf16, #tpu.memory_space<vmem>>, %arg5: memref<1x128xf32, #tpu.memory_space<vmem>>, %arg6: memref<512x128xf32, #tpu.memory_space<vmem>>, %arg7: memref<512x128xf32, #tpu.memory_space<vmem>>) attributes {dimension_semantics = [#tpu.dimension_semantics<parallel>, #tpu.dimension_semantics<parallel>, #tpu.dimension_semantics<arbitrary>], iteration_bounds = array<i64: 1, 1, 1>, scalar_prefetch = 0 : i64, scratch_operands = 1 : i64, tpu.core_type = #tpu.core_type<tc>, window_params = [{transform_indices = @transform_0, window_bounds = array<i64: 512, 72>}, {transform_indices = @transform_1, window_bounds = array<i64: 72, 128>}, {transform_indices = @transform_2, window_bounds = array<i64: 1, 128>}, {transform_indices = @transform_3, window_bounds = array<i64: 512, 128>}]} {
    %c0 = arith.constant 0 : index
    %c0_0 = arith.constant 0 : index
    %0 = vector.load %arg3[%c0, %c0_0] : memref<512x72xbf16, #tpu.memory_space<vmem>>, vector<512x72xbf16>
    %c0_1 = arith.constant 0 : index
    %c0_2 = arith.constant 0 : index
    %1 = vector.load %arg4[%c0_1, %c0_2] : memref<72x128xbf16, #tpu.memory_space<vmem>>, vector<72x128xbf16>
    %cst = arith.constant dense<0.000000e+00> : vector<512x128xf32>
    %2 = tpu.matmul %0, %1, %cst {dimension_numbers = #tpu.dot_dimension_numbers<[1], [0], [0], [1], [0, 0, 1, 1], [], []>} : vector<512x72xbf16>, vector<72x128xbf16>, vector<512x128xf32> -> vector<512x128xf32>
    %c0_3 = arith.constant 0 : index
    %c0_4 = arith.constant 0 : index
    %3 = vector.load %arg5[%c0_3, %c0_4] : memref<1x128xf32, #tpu.memory_space<vmem>>, vector<1x128xf32>
    %4 = vector.broadcast %3 : vector<1x128xf32> to vector<512x128xf32>
    %5 = arith.addf %2, %4 : vector<512x128xf32>
    %c0_5 = arith.constant 0 : index
    %c0_6 = arith.constant 0 : index
    %6 = vector.load %arg6[%c0_5, %c0_6] : memref<512x128xf32, #tpu.memory_space<vmem>>, vector<512x128xf32>
    tpu.vector_store %arg6[%c0_5, %c0_6], %5 {strides = array<i32>} : memref<512x128xf32, #tpu.memory_space<vmem>>, vector<512x128xf32>,
    return
  }
  func.func @transform_0(%arg0: i32, %arg1: i32, %arg2: i32) -> (i32, i32) {
    %c0_i32 = arith.constant 0 : i32
    return %arg0, %arg2 : i32, i32
  }
  func.func @transform_1(%arg0: i32, %arg1: i32, %arg2: i32) -> (i32, i32) {
    %c0_i32 = arith.constant 0 : i32
    return %arg2, %arg1 : i32, i32
  }
  func.func @transform_2(%arg0: i32, %arg1: i32, %arg2: i32) -> (i32, i32) {
    %c0_i32 = arith.constant 0 : i32
    %c0_i32_0 = arith.constant 0 : i32
    return %c0_i32, %arg1 : i32, i32
  }
  func.func @transform_3(%arg0: i32, %arg1: i32, %arg2: i32) -> (i32, i32) {
    %c0_i32 = arith.constant 0 : i32
    return %arg0, %arg1 : i32, i32
  }
}

module attributes {stable_mosaic.version = 11 : i64} {
  func.func @_nll_kernel(%arg0: i32, %arg1: memref<2x3072xf32, #tpu.memory_space<vmem>>, %arg2: memref<2x3072xf32, #tpu.memory_space<vmem>>, %arg3: memref<2x1xf32, #tpu.memory_space<vmem>>) attributes {dimension_semantics = [#tpu.dimension_semantics<arbitrary>], iteration_bounds = array<i64: 1>, scalar_prefetch = 0 : i64, scratch_operands = 0 : i64, tpu.core_type = #tpu.core_type<tc>, window_params = [{transform_indices = @transform_0, window_bounds = array<i64: 2, 3072>}, {transform_indices = @transform_1, window_bounds = array<i64: 2, 3072>}, {pipeline_mode = #tpu.pipeline_mode<synchronous>, transform_indices = @transform_2, window_bounds = array<i64: 2, 1>}]} {
    %c0_i32 = arith.constant 0 : i32
    %0 = arith.cmpi eq, %arg0, %c0_i32 : i32
    %1 = arith.extui %0 : i1 to i32
    %c0_i32_0 = arith.constant 0 : i32
    %2 = arith.cmpi ne, %1, %c0_i32_0 : i32
    scf.if %2 {
      %cst_9 = arith.constant 0.000000e+00 : f32
      %14 = vector.broadcast %cst_9 : f32 to vector<2x1xf32>
      %c0_10 = arith.constant 0 : index
      %c0_11 = arith.constant 0 : index
      %15 = vector.load %arg3[%c0_10, %c0_11] : memref<2x1xf32, #tpu.memory_space<vmem>>, vector<2x1xf32>
      tpu.vector_store %arg3[%c0_10, %c0_11], %14 {strides = array<i32>} : memref<2x1xf32, #tpu.memory_space<vmem>>, vector<2x1xf32>,
    } else {
    }
    %c0 = arith.constant 0 : index
    %c0_1 = arith.constant 0 : index
    %3 = vector.load %arg1[%c0, %c0_1] : memref<2x3072xf32, #tpu.memory_space<vmem>>, vector<2x3072xf32>
    %c0_2 = arith.constant 0 : index
    %c0_3 = arith.constant 0 : index
    %4 = vector.load %arg2[%c0_2, %c0_3] : memref<2x3072xf32, #tpu.memory_space<vmem>>, vector<2x3072xf32>
    %5 = arith.subf %3, %4 : vector<2x3072xf32>
    %c0_4 = arith.constant 0 : index
    %c0_5 = arith.constant 0 : index
    %6 = vector.load %arg3[%c0_4, %c0_5] : memref<2x1xf32, #tpu.memory_space<vmem>>, vector<2x1xf32>
    %7 = arith.mulf %5, %5 : vector<2x3072xf32>
    %cst = arith.constant dense<0.000000e+00> : vector<2xf32>
    %8 = vector.multi_reduction <add>, %7, %cst [1] : vector<2x3072xf32> to vector<2xf32>
    %9 = vector.shape_cast %8 : vector<2xf32> to vector<2x1xf32>
    %cst_6 = arith.constant 5.000000e-01 : f32
    %10 = vector.broadcast %cst_6 : f32 to vector<2x1xf32>
    %11 = arith.mulf %10, %9 : vector<2x1xf32>
    %12 = arith.addf %6, %11 : vector<2x1xf32>
    %c0_7 = arith.constant 0 : index
    %c0_8 = arith.constant 0 : index
    %13 = vector.load %arg3[%c0_7, %c0_8] : memref<2x1xf32, #tpu.memory_space<vmem>>, vector<2x1xf32>
    tpu.vector_store %arg3[%c0_7, %c0_8], %12 {strides = array<i32>} : memref<2x1xf32, #tpu.memory_space<vmem>>, vector<2x1xf32>,
    return
  }
  func.func @transform_0(%arg0: i32) -> (i32, i32) {
    %c0_i32 = arith.constant 0 : i32
    %c0_i32_0 = arith.constant 0 : i32
    return %c0_i32, %arg0 : i32, i32
  }
  func.func @transform_1(%arg0: i32) -> (i32, i32) {
    %c0_i32 = arith.constant 0 : i32
    %c0_i32_0 = arith.constant 0 : i32
    return %c0_i32, %arg0 : i32, i32
  }
  func.func @transform_2(%arg0: i32) -> (i32, i32) {
    %c0_i32 = arith.constant 0 : i32
    %c0_i32_0 = arith.constant 0 : i32
    %c0_i32_1 = arith.constant 0 : i32
    return %c0_i32, %c0_i32_0 : i32, i32
  }
}

</mosaic_0001>

<llo_original>
// kernel: vae_forward.12
$region0: #{vae_forward.12}
  #allocation0 [shape = 'u32[]', space=smem, size = 0x4, offset = 0x4, fixed_abs, tag = 'smem constant byte address 0x4 - core index']
  #allocation1 [shape = 'u32[72,128]{1,0:T(1,128)}', space=vmem, size = 0x9000, scoped, tag = 'internal scratch']
  #allocation2 [shape = 'f32[512,128]{1,0:T(8,128)}', space=vmem, size = 0x40000, scoped, tag = 'scratch operand']
  %s0 = inlined_call_operand.vmem [shape: bf16[512,48], index: 0, kind: input, shape index: {}]
  %s1 = inlined_call_operand.vmem [shape: bf16[48,128], index: 1, kind: input, shape index: {}]
  %s2 = inlined_call_operand.vmem [shape: f32[1,128], index: 2, kind: input, shape index: {}]
  %s3 = inlined_call_operand.vmem [shape: bf16[512,128], index: 3, kind: output, shape index: {0}]
  %s4 = inlined_call_operand.vmem [shape: f32[1,2,128], index: 4, kind: output, shape index: {1}]
  %5 = xla_tuple %s3, %s4
  %s6 = sld [smem:[#allocation0]]
  $region30: #{vae_forward.12} parent=0
    _
  %s8 = ssub.s32 1, %s6
  %s9 = scalar_select 0, %s8, %s6
  // Predicated region
  $region2: #{vae_forward.12} parent=0 // pred_check
    _
  $region3: #{vae_forward.12} parent=0 // pred_check_branch
    %11 = sbr.rel (0) target = $region5
  $region4: #{vae_forward.12} parent=0 // pred_region
    _
  $region5: #{vae_forward.12} parent=0 // pred_fallthru
    _
  // Predicated region
  $region6: #{vae_forward.12} parent=0 // pred_check
    _
  $region7: #{vae_forward.12} parent=0 // pred_check_branch
    %13 = sbr.rel (0) target = $region9
  $region8: #{vae_forward.12} parent=0 // pred_region
    _
  $region9: #{vae_forward.12} parent=0 // pred_fallthru
    _
  // Predicated region
  $region10: #{vae_forward.12} parent=0 // pred_check
    _
  $region11: #{vae_forward.12} parent=0 // pred_check_branch
    %15 = sbr.rel (0) target = $region13
  $region12: #{vae_forward.12} parent=0 // pred_region
    _
  $region13: #{vae_forward.12} parent=0 // pred_fallthru
    _
  %v17 = vld [vmem:[%s0] sm:$0xf]
  %v18 = vld [vmem:[%s0 + $0x4] sm:$0xf]
  %v19 = vld [vmem:[%s0 + $0x8] sm:$0xf]
  %v20 = vld [vmem:[%s0 + $0xc] sm:$0xf]
  %v21 = vld [vmem:[%s0 + $0x10] sm:$0xf]
  %v22 = vld [vmem:[%s0 + $0x14] sm:$0xf]
  %v23 = vld [vmem:[%s0 + $0x18] sm:$0xf]
  %v24 = vld [vmem:[%s0 + $0x1c] sm:$0xf]
  %v25 = vld [vmem:[%s0 + $0x20] sm:$0xf]
  %v26 = vld [vmem:[%s0 + $0x24] sm:$0xf]
  %v27 = vld [vmem:[%s0 + $0x28] sm:$0xf]
  %v28 = vld [vmem:[%s0 + $0x2c] sm:$0xf]
  %v29 = vld [vmem:[%s0 + $0x30] sm:$0xf]
  %v30 = vld [vmem:[%s0 + $0x34] sm:$0xf]
  %v31 = vld [vmem:[%s0 + $0x38] sm:$0xf]
  %v32 = vld [vmem:[%s0 + $0x3c] sm:$0xf]
  %v33 = vld [vmem:[%s0 + $0x40] sm:$0xf]
  %v34 = vld [vmem:[%s0 + $0x44] sm:$0xf]
  %v35 = vld [vmem:[%s0 + $0x48] sm:$0xf]
  %v36 = vld [vmem:[%s0 + $0x4c] sm:$0xf]
  %v37 = vld [vmem:[%s0 + $0x50] sm:$0xf]
  %v38 = vld [vmem:[%s0 + $0x54] sm:$0xf]
  %v39 = vld [vmem:[%s0 + $0x58] sm:$0xf]
  %v40 = vld [vmem:[%s0 + $0x5c] sm:$0xf]
  %v41 = vld [vmem:[%s0 + $0x60] sm:$0xf]
  %v42 = vld [vmem:[%s0 + $0x64] sm:$0xf]
  %v43 = vld [vmem:[%s0 + $0x68] sm:$0xf]
  %v44 = vld [vmem:[%s0 + $0x6c] sm:$0xf]
  %v45 = vld [vmem:[%s0 + $0x70] sm:$0xf]
  %v46 = vld [vmem:[%s0 + $0x74] sm:$0xf]
  %v47 = vld [vmem:[%s0 + $0x78] sm:$0xf]
  %v48 = vld [vmem:[%s0 + $0x7c] sm:$0xf]
  %v49 = vld [vmem:[%s0 + $0x80] sm:$0xf]
  %v50 = vld [vmem:[%s0 + $0x84] sm:$0xf]
  %v51 = vld [vmem:[%s0 + $0x88] sm:$0xf]
  %v52 = vld [vmem:[%s0 + $0x8c] sm:$0xf]
  %v53 = vld [vmem:[%s0 + $0x90] sm:$0xf]
  %v54 = vld [vmem:[%s0 + $0x94] sm:$0xf]
  %v55 = vld [vmem:[%s0 + $0x98] sm:$0xf]
  %v56 = vld [vmem:[%s0 + $0x9c] sm:$0xf]
  %v57 = vld [vmem:[%s0 + $0xa0] sm:$0xf]
  %v58 = vld [vmem:[%s0 + $0xa4] sm:$0xf]
  %v59 = vld [vmem:[%s0 + $0xa8] sm:$0xf]
  %v60 = vld [vmem:[%s0 + $0xac] sm:$0xf]
  %v61 = vld [vmem:[%s0 + $0xb0] sm:$0xf]
  %v62 = vld [vmem:[%s0 + $0xb4] sm:$0xf]
  %v63 = vld [vmem:[%s0 + $0xb8] sm:$0xf]
  %v64 = vld [vmem:[%s0 + $0xbc] sm:$0xf]
  %v65 = vld [vmem:[%s0 + $0xc0] sm:$0xf]
  %v66 = vld [vmem:[%s0 + $0xc4] sm:$0xf]
  %v67 = vld [vmem:[%s0 + $0xc8] sm:$0xf]
  %v68 = vld [vmem:[%s0 + $0xcc] sm:$0xf]
  %v69 = vld [vmem:[%s0 + $0xd0] sm:$0xf]
  %v70 = vld [vmem:[%s0 + $0xd4] sm:$0xf]
  %v71 = vld [vmem:[%s0 + $0xd8] sm:$0xf]
  %v72 = vld [vmem:[%s0 + $0xdc] sm:$0xf]
  %v73 = vld [vmem:[%s0 + $0xe0] sm:$0xf]
  %v74 = vld [vmem:[%s0 + $0xe4] sm:$0xf]
  %v75 = vld [vmem:[%s0 + $0xe8] sm:$0xf]
  %v76 = vld [vmem:[%s0 + $0xec] sm:$0xf]
  %v77 = vld [vmem:[%s0 + $0xf0] sm:$0xf]
  %v78 = vld [vmem:[%s0 + $0xf4] sm:$0xf]
  %v79 = vld [vmem:[%s0 + $0xf8] sm:$0xf]
  %v80 = vld [vmem:[%s0 + $0xfc] sm:$0xf]
  %v81 = vld [vmem:[%s1] sm:$0xf]
  %v82 = vld [vmem:[%s1 + $0x4] sm:$0xf]
  %v83 = vld [vmem:[%s1 + $0x8] sm:$0xf]
  %v84 = vld [vmem:[%s1 + $0xc] sm:$0xf]
  %v85 = vld [vmem:[%s1 + $0x10] sm:$0xf]
  %v86 = vld [vmem:[%s1 + $0x14] sm:$0xf]
  %v87 = vld [vmem:[%s2] sm:$0x1]
  %v89 = vperm.slane %v87, 0
  %v155 = vunpack.c.l.b16 %v17
  %v156 = vunpack.c.l.b16 %v18
  %v157 = vunpack.c.l.b16 %v19
  %v158 = vunpack.c.l.b16 %v20
  %v159 = vunpack.c.l.b16 %v21
  %v160 = vunpack.c.l.b16 %v22
  %v161 = vunpack.c.l.b16 %v23
  %v162 = vunpack.c.l.b16 %v24
  %v163 = vunpack.c.l.b16 %v25
  %v164 = vunpack.c.l.b16 %v26
  %v165 = vunpack.c.l.b16 %v27
  %v166 = vunpack.c.l.b16 %v28
  %v167 = vunpack.c.l.b16 %v29
  %v168 = vunpack.c.l.b16 %v30
  %v169 = vunpack.c.l.b16 %v31
  %v170 = vunpack.c.l.b16 %v32
  %v171 = vunpack.c.l.b16 %v33
  %v172 = vunpack.c.l.b16 %v34
  %v173 = vunpack.c.l.b16 %v35
  %v174 = vunpack.c.l.b16 %v36
  %v175 = vunpack.c.l.b16 %v37
  %v176 = vunpack.c.l.b16 %v38
  %v177 = vunpack.c.l.b16 %v39
  %v178 = vunpack.c.l.b16 %v40
  %v179 = vunpack.c.l.b16 %v41
  %v180 = vunpack.c.l.b16 %v42
  %v181 = vunpack.c.l.b16 %v43
  %v182 = vunpack.c.l.b16 %v44
  %v183 = vunpack.c.l.b16 %v45
  %v184 = vunpack.c.l.b16 %v46
  %v185 = vunpack.c.l.b16 %v47
  %v186 = vunpack.c.l.b16 %v48
  %v187 = vunpack.c.l.b16 %v49
  %v188 = vunpack.c.l.b16 %v50
  %v189 = vunpack.c.l.b16 %v51
  %v190 = vunpack.c.l.b16 %v52
  %v191 = vunpack.c.l.b16 %v53
  %v192 = vunpack.c.l.b16 %v54
  %v193 = vunpack.c.l.b16 %v55
  %v194 = vunpack.c.l.b16 %v56
  %v195 = vunpack.c.l.b16 %v57
  %v196 = vunpack.c.l.b16 %v58
  %v197 = vunpack.c.l.b16 %v59
  %v198 = vunpack.c.l.b16 %v60
  %v199 = vunpack.c.l.b16 %v61
  %v200 = vunpack.c.l.b16 %v62
  %v201 = vunpack.c.l.b16 %v63
  %v202 = vunpack.c.l.b16 %v64
  %v203 = vunpack.c.l.b16 %v65
  %v204 = vunpack.c.l.b16 %v66
  %v205 = vunpack.c.l.b16 %v67
  %v206 = vunpack.c.l.b16 %v68
  %v207 = vunpack.c.l.b16 %v69
  %v208 = vunpack.c.l.b16 %v70
  %v209 = vunpack.c.l.b16 %v71
  %v210 = vunpack.c.l.b16 %v72
  %v211 = vunpack.c.l.b16 %v73
  %v212 = vunpack.c.l.b16 %v74
  %v213 = vunpack.c.l.b16 %v75
  %v214 = vunpack.c.l.b16 %v76
  %v215 = vunpack.c.l.b16 %v77
  %v216 = vunpack.c.l.b16 %v78
  %v217 = vunpack.c.l.b16 %v79
  %v218 = vunpack.c.l.b16 %v80
  %v219 = vpack.c.b16 %v156, %v155
  %v220 = vpack.c.b16 %v158, %v157
  %v221 = vpack.c.b16 %v160, %v159
  %v222 = vpack.c.b16 %v162, %v161
  %v223 = vpack.c.b16 %v164, %v163
  %v224 = vpack.c.b16 %v166, %v165
  %v225 = vpack.c.b16 %v168, %v167
  %v226 = vpack.c.b16 %v170, %v169
  %v227 = vpack.c.b16 %v172, %v171
  %v228 = vpack.c.b16 %v174, %v173
  %v229 = vpack.c.b16 %v176, %v175
  %v230 = vpack.c.b16 %v178, %v177
  %v231 = vpack.c.b16 %v180, %v179
  %v232 = vpack.c.b16 %v182, %v181
  %v233 = vpack.c.b16 %v184, %v183
  %v234 = vpack.c.b16 %v186, %v185
  %v235 = vpack.c.b16 %v188, %v187
  %v236 = vpack.c.b16 %v190, %v189
  %v237 = vpack.c.b16 %v192, %v191
  %v238 = vpack.c.b16 %v194, %v193
  %v239 = vpack.c.b16 %v196, %v195
  %v240 = vpack.c.b16 %v198, %v197
  %v241 = vpack.c.b16 %v200, %v199
  %v242 = vpack.c.b16 %v202, %v201
  %v243 = vpack.c.b16 %v204, %v203
  %v244 = vpack.c.b16 %v206, %v205
  %v245 = vpack.c.b16 %v208, %v207
  %v246 = vpack.c.b16 %v210, %v209
  %v247 = vpack.c.b16 %v212, %v211
  %v248 = vpack.c.b16 %v214, %v213
  %v249 = vpack.c.b16 %v216, %v215
  %v250 = vpack.c.b16 %v218, %v217
  %v257 = vunpack.c.l.b16 %v81
  %v258 = vunpack.c.l.b16 %v82
  %v259 = vunpack.c.l.b16 %v83
  %v260 = vunpack.c.l.b16 %v84
  %v261 = vunpack.c.l.b16 %v85
  %v262 = vunpack.c.l.b16 %v86
  %v263 = vpack.c.b16 %v258, %v257
  %v264 = vpack.c.b16 %v260, %v259
  %v265 = vpack.c.b16 %v262, %v261
  %vm269 = vcmask 392192
  %v271 = vsel %vm269, %v219, 0
  %v274 = vsel %vm269, %v220, 0
  %v277 = vsel %vm269, %v221, 0
  %v280 = vsel %vm269, %v222, 0
  %v283 = vsel %vm269, %v223, 0
  %v286 = vsel %vm269, %v224, 0
  %v289 = vsel %vm269, %v225, 0
  %v292 = vsel %vm269, %v226, 0
  %v295 = vsel %vm269, %v227, 0
  %v298 = vsel %vm269, %v228, 0
  %v301 = vsel %vm269, %v229, 0
  %v304 = vsel %vm269, %v230, 0
  %v307 = vsel %vm269, %v231, 0
  %v310 = vsel %vm269, %v232, 0
  %v313 = vsel %vm269, %v233, 0
  %v316 = vsel %vm269, %v234, 0
  %v319 = vsel %vm269, %v235, 0
  %v322 = vsel %vm269, %v236, 0
  %v325 = vsel %vm269, %v237, 0
  %v328 = vsel %vm269, %v238, 0
  %v331 = vsel %vm269, %v239, 0
  %v334 = vsel %vm269, %v240, 0
  %v337 = vsel %vm269, %v241, 0
  %v340 = vsel %vm269, %v242, 0
  %v343 = vsel %vm269, %v243, 0
  %v346 = vsel %vm269, %v244, 0
  %v349 = vsel %vm269, %v245, 0
  %v352 = vsel %vm269, %v246, 0
  %v355 = vsel %vm269, %v247, 0
  %v358 = vsel %vm269, %v248, 0
  %v361 = vsel %vm269, %v249, 0
  %v364 = vsel %vm269, %v250, 0
  %366 = vmatpush.bf16.msra.mxu0 0
  %367 = vmatpush.bf16.msra.mxu0 0
  %368 = vmatpush.bf16.msra.mxu0 0
  %369 = vmatpush.bf16.msra.mxu0 0
  %370 = vmatpush.bf16.msra.mxu0 0
  %371 = vmatpush.bf16.msra.mxu0 %v265
  %372 = vmatpush.bf16.msra.mxu0 %v264
  %373 = vmatpush.bf16.msra.mxu0 %v263
  %374 = vmatmul.bf16.gmra.mxu0 %v271
  %v375 = vpop.f32.mrf.mxu0
  %v376 = vadd.f32 %v89, %v375
  %v377 = vpop.f32.mrf.mxu0
  %v378 = vadd.f32 %v89, %v377
  %379 = vmatmul.bf16.gmra.mxu0 %v274
  %v380 = vpop.f32.mrf.mxu0
  %v381 = vadd.f32 %v89, %v380
  %v382 = vpop.f32.mrf.mxu0
  %v383 = vadd.f32 %v89, %v382
  %384 = vmatmul.bf16.gmra.mxu0 %v277
  %v385 = vpop.f32.mrf.mxu0
  %v386 = vadd.f32 %v89, %v385
  %v387 = vpop.f32.mrf.mxu0
  %v388 = vadd.f32 %v89, %v387
  %389 = vmatmul.bf16.gmra.mxu0 %v280
  %v390 = vpop.f32.mrf.mxu0
  %v391 = vadd.f32 %v89, %v390
  %v392 = vpop.f32.mrf.mxu0
  %v393 = vadd.f32 %v89, %v392
  %394 = vmatmul.bf16.gmra.mxu0 %v283
  %v395 = vpop.f32.mrf.mxu0
  %v396 = vadd.f32 %v89, %v395
  %v397 = vpop.f32.mrf.mxu0
  %v398 = vadd.f32 %v89, %v397
  %399 = vmatmul.bf16.gmra.mxu0 %v286
  %v400 = vpop.f32.mrf.mxu0
  %v401 = vadd.f32 %v89, %v400
  %v402 = vpop.f32.mrf.mxu0
  %v403 = vadd.f32 %v89, %v402
  %404 = vmatmul.bf16.gmra.mxu0 %v289
  %v405 = vpop.f32.mrf.mxu0
  %v406 = vadd.f32 %v89, %v405
  %v407 = vpop.f32.mrf.mxu0
  %v408 = vadd.f32 %v89, %v407
  %409 = vmatmul.bf16.gmra.mxu0 %v292
  %v410 = vpop.f32.mrf.mxu0
  %v411 = vadd.f32 %v89, %v410
  %v412 = vpop.f32.mrf.mxu0
  %v413 = vadd.f32 %v89, %v412
  %414 = vmatmul.bf16.gmra.mxu0 %v295
  %v415 = vpop.f32.mrf.mxu0
  %v416 = vadd.f32 %v89, %v415
  %v417 = vpop.f32.mrf.mxu0
  %v418 = vadd.f32 %v89, %v417
  %419 = vmatmul.bf16.gmra.mxu0 %v298
  %v420 = vpop.f32.mrf.mxu0
  %v421 = vadd.f32 %v89, %v420
  %v422 = vpop.f32.mrf.mxu0
  %v423 = vadd.f32 %v89, %v422
  %424 = vmatmul.bf16.gmra.mxu0 %v301
  %v425 = vpop.f32.mrf.mxu0
  %v426 = vadd.f32 %v89, %v425
  %v427 = vpop.f32.mrf.mxu0
  %v428 = vadd.f32 %v89, %v427
  %429 = vmatmul.bf16.gmra.mxu0 %v304
  %v430 = vpop.f32.mrf.mxu0
  %v431 = vadd.f32 %v89, %v430
  %v432 = vpop.f32.mrf.mxu0
  %v433 = vadd.f32 %v89, %v432
  %434 = vmatmul.bf16.gmra.mxu0 %v307
  %v435 = vpop.f32.mrf.mxu0
  %v436 = vadd.f32 %v89, %v435
  %v437 = vpop.f32.mrf.mxu0
  %v438 = vadd.f32 %v89, %v437
  %439 = vmatmul.bf16.gmra.mxu0 %v310
  %v440 = vpop.f32.mrf.mxu0
  %v441 = vadd.f32 %v89, %v440
  %v442 = vpop.f32.mrf.mxu0
  %v443 = vadd.f32 %v89, %v442
  %444 = vmatmul.bf16.gmra.mxu0 %v313
  %v445 = vpop.f32.mrf.mxu0
  %v446 = vadd.f32 %v89, %v445
  %v447 = vpop.f32.mrf.mxu0
  %v448 = vadd.f32 %v89, %v447
  %449 = vmatmul.bf16.gmra.mxu0 %v316
  %v450 = vpop.f32.mrf.mxu0
  %v451 = vadd.f32 %v89, %v450
  %v452 = vpop.f32.mrf.mxu0
  %v453 = vadd.f32 %v89, %v452
  %454 = vmatmul.bf16.gmra.mxu0 %v319
  %v455 = vpop.f32.mrf.mxu0
  %v456 = vadd.f32 %v89, %v455
  %v457 = vpop.f32.mrf.mxu0
  %v458 = vadd.f32 %v89, %v457
  %459 = vmatmul.bf16.gmra.mxu0 %v322
  %v460 = vpop.f32.mrf.mxu0
  %v461 = vadd.f32 %v89, %v460
  %v462 = vpop.f32.mrf.mxu0
  %v463 = vadd.f32 %v89, %v462
  %464 = vmatmul.bf16.gmra.mxu0 %v325
  %v465 = vpop.f32.mrf.mxu0
  %v466 = vadd.f32 %v89, %v465
  %v467 = vpop.f32.mrf.mxu0
  %v468 = vadd.f32 %v89, %v467
  %469 = vmatmul.bf16.gmra.mxu0 %v328
  %v470 = vpop.f32.mrf.mxu0
  %v471 = vadd.f32 %v89, %v470
  %v472 = vpop.f32.mrf.mxu0
  %v473 = vadd.f32 %v89, %v472
  %474 = vmatmul.bf16.gmra.mxu0 %v331
  %v475 = vpop.f32.mrf.mxu0
  %v476 = vadd.f32 %v89, %v475
  %v477 = vpop.f32.mrf.mxu0
  %v478 = vadd.f32 %v89, %v477
  %479 = vmatmul.bf16.gmra.mxu0 %v334
  %v480 = vpop.f32.mrf.mxu0
  %v481 = vadd.f32 %v89, %v480
  %v482 = vpop.f32.mrf.mxu0
  %v483 = vadd.f32 %v89, %v482
  %484 = vmatmul.bf16.gmra.mxu0 %v337
  %v485 = vpop.f32.mrf.mxu0
  %v486 = vadd.f32 %v89, %v485
  %v487 = vpop.f32.mrf.mxu0
  %v488 = vadd.f32 %v89, %v487
  %489 = vmatmul.bf16.gmra.mxu0 %v340
  %v490 = vpop.f32.mrf.mxu0
  %v491 = vadd.f32 %v89, %v490
  %v492 = vpop.f32.mrf.mxu0
  %v493 = vadd.f32 %v89, %v492
  %494 = vmatmul.bf16.gmra.mxu0 %v343
  %v495 = vpop.f32.mrf.mxu0
  %v496 = vadd.f32 %v89, %v495
  %v497 = vpop.f32.mrf.mxu0
  %v498 = vadd.f32 %v89, %v497
  %499 = vmatmul.bf16.gmra.mxu0 %v346
  %v500 = vpop.f32.mrf.mxu0
  %v501 = vadd.f32 %v89, %v500
  %v502 = vpop.f32.mrf.mxu0
  %v503 = vadd.f32 %v89, %v502
  %504 = vmatmul.bf16.gmra.mxu0 %v349
  %v505 = vpop.f32.mrf.mxu0
  %v506 = vadd.f32 %v89, %v505
  %v507 = vpop.f32.mrf.mxu0
  %v508 = vadd.f32 %v89, %v507
  %509 = vmatmul.bf16.gmra.mxu0 %v352
  %v510 = vpop.f32.mrf.mxu0
  %v511 = vadd.f32 %v89, %v510
  %v512 = vpop.f32.mrf.mxu0
  %v513 = vadd.f32 %v89, %v512
  %514 = vmatmul.bf16.gmra.mxu0 %v355
  %v515 = vpop.f32.mrf.mxu0
  %v516 = vadd.f32 %v89, %v515
  %v517 = vpop.f32.mrf.mxu0
  %v518 = vadd.f32 %v89, %v517
  %519 = vmatmul.bf16.gmra.mxu0 %v358
  %v520 = vpop.f32.mrf.mxu0
  %v521 = vadd.f32 %v89, %v520
  %v522 = vpop.f32.mrf.mxu0
  %v523 = vadd.f32 %v89, %v522
  %524 = vmatmul.bf16.gmra.mxu0 %v361
  %v525 = vpop.f32.mrf.mxu0
  %v526 = vadd.f32 %v89, %v525
  %v527 = vpop.f32.mrf.mxu0
  %v528 = vadd.f32 %v89, %v527
  %529 = vmatmul.bf16.gmra.mxu0 %v364
  %v530 = vpop.f32.mrf.mxu0
  %v531 = vadd.f32 %v89, %v530
  %v532 = vpop.f32.mrf.mxu0
  %v533 = vadd.f32 %v89, %v532
  %534 = vdwg.mxu0
  %vm535 = vcmp.ge.f32.partialorder %v376, 0.0
  %vm536 = vcmp.ge.f32.partialorder %v378, 0.0
  %vm537 = vcmp.ge.f32.partialorder %v381, 0.0
  %vm538 = vcmp.ge.f32.partialorder %v383, 0.0
  %vm539 = vcmp.ge.f32.partialorder %v386, 0.0
  %vm540 = vcmp.ge.f32.partialorder %v388, 0.0
  %vm541 = vcmp.ge.f32.partialorder %v391, 0.0
  %vm542 = vcmp.ge.f32.partialorder %v393, 0.0
  %vm543 = vcmp.ge.f32.partialorder %v396, 0.0
  %vm544 = vcmp.ge.f32.partialorder %v398, 0.0
  %vm545 = vcmp.ge.f32.partialorder %v401, 0.0
  %vm546 = vcmp.ge.f32.partialorder %v403, 0.0
  %vm547 = vcmp.ge.f32.partialorder %v406, 0.0
  %vm548 = vcmp.ge.f32.partialorder %v408, 0.0
  %vm549 = vcmp.ge.f32.partialorder %v411, 0.0
  %vm550 = vcmp.ge.f32.partialorder %v413, 0.0
  %vm551 = vcmp.ge.f32.partialorder %v416, 0.0
  %vm552 = vcmp.ge.f32.partialorder %v418, 0.0
  %vm553 = vcmp.ge.f32.partialorder %v421, 0.0
  %vm554 = vcmp.ge.f32.partialorder %v423, 0.0
  %vm555 = vcmp.ge.f32.partialorder %v426, 0.0
  %vm556 = vcmp.ge.f32.partialorder %v428, 0.0
  %vm557 = vcmp.ge.f32.partialorder %v431, 0.0
  %vm558 = vcmp.ge.f32.partialorder %v433, 0.0
  %vm559 = vcmp.ge.f32.partialorder %v436, 0.0
  %vm560 = vcmp.ge.f32.partialorder %v438, 0.0
  %vm561 = vcmp.ge.f32.partialorder %v441, 0.0
  %vm562 = vcmp.ge.f32.partialorder %v443, 0.0
  %vm563 = vcmp.ge.f32.partialorder %v446, 0.0
  %vm564 = vcmp.ge.f32.partialorder %v448, 0.0
  %vm565 = vcmp.ge.f32.partialorder %v451, 0.0
  %vm566 = vcmp.ge.f32.partialorder %v453, 0.0
  %vm567 = vcmp.ge.f32.partialorder %v456, 0.0
  %vm568 = vcmp.ge.f32.partialorder %v458, 0.0
  %vm569 = vcmp.ge.f32.partialorder %v461, 0.0
  %vm570 = vcmp.ge.f32.partialorder %v463, 0.0
  %vm571 = vcmp.ge.f32.partialorder %v466, 0.0
  %vm572 = vcmp.ge.f32.partialorder %v468, 0.0
  %vm573 = vcmp.ge.f32.partialorder %v471, 0.0
  %vm574 = vcmp.ge.f32.partialorder %v473, 0.0
  %vm575 = vcmp.ge.f32.partialorder %v476, 0.0
  %vm576 = vcmp.ge.f32.partialorder %v478, 0.0
  %vm577 = vcmp.ge.f32.partialorder %v481, 0.0
  %vm578 = vcmp.ge.f32.partialorder %v483, 0.0
  %vm579 = vcmp.ge.f32.partialorder %v486, 0.0
  %vm580 = vcmp.ge.f32.partialorder %v488, 0.0
  %vm581 = vcmp.ge.f32.partialorder %v491, 0.0
  %vm582 = vcmp.ge.f32.partialorder %v493, 0.0
  %vm583 = vcmp.ge.f32.partialorder %v496, 0.0
  %vm584 = vcmp.ge.f32.partialorder %v498, 0.0
  %vm585 = vcmp.ge.f32.partialorder %v501, 0.0
  %vm586 = vcmp.ge.f32.partialorder %v503, 0.0
  %vm587 = vcmp.ge.f32.partialorder %v506, 0.0
  %vm588 = vcmp.ge.f32.partialorder %v508, 0.0
  %vm589 = vcmp.ge.f32.partialorder %v511, 0.0
  %vm590 = vcmp.ge.f32.partialorder %v513, 0.0
  %vm591 = vcmp.ge.f32.partialorder %v516, 0.0
  %vm592 = vcmp.ge.f32.partialorder %v518, 0.0
  %vm593 = vcmp.ge.f32.partialorder %v521, 0.0
  %vm594 = vcmp.ge.f32.partialorder %v523, 0.0
  %vm595 = vcmp.ge.f32.partialorder %v526, 0.0
  %vm596 = vcmp.ge.f32.partialorder %v528, 0.0
  %vm597 = vcmp.ge.f32.partialorder %v531, 0.0
  %vm598 = vcmp.ge.f32.partialorder %v533, 0.0
  %v599 = vmul.f32 %v376, 0.2
  %v600 = vmul.f32 %v378, 0.2
  %v601 = vmul.f32 %v381, 0.2
  %v602 = vmul.f32 %v383, 0.2
  %v603 = vmul.f32 %v386, 0.2
  %v604 = vmul.f32 %v388, 0.2
  %v605 = vmul.f32 %v391, 0.2
  %v606 = vmul.f32 %v393, 0.2
  %v607 = vmul.f32 %v396, 0.2
  %v608 = vmul.f32 %v398, 0.2
  %v609 = vmul.f32 %v401, 0.2
  %v610 = vmul.f32 %v403, 0.2
  %v611 = vmul.f32 %v406, 0.2
  %v612 = vmul.f32 %v408, 0.2
  %v613 = vmul.f32 %v411, 0.2
  %v614 = vmul.f32 %v413, 0.2
  %v615 = vmul.f32 %v416, 0.2
  %v616 = vmul.f32 %v418, 0.2
  %v617 = vmul.f32 %v421, 0.2
  %v618 = vmul.f32 %v423, 0.2
  %v619 = vmul.f32 %v426, 0.2
  %v620 = vmul.f32 %v428, 0.2
  %v621 = vmul.f32 %v431, 0.2
  %v622 = vmul.f32 %v433, 0.2
  %v623 = vmul.f32 %v436, 0.2
  %v624 = vmul.f32 %v438, 0.2
  %v625 = vmul.f32 %v441, 0.2
  %v626 = vmul.f32 %v443, 0.2
  %v627 = vmul.f32 %v446, 0.2
  %v628 = vmul.f32 %v448, 0.2
  %v629 = vmul.f32 %v451, 0.2
  %v630 = vmul.f32 %v453, 0.2
  %v631 = vmul.f32 %v456, 0.2
  %v632 = vmul.f32 %v458, 0.2
  %v633 = vmul.f32 %v461, 0.2
  %v634 = vmul.f32 %v463, 0.2
  %v635 = vmul.f32 %v466, 0.2
  %v636 = vmul.f32 %v468, 0.2
  %v637 = vmul.f32 %v471, 0.2
  %v638 = vmul.f32 %v473, 0.2
  %v639 = vmul.f32 %v476, 0.2
  %v640 = vmul.f32 %v478, 0.2
  %v641 = vmul.f32 %v481, 0.2
  %v642 = vmul.f32 %v483, 0.2
  %v643 = vmul.f32 %v486, 0.2
  %v644 = vmul.f32 %v488, 0.2
  %v645 = vmul.f32 %v491, 0.2
  %v646 = vmul.f32 %v493, 0.2
  %v647 = vmul.f32 %v496, 0.2
  %v648 = vmul.f32 %v498, 0.2
  %v649 = vmul.f32 %v501, 0.2
  %v650 = vmul.f32 %v503, 0.2
  %v651 = vmul.f32 %v506, 0.2
  %v652 = vmul.f32 %v508, 0.2
  %v653 = vmul.f32 %v511, 0.2
  %v654 = vmul.f32 %v513, 0.2
  %v655 = vmul.f32 %v516, 0.2
  %v656 = vmul.f32 %v518, 0.2
  %v657 = vmul.f32 %v521, 0.2
  %v658 = vmul.f32 %v523, 0.2
  %v659 = vmul.f32 %v526, 0.2
  %v660 = vmul.f32 %v528, 0.2
  %v661 = vmul.f32 %v531, 0.2
  %v662 = vmul.f32 %v533, 0.2
  %v663 = vsel %vm535, %v376, %v599
  %v664 = vsel %vm536, %v378, %v600
  %v665 = vsel %vm537, %v381, %v601
  %v666 = vsel %vm538, %v383, %v602
  %v667 = vsel %vm539, %v386, %v603
  %v668 = vsel %vm540, %v388, %v604
  %v669 = vsel %vm541, %v391, %v605
  %v670 = vsel %vm542, %v393, %v606
  %v671 = vsel %vm543, %v396, %v607
  %v672 = vsel %vm544, %v398, %v608
  %v673 = vsel %vm545, %v401, %v609
  %v674 = vsel %vm546, %v403, %v610
  %v675 = vsel %vm547, %v406, %v611
  %v676 = vsel %vm548, %v408, %v612
  %v677 = vsel %vm549, %v411, %v613
  %v678 = vsel %vm550, %v413, %v614
  %v679 = vsel %vm551, %v416, %v615
  %v680 = vsel %vm552, %v418, %v616
  %v681 = vsel %vm553, %v421, %v617
  %v682 = vsel %vm554, %v423, %v618
  %v683 = vsel %vm555, %v426, %v619
  %v684 = vsel %vm556, %v428, %v620
  %v685 = vsel %vm557, %v431, %v621
  %v686 = vsel %vm558, %v433, %v622
  %v687 = vsel %vm559, %v436, %v623
  %v688 = vsel %vm560, %v438, %v624
  %v689 = vsel %vm561, %v441, %v625
  %v690 = vsel %vm562, %v443, %v626
  %v691 = vsel %vm563, %v446, %v627
  %v692 = vsel %vm564, %v448, %v628
  %v693 = vsel %vm565, %v451, %v629
  %v694 = vsel %vm566, %v453, %v630
  %v695 = vsel %vm567, %v456, %v631
  %v696 = vsel %vm568, %v458, %v632
  %v697 = vsel %vm569, %v461, %v633
  %v698 = vsel %vm570, %v463, %v634
  %v699 = vsel %vm571, %v466, %v635
  %v700 = vsel %vm572, %v468, %v636
  %v701 = vsel %vm573, %v471, %v637
  %v702 = vsel %vm574, %v473, %v638
  %v703 = vsel %vm575, %v476, %v639
  %v704 = vsel %vm576, %v478, %v640
  %v705 = vsel %vm577, %v481, %v641
  %v706 = vsel %vm578, %v483, %v642
  %v707 = vsel %vm579, %v486, %v643
  %v708 = vsel %vm580, %v488, %v644
  %v709 = vsel %vm581, %v491, %v645
  %v710 = vsel %vm582, %v493, %v646
  %v711 = vsel %vm583, %v496, %v647
  %v712 = vsel %vm584, %v498, %v648
  %v713 = vsel %vm585, %v501, %v649
  %v714 = vsel %vm586, %v503, %v650
  %v715 = vsel %vm587, %v506, %v651
  %v716 = vsel %vm588, %v508, %v652
  %v717 = vsel %vm589, %v511, %v653
  %v718 = vsel %vm590, %v513, %v654
  %v719 = vsel %vm591, %v516, %v655
  %v720 = vsel %vm592, %v518, %v656
  %v721 = vsel %vm593, %v521, %v657
  %v722 = vsel %vm594, %v523, %v658
  %v723 = vsel %vm595, %v526, %v659
  %v724 = vsel %vm596, %v528, %v660
  %v725 = vsel %vm597, %v531, %v661
  %v726 = vsel %vm598, %v533, %v662
  %v727 = vpack.c.bf16 %v663, %v663
  %v728 = vpack.c.bf16 %v664, %v664
  %v729 = vpack.c.bf16 %v665, %v665
  %v730 = vpack.c.bf16 %v666, %v666
  %v731 = vpack.c.bf16 %v667, %v667
  %v732 = vpack.c.bf16 %v668, %v668
  %v733 = vpack.c.bf16 %v669, %v669
  %v734 = vpack.c.bf16 %v670, %v670
  %v735 = vpack.c.bf16 %v671, %v671
  %v736 = vpack.c.bf16 %v672, %v672
  %v737 = vpack.c.bf16 %v673, %v673
  %v738 = vpack.c.bf16 %v674, %v674
  %v739 = vpack.c.bf16 %v675, %v675
  %v740 = vpack.c.bf16 %v676, %v676
  %v741 = vpack.c.bf16 %v677, %v677
  %v742 = vpack.c.bf16 %v678, %v678
  %v743 = vpack.c.bf16 %v679, %v679
  %v744 = vpack.c.bf16 %v680, %v680
  %v745 = vpack.c.bf16 %v681, %v681
  %v746 = vpack.c.bf16 %v682, %v682
  %v747 = vpack.c.bf16 %v683, %v683
  %v748 = vpack.c.bf16 %v684, %v684
  %v749 = vpack.c.bf16 %v685, %v685
  %v750 = vpack.c.bf16 %v686, %v686
  %v751 = vpack.c.bf16 %v687, %v687
  %v752 = vpack.c.bf16 %v688, %v688
  %v753 = vpack.c.bf16 %v689, %v689
  %v754 = vpack.c.bf16 %v690, %v690
  %v755 = vpack.c.bf16 %v691, %v691
  %v756 = vpack.c.bf16 %v692, %v692
  %v757 = vpack.c.bf16 %v693, %v693
  %v758 = vpack.c.bf16 %v694, %v694
  %v759 = vpack.c.bf16 %v695, %v695
  %v760 = vpack.c.bf16 %v696, %v696
  %v761 = vpack.c.bf16 %v697, %v697
  %v762 = vpack.c.bf16 %v698, %v698
  %v763 = vpack.c.bf16 %v699, %v699
  %v764 = vpack.c.bf16 %v700, %v700
  %v765 = vpack.c.bf16 %v701, %v701
  %v766 = vpack.c.bf16 %v702, %v702
  %v767 = vpack.c.bf16 %v703, %v703
  %v768 = vpack.c.bf16 %v704, %v704
  %v769 = vpack.c.bf16 %v705, %v705
  %v770 = vpack.c.bf16 %v706, %v706
  %v771 = vpack.c.bf16 %v707, %v707
  %v772 = vpack.c.bf16 %v708, %v708
  %v773 = vpack.c.bf16 %v709, %v709
  %v774 = vpack.c.bf16 %v710, %v710
  %v775 = vpack.c.bf16 %v711, %v711
  %v776 = vpack.c.bf16 %v712, %v712
  %v777 = vpack.c.bf16 %v713, %v713
  %v778 = vpack.c.bf16 %v714, %v714
  %v779 = vpack.c.bf16 %v715, %v715
  %v780 = vpack.c.bf16 %v716, %v716
  %v781 = vpack.c.bf16 %v717, %v717
  %v782 = vpack.c.bf16 %v718, %v718
  %v783 = vpack.c.bf16 %v719, %v719
  %v784 = vpack.c.bf16 %v720, %v720
  %v785 = vpack.c.bf16 %v721, %v721
  %v786 = vpack.c.bf16 %v722, %v722
  %v787 = vpack.c.bf16 %v723, %v723
  %v788 = vpack.c.bf16 %v724, %v724
  %v789 = vpack.c.bf16 %v725, %v725
  %v790 = vpack.c.bf16 %v726, %v726
  %791 = vst [vmem:[%s3] sm:$0xf] %v727
  %792 = vst [vmem:[%s3 + $0x4] sm:$0xf] %v728
  %793 = vst [vmem:[%s3 + $0x8] sm:$0xf] %v729
  %794 = vst [vmem:[%s3 + $0xc] sm:$0xf] %v730
  %795 = vst [vmem:[%s3 + $0x10] sm:$0xf] %v731
  %796 = vst [vmem:[%s3 + $0x14] sm:$0xf] %v732
  %797 = vst [vmem:[%s3 + $0x18] sm:$0xf] %v733
  %798 = vst [vmem:[%s3 + $0x1c] sm:$0xf] %v734
  %799 = vst [vmem:[%s3 + $0x20] sm:$0xf] %v735
  %800 = vst [vmem:[%s3 + $0x24] sm:$0xf] %v736
  %801 = vst [vmem:[%s3 + $0x28] sm:$0xf] %v737
  %802 = vst [vmem:[%s3 + $0x2c] sm:$0xf] %v738
  %803 = vst [vmem:[%s3 + $0x30] sm:$0xf] %v739
  %804 = vst [vmem:[%s3 + $0x34] sm:$0xf] %v740
  %805 = vst [vmem:[%s3 + $0x38] sm:$0xf] %v741
  %806 = vst [vmem:[%s3 + $0x3c] sm:$0xf] %v742
  %807 = vst [vmem:[%s3 + $0x40] sm:$0xf] %v743
  %808 = vst [vmem:[%s3 + $0x44] sm:$0xf] %v744
  %809 = vst [vmem:[%s3 + $0x48] sm:$0xf] %v745
  %810 = vst [vmem:[%s3 + $0x4c] sm:$0xf] %v746
  %811 = vst [vmem:[%s3 + $0x50] sm:$0xf] %v747
  %812 = vst [vmem:[%s3 + $0x54] sm:$0xf] %v748
  %813 = vst [vmem:[%s3 + $0x58] sm:$0xf] %v749
  %814 = vst [vmem:[%s3 + $0x5c] sm:$0xf] %v750
  %815 = vst [vmem:[%s3 + $0x60] sm:$0xf] %v751
  %816 = vst [vmem:[%s3 + $0x64] sm:$0xf] %v752
  %817 = vst [vmem:[%s3 + $0x68] sm:$0xf] %v753
  %818 = vst [vmem:[%s3 + $0x6c] sm:$0xf] %v754
  %819 = vst [vmem:[%s3 + $0x70] sm:$0xf] %v755
  %820 = vst [vmem:[%s3 + $0x74] sm:$0xf] %v756
  %821 = vst [vmem:[%s3 + $0x78] sm:$0xf] %v757
  %822 = vst [vmem:[%s3 + $0x7c] sm:$0xf] %v758
  %823 = vst [vmem:[%s3 + $0x80] sm:$0xf] %v759
  %824 = vst [vmem:[%s3 + $0x84] sm:$0xf] %v760
  %825 = vst [vmem:[%s3 + $0x88] sm:$0xf] %v761
  %826 = vst [vmem:[%s3 + $0x8c] sm:$0xf] %v762
  %827 = vst [vmem:[%s3 + $0x90] sm:$0xf] %v763
  %828 = vst [vmem:[%s3 + $0x94] sm:$0xf] %v764
  %829 = vst [vmem:[%s3 + $0x98] sm:$0xf] %v765
  %830 = vst [vmem:[%s3 + $0x9c] sm:$0xf] %v766
  %831 = vst [vmem:[%s3 + $0xa0] sm:$0xf] %v767
  %832 = vst [vmem:[%s3 + $0xa4] sm:$0xf] %v768
  %833 = vst [vmem:[%s3 + $0xa8] sm:$0xf] %v769
  %834 = vst [vmem:[%s3 + $0xac] sm:$0xf] %v770
  %835 = vst [vmem:[%s3 + $0xb0] sm:$0xf] %v771
  %836 = vst [vmem:[%s3 + $0xb4] sm:$0xf] %v772
  %837 = vst [vmem:[%s3 + $0xb8] sm:$0xf] %v773
  %838 = vst [vmem:[%s3 + $0xbc] sm:$0xf] %v774
  %839 = vst [vmem:[%s3 + $0xc0] sm:$0xf] %v775
  %840 = vst [vmem:[%s3 + $0xc4] sm:$0xf] %v776
  %841 = vst [vmem:[%s3 + $0xc8] sm:$0xf] %v777
  %842 = vst [vmem:[%s3 + $0xcc] sm:$0xf] %v778
  %843 = vst [vmem:[%s3 + $0xd0] sm:$0xf] %v779
  %844 = vst [vmem:[%s3 + $0xd4] sm:$0xf] %v780
  %845 = vst [vmem:[%s3 + $0xd8] sm:$0xf] %v781
  %846 = vst [vmem:[%s3 + $0xdc] sm:$0xf] %v782
  %847 = vst [vmem:[%s3 + $0xe0] sm:$0xf] %v783
  %848 = vst [vmem:[%s3 + $0xe4] sm:$0xf] %v784
  %849 = vst [vmem:[%s3 + $0xe8] sm:$0xf] %v785
  %850 = vst [vmem:[%s3 + $0xec] sm:$0xf] %v786
  %851 = vst [vmem:[%s3 + $0xf0] sm:$0xf] %v787
  %852 = vst [vmem:[%s3 + $0xf4] sm:$0xf] %v788
  %853 = vst [vmem:[%s3 + $0xf8] sm:$0xf] %v789
  %854 = vst [vmem:[%s3 + $0xfc] sm:$0xf] %v790
  %s855 = smul.u32 0, 512
  %v856 = vlaneseq
  %v857 = vshrl.u32 %v856, 7
  %v858 = vadd.s32 %v857, 8
  %v859 = vadd.s32 %v857, 16
  %v860 = vadd.s32 %v857, 24
  %v861 = vadd.s32 %v857, 32
  %v862 = vadd.s32 %v857, 40
  %v863 = vadd.s32 %v857, 48
  %v864 = vadd.s32 %v857, 56
  %v865 = vadd.s32 %v857, 64
  %v866 = vadd.s32 %v857, 72
  %v867 = vadd.s32 %v857, 80
  %v868 = vadd.s32 %v857, 88
  %v869 = vadd.s32 %v857, 96
  %v870 = vadd.s32 %v857, 104
  %v871 = vadd.s32 %v857, 112
  %v872 = vadd.s32 %v857, 120
  %v873 = vadd.s32 %v857, 128
  %v874 = vadd.s32 %v857, 136
  %v875 = vadd.s32 %v857, 144
  %v876 = vadd.s32 %v857, 152
  %v877 = vadd.s32 %v857, 160
  %v878 = vadd.s32 %v857, 168
  %v879 = vadd.s32 %v857, 176
  %v880 = vadd.s32 %v857, 184
  %v881 = vadd.s32 %v857, 192
  %v882 = vadd.s32 %v857, 200
  %v883 = vadd.s32 %v857, 208
  %v884 = vadd.s32 %v857, 216
  %v885 = vadd.s32 %v857, 224
  %v886 = vadd.s32 %v857, 232
  %v887 = vadd.s32 %v857, 240
  %v888 = vadd.s32 %v857, 248
  %v889 = vadd.s32 %v857, 256
  %v890 = vadd.s32 %v857, 264
  %v891 = vadd.s32 %v857, 272
  %v892 = vadd.s32 %v857, 280
  %v893 = vadd.s32 %v857, 288
  %v894 = vadd.s32 %v857, 296
  %v895 = vadd.s32 %v857, 304
  %v896 = vadd.s32 %v857, 312
  %v897 = vadd.s32 %v857, 320
  %v898 = vadd.s32 %v857, 328
  %v899 = vadd.s32 %v857, 336
  %v900 = vadd.s32 %v857, 344
  %v901 = vadd.s32 %v857, 352
  %v902 = vadd.s32 %v857, 360
  %v903 = vadd.s32 %v857, 368
  %v904 = vadd.s32 %v857, 376
  %v905 = vadd.s32 %v857, 384
  %v906 = vadd.s32 %v857, 392
  %v907 = vadd.s32 %v857, 400
  %v908 = vadd.s32 %v857, 408
  %v909 = vadd.s32 %v857, 416
  %v910 = vadd.s32 %v857, 424
  %v911 = vadd.s32 %v857, 432
  %v912 = vadd.s32 %v857, 440
  %v913 = vadd.s32 %v857, 448
  %v914 = vadd.s32 %v857, 456
  %v915 = vadd.s32 %v857, 464
  %v916 = vadd.s32 %v857, 472
  %v917 = vadd.s32 %v857, 480
  %v918 = vadd.s32 %v857, 488
  %v919 = vadd.s32 %v857, 496
  %v920 = vadd.s32 %v857, 504
  %v921 = vstv %s855
  %v922 = vadd.s32 %v921, %v857
  %v923 = vadd.s32 %v921, %v858
  %v924 = vadd.s32 %v921, %v859
  %v925 = vadd.s32 %v921, %v860
  %v926 = vadd.s32 %v921, %v861
  %v927 = vadd.s32 %v921, %v862
  %v928 = vadd.s32 %v921, %v863
  %v929 = vadd.s32 %v921, %v864
  %v930 = vadd.s32 %v921, %v865
  %v931 = vadd.s32 %v921, %v866
  %v932 = vadd.s32 %v921, %v867
  %v933 = vadd.s32 %v921, %v868
  %v934 = vadd.s32 %v921, %v869
  %v935 = vadd.s32 %v921, %v870
  %v936 = vadd.s32 %v921, %v871
  %v937 = vadd.s32 %v921, %v872
  %v938 = vadd.s32 %v921, %v873
  %v939 = vadd.s32 %v921, %v874
  %v940 = vadd.s32 %v921, %v875
  %v941 = vadd.s32 %v921, %v876
  %v942 = vadd.s32 %v921, %v877
  %v943 = vadd.s32 %v921, %v878
  %v944 = vadd.s32 %v921, %v879
  %v945 = vadd.s32 %v921, %v880
  %v946 = vadd.s32 %v921, %v881
  %v947 = vadd.s32 %v921, %v882
  %v948 = vadd.s32 %v921, %v883
  %v949 = vadd.s32 %v921, %v884
  %v950 = vadd.s32 %v921, %v885
  %v951 = vadd.s32 %v921, %v886
  %v952 = vadd.s32 %v921, %v887
  %v953 = vadd.s32 %v921, %v888
  %v954 = vadd.s32 %v921, %v889
  %v955 = vadd.s32 %v921, %v890
  %v956 = vadd.s32 %v921, %v891
  %v957 = vadd.s32 %v921, %v892
  %v958 = vadd.s32 %v921, %v893
  %v959 = vadd.s32 %v921, %v894
  %v960 = vadd.s32 %v921, %v895
  %v961 = vadd.s32 %v921, %v896
  %v962 = vadd.s32 %v921, %v897
  %v963 = vadd.s32 %v921, %v898
  %v964 = vadd.s32 %v921, %v899
  %v965 = vadd.s32 %v921, %v900
  %v966 = vadd.s32 %v921, %v901
  %v967 = vadd.s32 %v921, %v902
  %v968 = vadd.s32 %v921, %v903
  %v969 = vadd.s32 %v921, %v904
  %v970 = vadd.s32 %v921, %v905
  %v971 = vadd.s32 %v921, %v906
  %v972 = vadd.s32 %v921, %v907
  %v973 = vadd.s32 %v921, %v908
  %v974 = vadd.s32 %v921, %v909
  %v975 = vadd.s32 %v921, %v910
  %v976 = vadd.s32 %v921, %v911
  %v977 = vadd.s32 %v921, %v912
  %v978 = vadd.s32 %v921, %v913
  %v979 = vadd.s32 %v921, %v914
  %v980 = vadd.s32 %v921, %v915
  %v981 = vadd.s32 %v921, %v916
  %v982 = vadd.s32 %v921, %v917
  %v983 = vadd.s32 %v921, %v918
  %v984 = vadd.s32 %v921, %v919
  %v985 = vadd.s32 %v921, %v920
  %vm986 = vcmp.lt.s32.totalorder %v922, 512
  %vm987 = vcmp.lt.s32.totalorder %v923, 512
  %vm988 = vcmp.lt.s32.totalorder %v924, 512
  %vm989 = vcmp.lt.s32.totalorder %v925, 512
  %vm990 = vcmp.lt.s32.totalorder %v926, 512
  %vm991 = vcmp.lt.s32.totalorder %v927, 512
  %vm992 = vcmp.lt.s32.totalorder %v928, 512
  %vm993 = vcmp.lt.s32.totalorder %v929, 512
  %vm994 = vcmp.lt.s32.totalorder %v930, 512
  %vm995 = vcmp.lt.s32.totalorder %v931, 512
  %vm996 = vcmp.lt.s32.totalorder %v932, 512
  %vm997 = vcmp.lt.s32.totalorder %v933, 512
  %vm998 = vcmp.lt.s32.totalorder %v934, 512
  %vm999 = vcmp.lt.s32.totalorder %v935, 512
  %vm1000 = vcmp.lt.s32.totalorder %v936, 512
  %vm1001 = vcmp.lt.s32.totalorder %v937, 512
  %vm1002 = vcmp.lt.s32.totalorder %v938, 512
  %vm1003 = vcmp.lt.s32.totalorder %v939, 512
  %vm1004 = vcmp.lt.s32.totalorder %v940, 512
  %vm1005 = vcmp.lt.s32.totalorder %v941, 512
  %vm1006 = vcmp.lt.s32.totalorder %v942, 512
  %vm1007 = vcmp.lt.s32.totalorder %v943, 512
  %vm1008 = vcmp.lt.s32.totalorder %v944, 512
  %vm1009 = vcmp.lt.s32.totalorder %v945, 512
  %vm1010 = vcmp.lt.s32.totalorder %v946, 512
  %vm1011 = vcmp.lt.s32.totalorder %v947, 512
  %vm1012 = vcmp.lt.s32.totalorder %v948, 512
  %vm1013 = vcmp.lt.s32.totalorder %v949, 512
  %vm1014 = vcmp.lt.s32.totalorder %v950, 512
  %vm1015 = vcmp.lt.s32.totalorder %v951, 512
  %vm1016 = vcmp.lt.s32.totalorder %v952, 512
  %vm1017 = vcmp.lt.s32.totalorder %v953, 512
  %vm1018 = vcmp.lt.s32.totalorder %v954, 512
  %vm1019 = vcmp.lt.s32.totalorder %v955, 512
  %vm1020 = vcmp.lt.s32.totalorder %v956, 512
  %vm1021 = vcmp.lt.s32.totalorder %v957, 512
  %vm1022 = vcmp.lt.s32.totalorder %v958, 512
  %vm1023 = vcmp.lt.s32.totalorder %v959, 512
  %vm1024 = vcmp.lt.s32.totalorder %v960, 512
  %vm1025 = vcmp.lt.s32.totalorder %v961, 512
  %vm1026 = vcmp.lt.s32.totalorder %v962, 512
  %vm1027 = vcmp.lt.s32.totalorder %v963, 512
  %vm1028 = vcmp.lt.s32.totalorder %v964, 512
  %vm1029 = vcmp.lt.s32.totalorder %v965, 512
  %vm1030 = vcmp.lt.s32.totalorder %v966, 512
  %vm1031 = vcmp.lt.s32.totalorder %v967, 512
  %vm1032 = vcmp.lt.s32.totalorder %v968, 512
  %vm1033 = vcmp.lt.s32.totalorder %v969, 512
  %vm1034 = vcmp.lt.s32.totalorder %v970, 512
  %vm1035 = vcmp.lt.s32.totalorder %v971, 512
  %vm1036 = vcmp.lt.s32.totalorder %v972, 512
  %vm1037 = vcmp.lt.s32.totalorder %v973, 512
  %vm1038 = vcmp.lt.s32.totalorder %v974, 512
  %vm1039 = vcmp.lt.s32.totalorder %v975, 512
  %vm1040 = vcmp.lt.s32.totalorder %v976, 512
  %vm1041 = vcmp.lt.s32.totalorder %v977, 512
  %vm1042 = vcmp.lt.s32.totalorder %v978, 512
  %vm1043 = vcmp.lt.s32.totalorder %v979, 512
  %vm1044 = vcmp.lt.s32.totalorder %v980, 512
  %vm1045 = vcmp.lt.s32.totalorder %v981, 512
  %vm1046 = vcmp.lt.s32.totalorder %v982, 512
  %vm1047 = vcmp.lt.s32.totalorder %v983, 512
  %vm1048 = vcmp.lt.s32.totalorder %v984, 512
  %vm1049 = vcmp.lt.s32.totalorder %v985, 512
  %v1050 = vsel %vm986, 1, 0
  %v1051 = vsel %vm987, 1, 0
  %v1052 = vsel %vm988, 1, 0
  %v1053 = vsel %vm989, 1, 0
  %v1054 = vsel %vm990, 1, 0
  %v1055 = vsel %vm991, 1, 0
  %v1056 = vsel %vm992, 1, 0
  %v1057 = vsel %vm993, 1, 0
  %v1058 = vsel %vm994, 1, 0
  %v1059 = vsel %vm995, 1, 0
  %v1060 = vsel %vm996, 1, 0
  %v1061 = vsel %vm997, 1, 0
  %v1062 = vsel %vm998, 1, 0
  %v1063 = vsel %vm999, 1, 0
  %v1064 = vsel %vm1000, 1, 0
  %v1065 = vsel %vm1001, 1, 0
  %v1066 = vsel %vm1002, 1, 0
  %v1067 = vsel %vm1003, 1, 0
  %v1068 = vsel %vm1004, 1, 0
  %v1069 = vsel %vm1005, 1, 0
  %v1070 = vsel %vm1006, 1, 0
  %v1071 = vsel %vm1007, 1, 0
  %v1072 = vsel %vm1008, 1, 0
  %v1073 = vsel %vm1009, 1, 0
  %v1074 = vsel %vm1010, 1, 0
  %v1075 = vsel %vm1011, 1, 0
  %v1076 = vsel %vm1012, 1, 0
  %v1077 = vsel %vm1013, 1, 0
  %v1078 = vsel %vm1014, 1, 0
  %v1079 = vsel %vm1015, 1, 0
  %v1080 = vsel %vm1016, 1, 0
  %v1081 = vsel %vm1017, 1, 0
  %v1082 = vsel %vm1018, 1, 0
  %v1083 = vsel %vm1019, 1, 0
  %v1084 = vsel %vm1020, 1, 0
  %v1085 = vsel %vm1021, 1, 0
  %v1086 = vsel %vm1022, 1, 0
  %v1087 = vsel %vm1023, 1, 0
  %v1088 = vsel %vm1024, 1, 0
  %v1089 = vsel %vm1025, 1, 0
  %v1090 = vsel %vm1026, 1, 0
  %v1091 = vsel %vm1027, 1, 0
  %v1092 = vsel %vm1028, 1, 0
  %v1093 = vsel %vm1029, 1, 0
  %v1094 = vsel %vm1030, 1, 0
  %v1095 = vsel %vm1031, 1, 0
  %v1096 = vsel %vm1032, 1, 0
  %v1097 = vsel %vm1033, 1, 0
  %v1098 = vsel %vm1034, 1, 0
  %v1099 = vsel %vm1035, 1, 0
  %v1100 = vsel %vm1036, 1, 0
  %v1101 = vsel %vm1037, 1, 0
  %v1102 = vsel %vm1038, 1, 0
  %v1103 = vsel %vm1039, 1, 0
  %v1104 = vsel %vm1040, 1, 0
  %v1105 = vsel %vm1041, 1, 0
  %v1106 = vsel %vm1042, 1, 0
  %v1107 = vsel %vm1043, 1, 0
  %v1108 = vsel %vm1044, 1, 0
  %v1109 = vsel %vm1045, 1, 0
  %v1110 = vsel %vm1046, 1, 0
  %v1111 = vsel %vm1047, 1, 0
  %v1112 = vsel %vm1048, 1, 0
  %v1113 = vsel %vm1049, 1, 0
  %v1114 = vcvt.s32.f32 %v1050
  %v1115 = vcvt.s32.f32 %v1051
  %v1116 = vcvt.s32.f32 %v1052
  %v1117 = vcvt.s32.f32 %v1053
  %v1118 = vcvt.s32.f32 %v1054
  %v1119 = vcvt.s32.f32 %v1055
  %v1120 = vcvt.s32.f32 %v1056
  %v1121 = vcvt.s32.f32 %v1057
  %v1122 = vcvt.s32.f32 %v1058
  %v1123 = vcvt.s32.f32 %v1059
  %v1124 = vcvt.s32.f32 %v1060
  %v1125 = vcvt.s32.f32 %v1061
  %v1126 = vcvt.s32.f32 %v1062
  %v1127 = vcvt.s32.f32 %v1063
  %v1128 = vcvt.s32.f32 %v1064
  %v1129 = vcvt.s32.f32 %v1065
  %v1130 = vcvt.s32.f32 %v1066
  %v1131 = vcvt.s32.f32 %v1067
  %v1132 = vcvt.s32.f32 %v1068
  %v1133 = vcvt.s32.f32 %v1069
  %v1134 = vcvt.s32.f32 %v1070
  %v1135 = vcvt.s32.f32 %v1071
  %v1136 = vcvt.s32.f32 %v1072
  %v1137 = vcvt.s32.f32 %v1073
  %v1138 = vcvt.s32.f32 %v1074
  %v1139 = vcvt.s32.f32 %v1075
  %v1140 = vcvt.s32.f32 %v1076
  %v1141 = vcvt.s32.f32 %v1077
  %v1142 = vcvt.s32.f32 %v1078
  %v1143 = vcvt.s32.f32 %v1079
  %v1144 = vcvt.s32.f32 %v1080
  %v1145 = vcvt.s32.f32 %v1081
  %v1146 = vcvt.s32.f32 %v1082
  %v1147 = vcvt.s32.f32 %v1083
  %v1148 = vcvt.s32.f32 %v1084
  %v1149 = vcvt.s32.f32 %v1085
  %v1150 = vcvt.s32.f32 %v1086
  %v1151 = vcvt.s32.f32 %v1087
  %v1152 = vcvt.s32.f32 %v1088
  %v1153 = vcvt.s32.f32 %v1089
  %v1154 = vcvt.s32.f32 %v1090
  %v1155 = vcvt.s32.f32 %v1091
  %v1156 = vcvt.s32.f32 %v1092
  %v1157 = vcvt.s32.f32 %v1093
  %v1158 = vcvt.s32.f32 %v1094
  %v1159 = vcvt.s32.f32 %v1095
  %v1160 = vcvt.s32.f32 %v1096
  %v1161 = vcvt.s32.f32 %v1097
  %v1162 = vcvt.s32.f32 %v1098
  %v1163 = vcvt.s32.f32 %v1099
  %v1164 = vcvt.s32.f32 %v1100
  %v1165 = vcvt.s32.f32 %v1101
  %v1166 = vcvt.s32.f32 %v1102
  %v1167 = vcvt.s32.f32 %v1103
  %v1168 = vcvt.s32.f32 %v1104
  %v1169 = vcvt.s32.f32 %v1105
  %v1170 = vcvt.s32.f32 %v1106
  %v1171 = vcvt.s32.f32 %v1107
  %v1172 = vcvt.s32.f32 %v1108
  %v1173 = vcvt.s32.f32 %v1109
  %v1174 = vcvt.s32.f32 %v1110
  %v1175 = vcvt.s32.f32 %v1111
  %v1176 = vcvt.s32.f32 %v1112
  %v1177 = vcvt.s32.f32 %v1113
  %v1178 = vmul.f32 %v663, %v1114
  %v1179 = vmul.f32 %v664, %v1115
  %v1180 = vmul.f32 %v665, %v1116
  %v1181 = vmul.f32 %v666, %v1117
  %v1182 = vmul.f32 %v667, %v1118
  %v1183 = vmul.f32 %v668, %v1119
  %v1184 = vmul.f32 %v669, %v1120
  %v1185 = vmul.f32 %v670, %v1121
  %v1186 = vmul.f32 %v671, %v1122
  %v1187 = vmul.f32 %v672, %v1123
  %v1188 = vmul.f32 %v673, %v1124
  %v1189 = vmul.f32 %v674, %v1125
  %v1190 = vmul.f32 %v675, %v1126
  %v1191 = vmul.f32 %v676, %v1127
  %v1192 = vmul.f32 %v677, %v1128
  %v1193 = vmul.f32 %v678, %v1129
  %v1194 = vmul.f32 %v679, %v1130
  %v1195 = vmul.f32 %v680, %v1131
  %v1196 = vmul.f32 %v681, %v1132
  %v1197 = vmul.f32 %v682, %v1133
  %v1198 = vmul.f32 %v683, %v1134
  %v1199 = vmul.f32 %v684, %v1135
  %v1200 = vmul.f32 %v685, %v1136
  %v1201 = vmul.f32 %v686, %v1137
  %v1202 = vmul.f32 %v687, %v1138
  %v1203 = vmul.f32 %v688, %v1139
  %v1204 = vmul.f32 %v689, %v1140
  %v1205 = vmul.f32 %v690, %v1141
  %v1206 = vmul.f32 %v691, %v1142
  %v1207 = vmul.f32 %v692, %v1143
  %v1208 = vmul.f32 %v693, %v1144
  %v1209 = vmul.f32 %v694, %v1145
  %v1210 = vmul.f32 %v695, %v1146
  %v1211 = vmul.f32 %v696, %v1147
  %v1212 = vmul.f32 %v697, %v1148
  %v1213 = vmul.f32 %v698, %v1149
  %v1214 = vmul.f32 %v699, %v1150
  %v1215 = vmul.f32 %v700, %v1151
  %v1216 = vmul.f32 %v701, %v1152
  %v1217 = vmul.f32 %v702, %v1153
  %v1218 = vmul.f32 %v703, %v1154
  %v1219 = vmul.f32 %v704, %v1155
  %v1220 = vmul.f32 %v705, %v1156
  %v1221 = vmul.f32 %v706, %v1157
  %v1222 = vmul.f32 %v707, %v1158
  %v1223 = vmul.f32 %v708, %v1159
  %v1224 = vmul.f32 %v709, %v1160
  %v1225 = vmul.f32 %v710, %v1161
  %v1226 = vmul.f32 %v711, %v1162
  %v1227 = vmul.f32 %v712, %v1163
  %v1228 = vmul.f32 %v713, %v1164
  %v1229 = vmul.f32 %v714, %v1165
  %v1230 = vmul.f32 %v715, %v1166
  %v1231 = vmul.f32 %v716, %v1167
  %v1232 = vmul.f32 %v717, %v1168
  %v1233 = vmul.f32 %v718, %v1169
  %v1234 = vmul.f32 %v719, %v1170
  %v1235 = vmul.f32 %v720, %v1171
  %v1236 = vmul.f32 %v721, %v1172
  %v1237 = vmul.f32 %v722, %v1173
  %v1238 = vmul.f32 %v723, %v1174
  %v1239 = vmul.f32 %v724, %v1175
  %v1240 = vmul.f32 %v725, %v1176
  %v1241 = vmul.f32 %v726, %v1177
  %v1242 = vadd.f32 %v1178, %v1179
  %v1243 = vadd.f32 %v1242, %v1180
  %v1244 = vadd.f32 %v1243, %v1181
  %v1245 = vadd.f32 %v1244, %v1182
  %v1246 = vadd.f32 %v1245, %v1183
  %v1247 = vadd.f32 %v1246, %v1184
  %v1248 = vadd.f32 %v1247, %v1185
  %v1249 = vadd.f32 %v1248, %v1186
  %v1250 = vadd.f32 %v1249, %v1187
  %v1251 = vadd.f32 %v1250, %v1188
  %v1252 = vadd.f32 %v1251, %v1189
  %v1253 = vadd.f32 %v1252, %v1190
  %v1254 = vadd.f32 %v1253, %v1191
  %v1255 = vadd.f32 %v1254, %v1192
  %v1256 = vadd.f32 %v1255, %v1193
  %v1257 = vadd.f32 %v1256, %v1194
  %v1258 = vadd.f32 %v1257, %v1195
  %v1259 = vadd.f32 %v1258, %v1196
  %v1260 = vadd.f32 %v1259, %v1197
  %v1261 = vadd.f32 %v1260, %v1198
  %v1262 = vadd.f32 %v1261, %v1199
  %v1263 = vadd.f32 %v1262, %v1200
  %v1264 = vadd.f32 %v1263, %v1201
  %v1265 = vadd.f32 %v1264, %v1202
  %v1266 = vadd.f32 %v1265, %v1203
  %v1267 = vadd.f32 %v1266, %v1204
  %v1268 = vadd.f32 %v1267, %v1205
  %v1269 = vadd.f32 %v1268, %v1206
  %v1270 = vadd.f32 %v1269, %v1207
  %v1271 = vadd.f32 %v1270, %v1208
  %v1272 = vadd.f32 %v1271, %v1209
  %v1273 = vadd.f32 %v1272, %v1210
  %v1274 = vadd.f32 %v1273, %v1211
  %v1275 = vadd.f32 %v1274, %v1212
  %v1276 = vadd.f32 %v1275, %v1213
  %v1277 = vadd.f32 %v1276, %v1214
  %v1278 = vadd.f32 %v1277, %v1215
  %v1279 = vadd.f32 %v1278, %v1216
  %v1280 = vadd.f32 %v1279, %v1217
  %v1281 = vadd.f32 %v1280, %v1218
  %v1282 = vadd.f32 %v1281, %v1219
  %v1283 = vadd.f32 %v1282, %v1220
  %v1284 = vadd.f32 %v1283, %v1221
  %v1285 = vadd.f32 %v1284, %v1222
  %v1286 = vadd.f32 %v1285, %v1223
  %v1287 = vadd.f32 %v1286, %v1224
  %v1288 = vadd.f32 %v1287, %v1225
  %v1289 = vadd.f32 %v1288, %v1226
  %v1290 = vadd.f32 %v1289, %v1227
  %v1291 = vadd.f32 %v1290, %v1228
  %v1292 = vadd.f32 %v1291, %v1229
  %v1293 = vadd.f32 %v1292, %v1230
  %v1294 = vadd.f32 %v1293, %v1231
  %v1295 = vadd.f32 %v1294, %v1232
  %v1296 = vadd.f32 %v1295, %v1233
  %v1297 = vadd.f32 %v1296, %v1234
  %v1298 = vadd.f32 %v1297, %v1235
  %v1299 = vadd.f32 %v1298, %v1236
  %v1300 = vadd.f32 %v1299, %v1237
  %v1301 = vadd.f32 %v1300, %v1238
  %v1302 = vadd.f32 %v1301, %v1239
  %v1303 = vadd.f32 %v1302, %v1240
  %v1304 = vadd.f32 %v1303, %v1241
  %v1305 = vrot.slane %v1304, 4
  %v1306 = vadd.f32 %v1304, %v1305
  %v1307 = vrot.slane %v1306, 2
  %v1308 = vadd.f32 %v1306, %v1307
  %v1309 = vrot.slane %v1308, 1
  %v1310 = vadd.f32 %v1308, %v1309
  %v1311 = vmul.f32 %v1178, %v1178
  %v1312 = vmul.f32 %v1179, %v1179
  %v1313 = vmul.f32 %v1180, %v1180
  %v1314 = vmul.f32 %v1181, %v1181
  %v1315 = vmul.f32 %v1182, %v1182
  %v1316 = vmul.f32 %v1183, %v1183
  %v1317 = vmul.f32 %v1184, %v1184
  %v1318 = vmul.f32 %v1185, %v1185
  %v1319 = vmul.f32 %v1186, %v1186
  %v1320 = vmul.f32 %v1187, %v1187
  %v1321 = vmul.f32 %v1188, %v1188
  %v1322 = vmul.f32 %v1189, %v1189
  %v1323 = vmul.f32 %v1190, %v1190
  %v1324 = vmul.f32 %v1191, %v1191
  %v1325 = vmul.f32 %v1192, %v1192
  %v1326 = vmul.f32 %v1193, %v1193
  %v1327 = vmul.f32 %v1194, %v1194
  %v1328 = vmul.f32 %v1195, %v1195
  %v1329 = vmul.f32 %v1196, %v1196
  %v1330 = vmul.f32 %v1197, %v1197
  %v1331 = vmul.f32 %v1198, %v1198
  %v1332 = vmul.f32 %v1199, %v1199
  %v1333 = vmul.f32 %v1200, %v1200
  %v1334 = vmul.f32 %v1201, %v1201
  %v1335 = vmul.f32 %v1202, %v1202
  %v1336 = vmul.f32 %v1203, %v1203
  %v1337 = vmul.f32 %v1204, %v1204
  %v1338 = vmul.f32 %v1205, %v1205
  %v1339 = vmul.f32 %v1206, %v1206
  %v1340 = vmul.f32 %v1207, %v1207
  %v1341 = vmul.f32 %v1208, %v1208
  %v1342 = vmul.f32 %v1209, %v1209
  %v1343 = vmul.f32 %v1210, %v1210
  %v1344 = vmul.f32 %v1211, %v1211
  %v1345 = vmul.f32 %v1212, %v1212
  %v1346 = vmul.f32 %v1213, %v1213
  %v1347 = vmul.f32 %v1214, %v1214
  %v1348 = vmul.f32 %v1215, %v1215
  %v1349 = vmul.f32 %v1216, %v1216
  %v1350 = vmul.f32 %v1217, %v1217
  %v1351 = vmul.f32 %v1218, %v1218
  %v1352 = vmul.f32 %v1219, %v1219
  %v1353 = vmul.f32 %v1220, %v1220
  %v1354 = vmul.f32 %v1221, %v1221
  %v1355 = vmul.f32 %v1222, %v1222
  %v1356 = vmul.f32 %v1223, %v1223
  %v1357 = vmul.f32 %v1224, %v1224
  %v1358 = vmul.f32 %v1225, %v1225
  %v1359 = vmul.f32 %v1226, %v1226
  %v1360 = vmul.f32 %v1227, %v1227
  %v1361 = vmul.f32 %v1228, %v1228
  %v1362 = vmul.f32 %v1229, %v1229
  %v1363 = vmul.f32 %v1230, %v1230
  %v1364 = vmul.f32 %v1231, %v1231
  %v1365 = vmul.f32 %v1232, %v1232
  %v1366 = vmul.f32 %v1233, %v1233
  %v1367 = vmul.f32 %v1234, %v1234
  %v1368 = vmul.f32 %v1235, %v1235
  %v1369 = vmul.f32 %v1236, %v1236
  %v1370 = vmul.f32 %v1237, %v1237
  %v1371 = vmul.f32 %v1238, %v1238
  %v1372 = vmul.f32 %v1239, %v1239
  %v1373 = vmul.f32 %v1240, %v1240
  %v1374 = vmul.f32 %v1241, %v1241
  %v1375 = vadd.f32 %v1311, %v1312
  %v1376 = vadd.f32 %v1375, %v1313
  %v1377 = vadd.f32 %v1376, %v1314
  %v1378 = vadd.f32 %v1377, %v1315
  %v1379 = vadd.f32 %v1378, %v1316
  %v1380 = vadd.f32 %v1379, %v1317
  %v1381 = vadd.f32 %v1380, %v1318
  %v1382 = vadd.f32 %v1381, %v1319
  %v1383 = vadd.f32 %v1382, %v1320
  %v1384 = vadd.f32 %v1383, %v1321
  %v1385 = vadd.f32 %v1384, %v1322
  %v1386 = vadd.f32 %v1385, %v1323
  %v1387 = vadd.f32 %v1386, %v1324
  %v1388 = vadd.f32 %v1387, %v1325
  %v1389 = vadd.f32 %v1388, %v1326
  %v1390 = vadd.f32 %v1389, %v1327
  %v1391 = vadd.f32 %v1390, %v1328
  %v1392 = vadd.f32 %v1391, %v1329
  %v1393 = vadd.f32 %v1392, %v1330
  %v1394 = vadd.f32 %v1393, %v1331
  %v1395 = vadd.f32 %v1394, %v1332
  %v1396 = vadd.f32 %v1395, %v1333
  %v1397 = vadd.f32 %v1396, %v1334
  %v1398 = vadd.f32 %v1397, %v1335
  %v1399 = vadd.f32 %v1398, %v1336
  %v1400 = vadd.f32 %v1399, %v1337
  %v1401 = vadd.f32 %v1400, %v1338
  %v1402 = vadd.f32 %v1401, %v1339
  %v1403 = vadd.f32 %v1402, %v1340
  %v1404 = vadd.f32 %v1403, %v1341
  %v1405 = vadd.f32 %v1404, %v1342
  %v1406 = vadd.f32 %v1405, %v1343
  %v1407 = vadd.f32 %v1406, %v1344
  %v1408 = vadd.f32 %v1407, %v1345
  %v1409 = vadd.f32 %v1408, %v1346
  %v1410 = vadd.f32 %v1409, %v1347
  %v1411 = vadd.f32 %v1410, %v1348
  %v1412 = vadd.f32 %v1411, %v1349
  %v1413 = vadd.f32 %v1412, %v1350
  %v1414 = vadd.f32 %v1413, %v1351
  %v1415 = vadd.f32 %v1414, %v1352
  %v1416 = vadd.f32 %v1415, %v1353
  %v1417 = vadd.f32 %v1416, %v1354
  %v1418 = vadd.f32 %v1417, %v1355
  %v1419 = vadd.f32 %v1418, %v1356
  %v1420 = vadd.f32 %v1419, %v1357
  %v1421 = vadd.f32 %v1420, %v1358
  %v1422 = vadd.f32 %v1421, %v1359
  %v1423 = vadd.f32 %v1422, %v1360
  %v1424 = vadd.f32 %v1423, %v1361
  %v1425 = vadd.f32 %v1424, %v1362
  %v1426 = vadd.f32 %v1425, %v1363
  %v1427 = vadd.f32 %v1426, %v1364
  %v1428 = vadd.f32 %v1427, %v1365
  %v1429 = vadd.f32 %v1428, %v1366
  %v1430 = vadd.f32 %v1429, %v1367
  %v1431 = vadd.f32 %v1430, %v1368
  %v1432 = vadd.f32 %v1431, %v1369
  %v1433 = vadd.f32 %v1432, %v1370
  %v1434 = vadd.f32 %v1433, %v1371
  %v1435 = vadd.f32 %v1434, %v1372
  %v1436 = vadd.f32 %v1435, %v1373
  %v1437 = vadd.f32 %v1436, %v1374
  %v1438 = vrot.slane %v1437, 4
  %v1439 = vadd.f32 %v1437, %v1438
  %v1440 = vrot.slane %v1439, 2
  %v1441 = vadd.f32 %v1439, %v1440
  %v1442 = vrot.slane %v1441, 1
  %v1443 = vadd.f32 %v1441, %v1442
  %vm1444 = vcmask 1040384
  %v1445 = vsel %vm1444, %v1310, %v1443
  %1446 = vst [vmem:[%s4] sm:$0x3] %v1445
  // Predicated region
  $region14: #{vae_forward.12} parent=0 // pred_check
    _
  $region15: #{vae_forward.12} parent=0 // pred_check_branch
    %1448 = sbr.rel (0) target = $region17
  $region16: #{vae_forward.12} parent=0 // pred_region
    _
  $region17: #{vae_forward.12} parent=0 // pred_fallthru
    _
  // Predicated region
  $region18: #{vae_forward.12} parent=0 // pred_check
    _
  $region19: #{vae_forward.12} parent=0 // pred_check_branch
    %1450 = sbr.rel (0) target = $region21
  $region20: #{vae_forward.12} parent=0 // pred_region
    _
  $region21: #{vae_forward.12} parent=0 // pred_fallthru
    _
  // Predicated region
  $region22: #{vae_forward.12} parent=0 // pred_check
    _
  $region23: #{vae_forward.12} parent=0 // pred_check_branch
    %1452 = sbr.rel (0) target = $region25
  $region24: #{vae_forward.12} parent=0 // pred_region
    _
  $region25: #{vae_forward.12} parent=0 // pred_fallthru
    _
  // Predicated region
  $region26: #{vae_forward.12} parent=0 // pred_check
    _
  $region27: #{vae_forward.12} parent=0 // pred_check_branch
    %1454 = sbr.rel (0) target = $region29
  $region28: #{vae_forward.12} parent=0 // pred_region
    _
  $region29: #{vae_forward.12} parent=0 // pred_fallthru
    _

// kernel: vae_forward.13
$region0: #{vae_forward.13}
  #allocation0 [shape = 'u32[]', space=smem, size = 0x4, offset = 0x4, fixed_abs, tag = 'smem constant byte address 0x4 - core index']
  #allocation1 [shape = 'u32[72,128]{1,0:T(1,128)}', space=vmem, size = 0x9000, scoped, tag = 'internal scratch']
  #allocation2 [shape = 'f32[128,128]{1,0:T(8,128)}', space=vmem, size = 0x10000, scoped, tag = 'scratch operand']
  %s0 = inlined_call_operand.vmem [shape: bf16[128,128], index: 0, kind: input, shape index: {}]
  %s1 = inlined_call_operand.vmem [shape: bf16[128,128], index: 1, kind: input, shape index: {}]
  %s2 = inlined_call_operand.vmem [shape: f32[1,128], index: 2, kind: input, shape index: {}]
  %s3 = inlined_call_operand.vmem [shape: bf16[128,128], index: 3, kind: output, shape index: {0}]
  %s4 = inlined_call_operand.vmem [shape: f32[1,2,128], index: 4, kind: output, shape index: {1}]
  %5 = xla_tuple %s3, %s4
  %s6 = sld [smem:[#allocation0]]
  $region30: #{vae_forward.13} parent=0
    _
  %s8 = ssub.s32 1, %s6
  %s9 = scalar_select 0, %s8, %s6
  // Predicated region
  $region2: #{vae_forward.13} parent=0 // pred_check
    _
  $region3: #{vae_forward.13} parent=0 // pred_check_branch
    %11 = sbr.rel (0) target = $region5
  $region4: #{vae_forward.13} parent=0 // pred_region
    _
  $region5: #{vae_forward.13} parent=0 // pred_fallthru
    _
  // Predicated region
  $region6: #{vae_forward.13} parent=0 // pred_check
    _
  $region7: #{vae_forward.13} parent=0 // pred_check_branch
    %13 = sbr.rel (0) target = $region9
  $region8: #{vae_forward.13} parent=0 // pred_region
    _
  $region9: #{vae_forward.13} parent=0 // pred_fallthru
    _
  // Predicated region
  $region10: #{vae_forward.13} parent=0 // pred_check
    _
  $region11: #{vae_forward.13} parent=0 // pred_check_branch
    %15 = sbr.rel (0) target = $region13
  $region12: #{vae_forward.13} parent=0 // pred_region
    _
  $region13: #{vae_forward.13} parent=0 // pred_fallthru
    _
  %v16 = vld [vmem:[%s0] sm:$0xf]
  %v17 = vld [vmem:[%s0 + $0x4] sm:$0xf]
  %v18 = vld [vmem:[%s0 + $0x8] sm:$0xf]
  %v19 = vld [vmem:[%s0 + $0xc] sm:$0xf]
  %v20 = vld [vmem:[%s0 + $0x10] sm:$0xf]
  %v21 = vld [vmem:[%s0 + $0x14] sm:$0xf]
  %v22 = vld [vmem:[%s0 + $0x18] sm:$0xf]
  %v23 = vld [vmem:[%s0 + $0x1c] sm:$0xf]
  %v24 = vld [vmem:[%s0 + $0x20] sm:$0xf]
  %v25 = vld [vmem:[%s0 + $0x24] sm:$0xf]
  %v26 = vld [vmem:[%s0 + $0x28] sm:$0xf]
  %v27 = vld [vmem:[%s0 + $0x2c] sm:$0xf]
  %v28 = vld [vmem:[%s0 + $0x30] sm:$0xf]
  %v29 = vld [vmem:[%s0 + $0x34] sm:$0xf]
  %v30 = vld [vmem:[%s0 + $0x38] sm:$0xf]
  %v31 = vld [vmem:[%s0 + $0x3c] sm:$0xf]
  %v32 = vld [vmem:[%s1] sm:$0xf]
  %v33 = vld [vmem:[%s1 + $0x4] sm:$0xf]
  %v34 = vld [vmem:[%s1 + $0x8] sm:$0xf]
  %v35 = vld [vmem:[%s1 + $0xc] sm:$0xf]
  %v36 = vld [vmem:[%s1 + $0x10] sm:$0xf]
  %v37 = vld [vmem:[%s1 + $0x14] sm:$0xf]
  %v38 = vld [vmem:[%s1 + $0x18] sm:$0xf]
  %v39 = vld [vmem:[%s1 + $0x1c] sm:$0xf]
  %v40 = vld [vmem:[%s1 + $0x20] sm:$0xf]
  %v41 = vld [vmem:[%s1 + $0x24] sm:$0xf]
  %v42 = vld [vmem:[%s1 + $0x28] sm:$0xf]
  %v43 = vld [vmem:[%s1 + $0x2c] sm:$0xf]
  %v44 = vld [vmem:[%s1 + $0x30] sm:$0xf]
  %v45 = vld [vmem:[%s1 + $0x34] sm:$0xf]
  %v46 = vld [vmem:[%s1 + $0x38] sm:$0xf]
  %v47 = vld [vmem:[%s1 + $0x3c] sm:$0xf]
  %v48 = vld [vmem:[%s2] sm:$0x1]
  %v50 = vperm.slane %v48, 0
  %v68 = vunpack.c.l.b16 %v16
  %v69 = vunpack.c.l.b16 %v17
  %v70 = vunpack.c.l.b16 %v18
  %v71 = vunpack.c.l.b16 %v19
  %v72 = vunpack.c.l.b16 %v20
  %v73 = vunpack.c.l.b16 %v21
  %v74 = vunpack.c.l.b16 %v22
  %v75 = vunpack.c.l.b16 %v23
  %v76 = vunpack.c.l.b16 %v24
  %v77 = vunpack.c.l.b16 %v25
  %v78 = vunpack.c.l.b16 %v26
  %v79 = vunpack.c.l.b16 %v27
  %v80 = vunpack.c.l.b16 %v28
  %v81 = vunpack.c.l.b16 %v29
  %v82 = vunpack.c.l.b16 %v30
  %v83 = vunpack.c.l.b16 %v31
  %v84 = vpack.c.b16 %v69, %v68
  %v85 = vpack.c.b16 %v71, %v70
  %v86 = vpack.c.b16 %v73, %v72
  %v87 = vpack.c.b16 %v75, %v74
  %v88 = vpack.c.b16 %v77, %v76
  %v89 = vpack.c.b16 %v79, %v78
  %v90 = vpack.c.b16 %v81, %v80
  %v91 = vpack.c.b16 %v83, %v82
  %v116 = vunpack.c.l.b16 %v32
  %v117 = vunpack.c.l.b16 %v33
  %v118 = vunpack.c.l.b16 %v34
  %v119 = vunpack.c.l.b16 %v35
  %v120 = vunpack.c.l.b16 %v36
  %v121 = vunpack.c.l.b16 %v37
  %v122 = vunpack.c.l.b16 %v38
  %v123 = vunpack.c.l.b16 %v39
  %v124 = vunpack.c.l.b16 %v40
  %v125 = vunpack.c.l.b16 %v41
  %v126 = vunpack.c.l.b16 %v42
  %v127 = vunpack.c.l.b16 %v43
  %v128 = vunpack.c.l.b16 %v44
  %v129 = vunpack.c.l.b16 %v45
  %v130 = vunpack.c.l.b16 %v46
  %v131 = vunpack.c.l.b16 %v47
  %v132 = vpack.c.b16 %v117, %v116
  %v133 = vpack.c.b16 %v119, %v118
  %v134 = vpack.c.b16 %v121, %v120
  %v135 = vpack.c.b16 %v123, %v122
  %v136 = vpack.c.b16 %v125, %v124
  %v137 = vpack.c.b16 %v127, %v126
  %v138 = vpack.c.b16 %v129, %v128
  %v139 = vpack.c.b16 %v131, %v130
  %148 = vmatpush.bf16.msra.mxu0 %v139
  %149 = vmatpush.bf16.msra.mxu0 %v138
  %150 = vmatpush.bf16.msra.mxu0 %v137
  %151 = vmatpush.bf16.msra.mxu0 %v136
  %152 = vmatpush.bf16.msra.mxu0 %v135
  %153 = vmatpush.bf16.msra.mxu0 %v134
  %154 = vmatpush.bf16.msra.mxu0 %v133
  %155 = vmatpush.bf16.msra.mxu0 %v132
  %156 = vmatmul.bf16.gmra.mxu0 %v84
  %v157 = vpop.f32.mrf.mxu0
  %v158 = vadd.f32 %v50, %v157
  %v159 = vpop.f32.mrf.mxu0
  %v160 = vadd.f32 %v50, %v159
  %161 = vmatmul.bf16.gmra.mxu0 %v85
  %v162 = vpop.f32.mrf.mxu0
  %v163 = vadd.f32 %v50, %v162
  %v164 = vpop.f32.mrf.mxu0
  %v165 = vadd.f32 %v50, %v164
  %166 = vmatmul.bf16.gmra.mxu0 %v86
  %v167 = vpop.f32.mrf.mxu0
  %v168 = vadd.f32 %v50, %v167
  %v169 = vpop.f32.mrf.mxu0
  %v170 = vadd.f32 %v50, %v169
  %171 = vmatmul.bf16.gmra.mxu0 %v87
  %v172 = vpop.f32.mrf.mxu0
  %v173 = vadd.f32 %v50, %v172
  %v174 = vpop.f32.mrf.mxu0
  %v175 = vadd.f32 %v50, %v174
  %176 = vmatmul.bf16.gmra.mxu0 %v88
  %v177 = vpop.f32.mrf.mxu0
  %v178 = vadd.f32 %v50, %v177
  %v179 = vpop.f32.mrf.mxu0
  %v180 = vadd.f32 %v50, %v179
  %181 = vmatmul.bf16.gmra.mxu0 %v89
  %v182 = vpop.f32.mrf.mxu0
  %v183 = vadd.f32 %v50, %v182
  %v184 = vpop.f32.mrf.mxu0
  %v185 = vadd.f32 %v50, %v184
  %186 = vmatmul.bf16.gmra.mxu0 %v90
  %v187 = vpop.f32.mrf.mxu0
  %v188 = vadd.f32 %v50, %v187
  %v189 = vpop.f32.mrf.mxu0
  %v190 = vadd.f32 %v50, %v189
  %191 = vmatmul.bf16.gmra.mxu0 %v91
  %v192 = vpop.f32.mrf.mxu0
  %v193 = vadd.f32 %v50, %v192
  %v194 = vpop.f32.mrf.mxu0
  %v195 = vadd.f32 %v50, %v194
  %196 = vdwg.mxu0
  %vm197 = vcmp.ge.f32.partialorder %v158, 0.0
  %vm198 = vcmp.ge.f32.partialorder %v160, 0.0
  %vm199 = vcmp.ge.f32.partialorder %v163, 0.0
  %vm200 = vcmp.ge.f32.partialorder %v165, 0.0
  %vm201 = vcmp.ge.f32.partialorder %v168, 0.0
  %vm202 = vcmp.ge.f32.partialorder %v170, 0.0
  %vm203 = vcmp.ge.f32.partialorder %v173, 0.0
  %vm204 = vcmp.ge.f32.partialorder %v175, 0.0
  %vm205 = vcmp.ge.f32.partialorder %v178, 0.0
  %vm206 = vcmp.ge.f32.partialorder %v180, 0.0
  %vm207 = vcmp.ge.f32.partialorder %v183, 0.0
  %vm208 = vcmp.ge.f32.partialorder %v185, 0.0
  %vm209 = vcmp.ge.f32.partialorder %v188, 0.0
  %vm210 = vcmp.ge.f32.partialorder %v190, 0.0
  %vm211 = vcmp.ge.f32.partialorder %v193, 0.0
  %vm212 = vcmp.ge.f32.partialorder %v195, 0.0
  %v213 = vmul.f32 %v158, 0.2
  %v214 = vmul.f32 %v160, 0.2
  %v215 = vmul.f32 %v163, 0.2
  %v216 = vmul.f32 %v165, 0.2
  %v217 = vmul.f32 %v168, 0.2
  %v218 = vmul.f32 %v170, 0.2
  %v219 = vmul.f32 %v173, 0.2
  %v220 = vmul.f32 %v175, 0.2
  %v221 = vmul.f32 %v178, 0.2
  %v222 = vmul.f32 %v180, 0.2
  %v223 = vmul.f32 %v183, 0.2
  %v224 = vmul.f32 %v185, 0.2
  %v225 = vmul.f32 %v188, 0.2
  %v226 = vmul.f32 %v190, 0.2
  %v227 = vmul.f32 %v193, 0.2
  %v228 = vmul.f32 %v195, 0.2
  %v229 = vsel %vm197, %v158, %v213
  %v230 = vsel %vm198, %v160, %v214
  %v231 = vsel %vm199, %v163, %v215
  %v232 = vsel %vm200, %v165, %v216
  %v233 = vsel %vm201, %v168, %v217
  %v234 = vsel %vm202, %v170, %v218
  %v235 = vsel %vm203, %v173, %v219
  %v236 = vsel %vm204, %v175, %v220
  %v237 = vsel %vm205, %v178, %v221
  %v238 = vsel %vm206, %v180, %v222
  %v239 = vsel %vm207, %v183, %v223
  %v240 = vsel %vm208, %v185, %v224
  %v241 = vsel %vm209, %v188, %v225
  %v242 = vsel %vm210, %v190, %v226
  %v243 = vsel %vm211, %v193, %v227
  %v244 = vsel %vm212, %v195, %v228
  %v245 = vpack.c.bf16 %v229, %v229
  %v246 = vpack.c.bf16 %v230, %v230
  %v247 = vpack.c.bf16 %v231, %v231
  %v248 = vpack.c.bf16 %v232, %v232
  %v249 = vpack.c.bf16 %v233, %v233
  %v250 = vpack.c.bf16 %v234, %v234
  %v251 = vpack.c.bf16 %v235, %v235
  %v252 = vpack.c.bf16 %v236, %v236
  %v253 = vpack.c.bf16 %v237, %v237
  %v254 = vpack.c.bf16 %v238, %v238
  %v255 = vpack.c.bf16 %v239, %v239
  %v256 = vpack.c.bf16 %v240, %v240
  %v257 = vpack.c.bf16 %v241, %v241
  %v258 = vpack.c.bf16 %v242, %v242
  %v259 = vpack.c.bf16 %v243, %v243
  %v260 = vpack.c.bf16 %v244, %v244
  %261 = vst [vmem:[%s3] sm:$0xf] %v245
  %262 = vst [vmem:[%s3 + $0x4] sm:$0xf] %v246
  %263 = vst [vmem:[%s3 + $0x8] sm:$0xf] %v247
  %264 = vst [vmem:[%s3 + $0xc] sm:$0xf] %v248
  %265 = vst [vmem:[%s3 + $0x10] sm:$0xf] %v249
  %266 = vst [vmem:[%s3 + $0x14] sm:$0xf] %v250
  %267 = vst [vmem:[%s3 + $0x18] sm:$0xf] %v251
  %268 = vst [vmem:[%s3 + $0x1c] sm:$0xf] %v252
  %269 = vst [vmem:[%s3 + $0x20] sm:$0xf] %v253
  %270 = vst [vmem:[%s3 + $0x24] sm:$0xf] %v254
  %271 = vst [vmem:[%s3 + $0x28] sm:$0xf] %v255
  %272 = vst [vmem:[%s3 + $0x2c] sm:$0xf] %v256
  %273 = vst [vmem:[%s3 + $0x30] sm:$0xf] %v257
  %274 = vst [vmem:[%s3 + $0x34] sm:$0xf] %v258
  %275 = vst [vmem:[%s3 + $0x38] sm:$0xf] %v259
  %276 = vst [vmem:[%s3 + $0x3c] sm:$0xf] %v260
  %s277 = smul.u32 0, 128
  %v278 = vlaneseq
  %v279 = vshrl.u32 %v278, 7
  %v280 = vadd.s32 %v279, 8
  %v281 = vadd.s32 %v279, 16
  %v282 = vadd.s32 %v279, 24
  %v283 = vadd.s32 %v279, 32
  %v284 = vadd.s32 %v279, 40
  %v285 = vadd.s32 %v279, 48
  %v286 = vadd.s32 %v279, 56
  %v287 = vadd.s32 %v279, 64
  %v288 = vadd.s32 %v279, 72
  %v289 = vadd.s32 %v279, 80
  %v290 = vadd.s32 %v279, 88
  %v291 = vadd.s32 %v279, 96
  %v292 = vadd.s32 %v279, 104
  %v293 = vadd.s32 %v279, 112
  %v294 = vadd.s32 %v279, 120
  %v295 = vstv %s277
  %v296 = vadd.s32 %v295, %v279
  %v297 = vadd.s32 %v295, %v280
  %v298 = vadd.s32 %v295, %v281
  %v299 = vadd.s32 %v295, %v282
  %v300 = vadd.s32 %v295, %v283
  %v301 = vadd.s32 %v295, %v284
  %v302 = vadd.s32 %v295, %v285
  %v303 = vadd.s32 %v295, %v286
  %v304 = vadd.s32 %v295, %v287
  %v305 = vadd.s32 %v295, %v288
  %v306 = vadd.s32 %v295, %v289
  %v307 = vadd.s32 %v295, %v290
  %v308 = vadd.s32 %v295, %v291
  %v309 = vadd.s32 %v295, %v292
  %v310 = vadd.s32 %v295, %v293
  %v311 = vadd.s32 %v295, %v294
  %vm312 = vcmp.lt.s32.totalorder %v296, 128
  %vm313 = vcmp.lt.s32.totalorder %v297, 128
  %vm314 = vcmp.lt.s32.totalorder %v298, 128
  %vm315 = vcmp.lt.s32.totalorder %v299, 128
  %vm316 = vcmp.lt.s32.totalorder %v300, 128
  %vm317 = vcmp.lt.s32.totalorder %v301, 128
  %vm318 = vcmp.lt.s32.totalorder %v302, 128
  %vm319 = vcmp.lt.s32.totalorder %v303, 128
  %vm320 = vcmp.lt.s32.totalorder %v304, 128
  %vm321 = vcmp.lt.s32.totalorder %v305, 128
  %vm322 = vcmp.lt.s32.totalorder %v306, 128
  %vm323 = vcmp.lt.s32.totalorder %v307, 128
  %vm324 = vcmp.lt.s32.totalorder %v308, 128
  %vm325 = vcmp.lt.s32.totalorder %v309, 128
  %vm326 = vcmp.lt.s32.totalorder %v310, 128
  %vm327 = vcmp.lt.s32.totalorder %v311, 128
  %v328 = vsel %vm312, 1, 0
  %v329 = vsel %vm313, 1, 0
  %v330 = vsel %vm314, 1, 0
  %v331 = vsel %vm315, 1, 0
  %v332 = vsel %vm316, 1, 0
  %v333 = vsel %vm317, 1, 0
  %v334 = vsel %vm318, 1, 0
  %v335 = vsel %vm319, 1, 0
  %v336 = vsel %vm320, 1, 0
  %v337 = vsel %vm321, 1, 0
  %v338 = vsel %vm322, 1, 0
  %v339 = vsel %vm323, 1, 0
  %v340 = vsel %vm324, 1, 0
  %v341 = vsel %vm325, 1, 0
  %v342 = vsel %vm326, 1, 0
  %v343 = vsel %vm327, 1, 0
  %v344 = vcvt.s32.f32 %v328
  %v345 = vcvt.s32.f32 %v329
  %v346 = vcvt.s32.f32 %v330
  %v347 = vcvt.s32.f32 %v331
  %v348 = vcvt.s32.f32 %v332
  %v349 = vcvt.s32.f32 %v333
  %v350 = vcvt.s32.f32 %v334
  %v351 = vcvt.s32.f32 %v335
  %v352 = vcvt.s32.f32 %v336
  %v353 = vcvt.s32.f32 %v337
  %v354 = vcvt.s32.f32 %v338
  %v355 = vcvt.s32.f32 %v339
  %v356 = vcvt.s32.f32 %v340
  %v357 = vcvt.s32.f32 %v341
  %v358 = vcvt.s32.f32 %v342
  %v359 = vcvt.s32.f32 %v343
  %v360 = vmul.f32 %v229, %v344
  %v361 = vmul.f32 %v230, %v345
  %v362 = vmul.f32 %v231, %v346
  %v363 = vmul.f32 %v232, %v347
  %v364 = vmul.f32 %v233, %v348
  %v365 = vmul.f32 %v234, %v349
  %v366 = vmul.f32 %v235, %v350
  %v367 = vmul.f32 %v236, %v351
  %v368 = vmul.f32 %v237, %v352
  %v369 = vmul.f32 %v238, %v353
  %v370 = vmul.f32 %v239, %v354
  %v371 = vmul.f32 %v240, %v355
  %v372 = vmul.f32 %v241, %v356
  %v373 = vmul.f32 %v242, %v357
  %v374 = vmul.f32 %v243, %v358
  %v375 = vmul.f32 %v244, %v359
  %v376 = vadd.f32 %v360, %v361
  %v377 = vadd.f32 %v376, %v362
  %v378 = vadd.f32 %v377, %v363
  %v379 = vadd.f32 %v378, %v364
  %v380 = vadd.f32 %v379, %v365
  %v381 = vadd.f32 %v380, %v366
  %v382 = vadd.f32 %v381, %v367
  %v383 = vadd.f32 %v382, %v368
  %v384 = vadd.f32 %v383, %v369
  %v385 = vadd.f32 %v384, %v370
  %v386 = vadd.f32 %v385, %v371
  %v387 = vadd.f32 %v386, %v372
  %v388 = vadd.f32 %v387, %v373
  %v389 = vadd.f32 %v388, %v374
  %v390 = vadd.f32 %v389, %v375
  %v391 = vrot.slane %v390, 4
  %v392 = vadd.f32 %v390, %v391
  %v393 = vrot.slane %v392, 2
  %v394 = vadd.f32 %v392, %v393
  %v395 = vrot.slane %v394, 1
  %v396 = vadd.f32 %v394, %v395
  %v397 = vmul.f32 %v360, %v360
  %v398 = vmul.f32 %v361, %v361
  %v399 = vmul.f32 %v362, %v362
  %v400 = vmul.f32 %v363, %v363
  %v401 = vmul.f32 %v364, %v364
  %v402 = vmul.f32 %v365, %v365
  %v403 = vmul.f32 %v366, %v366
  %v404 = vmul.f32 %v367, %v367
  %v405 = vmul.f32 %v368, %v368
  %v406 = vmul.f32 %v369, %v369
  %v407 = vmul.f32 %v370, %v370
  %v408 = vmul.f32 %v371, %v371
  %v409 = vmul.f32 %v372, %v372
  %v410 = vmul.f32 %v373, %v373
  %v411 = vmul.f32 %v374, %v374
  %v412 = vmul.f32 %v375, %v375
  %v413 = vadd.f32 %v397, %v398
  %v414 = vadd.f32 %v413, %v399
  %v415 = vadd.f32 %v414, %v400
  %v416 = vadd.f32 %v415, %v401
  %v417 = vadd.f32 %v416, %v402
  %v418 = vadd.f32 %v417, %v403
  %v419 = vadd.f32 %v418, %v404
  %v420 = vadd.f32 %v419, %v405
  %v421 = vadd.f32 %v420, %v406
  %v422 = vadd.f32 %v421, %v407
  %v423 = vadd.f32 %v422, %v408
  %v424 = vadd.f32 %v423, %v409
  %v425 = vadd.f32 %v424, %v410
  %v426 = vadd.f32 %v425, %v411
  %v427 = vadd.f32 %v426, %v412
  %v428 = vrot.slane %v427, 4
  %v429 = vadd.f32 %v427, %v428
  %v430 = vrot.slane %v429, 2
  %v431 = vadd.f32 %v429, %v430
  %v432 = vrot.slane %v431, 1
  %v433 = vadd.f32 %v431, %v432
  %vm434 = vcmask 1040384
  %v435 = vsel %vm434, %v396, %v433
  %436 = vst [vmem:[%s4] sm:$0x3] %v435
  // Predicated region
  $region14: #{vae_forward.13} parent=0 // pred_check
    _
  $region15: #{vae_forward.13} parent=0 // pred_check_branch
    %438 = sbr.rel (0) target = $region17
  $region16: #{vae_forward.13} parent=0 // pred_region
    _
  $region17: #{vae_forward.13} parent=0 // pred_fallthru
    _
  // Predicated region
  $region18: #{vae_forward.13} parent=0 // pred_check
    _
  $region19: #{vae_forward.13} parent=0 // pred_check_branch
    %440 = sbr.rel (0) target = $region21
  $region20: #{vae_forward.13} parent=0 // pred_region
    _
  $region21: #{vae_forward.13} parent=0 // pred_fallthru
    _
  // Predicated region
  $region22: #{vae_forward.13} parent=0 // pred_check
    _
  $region23: #{vae_forward.13} parent=0 // pred_check_branch
    %442 = sbr.rel (0) target = $region25
  $region24: #{vae_forward.13} parent=0 // pred_region
    _
  $region25: #{vae_forward.13} parent=0 // pred_fallthru
    _
  // Predicated region
  $region26: #{vae_forward.13} parent=0 // pred_check
    _
  $region27: #{vae_forward.13} parent=0 // pred_check_branch
    %444 = sbr.rel (0) target = $region29
  $region28: #{vae_forward.13} parent=0 // pred_region
    _
  $region29: #{vae_forward.13} parent=0 // pred_fallthru
    _

// kernel: vae_forward.14
$region0: #{vae_forward.14}
  #allocation0 [shape = 'u32[]', space=smem, size = 0x4, offset = 0x4, fixed_abs, tag = 'smem constant byte address 0x4 - core index']
  #allocation1 [shape = 'u32[72,128]{1,0:T(1,128)}', space=vmem, size = 0x9000, scoped, tag = 'internal scratch']
  #allocation2 [shape = 'f32[32,128]{1,0:T(8,128)}', space=vmem, size = 0x4000, scoped, tag = 'scratch operand']
  %s0 = inlined_call_operand.vmem [shape: bf16[32,256], index: 0, kind: input, shape index: {}]
  %s1 = inlined_call_operand.vmem [shape: bf16[256,128], index: 1, kind: input, shape index: {}]
  %s2 = inlined_call_operand.vmem [shape: f32[1,128], index: 2, kind: input, shape index: {}]
  %s3 = inlined_call_operand.vmem [shape: bf16[32,128], index: 3, kind: output, shape index: {0}]
  %s4 = inlined_call_operand.vmem [shape: f32[1,2,128], index: 4, kind: output, shape index: {1}]
  %5 = xla_tuple %s3, %s4
  %s6 = sld [smem:[#allocation0]]
  $region30: #{vae_forward.14} parent=0
    _
  %s8 = ssub.s32 1, %s6
  %s9 = scalar_select 0, %s8, %s6
  // Predicated region
  $region2: #{vae_forward.14} parent=0 // pred_check
    _
  $region3: #{vae_forward.14} parent=0 // pred_check_branch
    %11 = sbr.rel (0) target = $region5
  $region4: #{vae_forward.14} parent=0 // pred_region
    _
  $region5: #{vae_forward.14} parent=0 // pred_fallthru
    _
  // Predicated region
  $region6: #{vae_forward.14} parent=0 // pred_check
    _
  $region7: #{vae_forward.14} parent=0 // pred_check_branch
    %13 = sbr.rel (0) target = $region9
  $region8: #{vae_forward.14} parent=0 // pred_region
    _
  $region9: #{vae_forward.14} parent=0 // pred_fallthru
    _
  // Predicated region
  $region10: #{vae_forward.14} parent=0 // pred_check
    _
  $region11: #{vae_forward.14} parent=0 // pred_check_branch
    %15 = sbr.rel (0) target = $region13
  $region12: #{vae_forward.14} parent=0 // pred_region
    _
  $region13: #{vae_forward.14} parent=0 // pred_fallthru
    _
  %v16 = vld [vmem:[%s0] sm:$0xff]
  %v17 = vld [vmem:[%s0 + $0x8] sm:$0xff]
  %v18 = vld [vmem:[%s0 + $0x10] sm:$0xff]
  %v19 = vld [vmem:[%s0 + $0x18] sm:$0xff]
  %v20 = vld [vmem:[%s1] sm:$0xf]
  %v21 = vld [vmem:[%s1 + $0x4] sm:$0xf]
  %v22 = vld [vmem:[%s1 + $0x8] sm:$0xf]
  %v23 = vld [vmem:[%s1 + $0xc] sm:$0xf]
  %v24 = vld [vmem:[%s1 + $0x10] sm:$0xf]
  %v25 = vld [vmem:[%s1 + $0x14] sm:$0xf]
  %v26 = vld [vmem:[%s1 + $0x18] sm:$0xf]
  %v27 = vld [vmem:[%s1 + $0x1c] sm:$0xf]
  %v28 = vld [vmem:[%s1 + $0x20] sm:$0xf]
  %v29 = vld [vmem:[%s1 + $0x24] sm:$0xf]
  %v30 = vld [vmem:[%s1 + $0x28] sm:$0xf]
  %v31 = vld [vmem:[%s1 + $0x2c] sm:$0xf]
  %v32 = vld [vmem:[%s1 + $0x30] sm:$0xf]
  %v33 = vld [vmem:[%s1 + $0x34] sm:$0xf]
  %v34 = vld [vmem:[%s1 + $0x38] sm:$0xf]
  %v35 = vld [vmem:[%s1 + $0x3c] sm:$0xf]
  %v36 = vld [vmem:[%s1 + $0x40] sm:$0xf]
  %v37 = vld [vmem:[%s1 + $0x44] sm:$0xf]
  %v38 = vld [vmem:[%s1 + $0x48] sm:$0xf]
  %v39 = vld [vmem:[%s1 + $0x4c] sm:$0xf]
  %v40 = vld [vmem:[%s1 + $0x50] sm:$0xf]
  %v41 = vld [vmem:[%s1 + $0x54] sm:$0xf]
  %v42 = vld [vmem:[%s1 + $0x58] sm:$0xf]
  %v43 = vld [vmem:[%s1 + $0x5c] sm:$0xf]
  %v44 = vld [vmem:[%s1 + $0x60] sm:$0xf]
  %v45 = vld [vmem:[%s1 + $0x64] sm:$0xf]
  %v46 = vld [vmem:[%s1 + $0x68] sm:$0xf]
  %v47 = vld [vmem:[%s1 + $0x6c] sm:$0xf]
  %v48 = vld [vmem:[%s1 + $0x70] sm:$0xf]
  %v49 = vld [vmem:[%s1 + $0x74] sm:$0xf]
  %v50 = vld [vmem:[%s1 + $0x78] sm:$0xf]
  %v51 = vld [vmem:[%s1 + $0x7c] sm:$0xf]
  %v52 = vld [vmem:[%s2] sm:$0x1]
  %v54 = vperm.slane %v52, 0
  %v60 = vunpack.c.l.b16 %v16
  %v61 = vunpack.c.h.b16 %v16
  %v62 = vunpack.c.l.b16 %v17
  %v63 = vunpack.c.h.b16 %v17
  %v64 = vunpack.c.l.b16 %v18
  %v65 = vunpack.c.h.b16 %v18
  %v66 = vunpack.c.l.b16 %v19
  %v67 = vunpack.c.h.b16 %v19
  %v68 = vpack.c.b16 %v62, %v60
  %v69 = vpack.c.b16 %v63, %v61
  %v70 = vpack.c.b16 %v66, %v64
  %v71 = vpack.c.b16 %v67, %v65
  %v108 = vunpack.c.l.b16 %v20
  %v109 = vunpack.c.l.b16 %v21
  %v110 = vunpack.c.l.b16 %v22
  %v111 = vunpack.c.l.b16 %v23
  %v112 = vunpack.c.l.b16 %v24
  %v113 = vunpack.c.l.b16 %v25
  %v114 = vunpack.c.l.b16 %v26
  %v115 = vunpack.c.l.b16 %v27
  %v116 = vunpack.c.l.b16 %v28
  %v117 = vunpack.c.l.b16 %v29
  %v118 = vunpack.c.l.b16 %v30
  %v119 = vunpack.c.l.b16 %v31
  %v120 = vunpack.c.l.b16 %v32
  %v121 = vunpack.c.l.b16 %v33
  %v122 = vunpack.c.l.b16 %v34
  %v123 = vunpack.c.l.b16 %v35
  %v124 = vunpack.c.l.b16 %v36
  %v125 = vunpack.c.l.b16 %v37
  %v126 = vunpack.c.l.b16 %v38
  %v127 = vunpack.c.l.b16 %v39
  %v128 = vunpack.c.l.b16 %v40
  %v129 = vunpack.c.l.b16 %v41
  %v130 = vunpack.c.l.b16 %v42
  %v131 = vunpack.c.l.b16 %v43
  %v132 = vunpack.c.l.b16 %v44
  %v133 = vunpack.c.l.b16 %v45
  %v134 = vunpack.c.l.b16 %v46
  %v135 = vunpack.c.l.b16 %v47
  %v136 = vunpack.c.l.b16 %v48
  %v137 = vunpack.c.l.b16 %v49
  %v138 = vunpack.c.l.b16 %v50
  %v139 = vunpack.c.l.b16 %v51
  %v140 = vpack.c.b16 %v109, %v108
  %v141 = vpack.c.b16 %v111, %v110
  %v142 = vpack.c.b16 %v113, %v112
  %v143 = vpack.c.b16 %v115, %v114
  %v144 = vpack.c.b16 %v117, %v116
  %v145 = vpack.c.b16 %v119, %v118
  %v146 = vpack.c.b16 %v121, %v120
  %v147 = vpack.c.b16 %v123, %v122
  %v148 = vpack.c.b16 %v125, %v124
  %v149 = vpack.c.b16 %v127, %v126
  %v150 = vpack.c.b16 %v129, %v128
  %v151 = vpack.c.b16 %v131, %v130
  %v152 = vpack.c.b16 %v133, %v132
  %v153 = vpack.c.b16 %v135, %v134
  %v154 = vpack.c.b16 %v137, %v136
  %v155 = vpack.c.b16 %v139, %v138
  %172 = vmatpush.bf16.msra.mxu0 %v147
  %173 = vmatpush.bf16.msra.mxu0 %v146
  %174 = vmatpush.bf16.msra.mxu0 %v145
  %175 = vmatpush.bf16.msra.mxu0 %v144
  %176 = vmatpush.bf16.msra.mxu0 %v143
  %177 = vmatpush.bf16.msra.mxu0 %v142
  %178 = vmatpush.bf16.msra.mxu0 %v141
  %179 = vmatpush.bf16.msra.mxu0 %v140
  %180 = vmatmul.bf16.gmra.mxu0 %v68
  %v181 = vpop.f32.mrf.mxu0
  %v182 = vadd.f32 %v54, %v181
  %v183 = vpop.f32.mrf.mxu0
  %v184 = vadd.f32 %v54, %v183
  %185 = vmatmul.bf16.gmra.mxu0 %v70
  %v186 = vpop.f32.mrf.mxu0
  %v187 = vadd.f32 %v54, %v186
  %v188 = vpop.f32.mrf.mxu0
  %v189 = vadd.f32 %v54, %v188
  %190 = vdwg.mxu0
  %191 = vmatpush.bf16.msra.mxu0 %v155
  %192 = vmatpush.bf16.msra.mxu0 %v154
  %193 = vmatpush.bf16.msra.mxu0 %v153
  %194 = vmatpush.bf16.msra.mxu0 %v152
  %195 = vmatpush.bf16.msra.mxu0 %v151
  %196 = vmatpush.bf16.msra.mxu0 %v150
  %197 = vmatpush.bf16.msra.mxu0 %v149
  %198 = vmatpush.bf16.msra.mxu0 %v148
  %199 = vmatmul.bf16.gmra.mxu0 %v69
  %v200 = vpop.f32.mrf.mxu0
  %v201 = vadd.f32 %v182, %v200
  %v202 = vpop.f32.mrf.mxu0
  %v203 = vadd.f32 %v184, %v202
  %204 = vmatmul.bf16.gmra.mxu0 %v71
  %v205 = vpop.f32.mrf.mxu0
  %v206 = vadd.f32 %v187, %v205
  %v207 = vpop.f32.mrf.mxu0
  %v208 = vadd.f32 %v189, %v207
  %209 = vdwg.mxu0
  %vm210 = vcmp.ge.f32.partialorder %v201, 0.0
  %vm211 = vcmp.ge.f32.partialorder %v203, 0.0
  %vm212 = vcmp.ge.f32.partialorder %v206, 0.0
  %vm213 = vcmp.ge.f32.partialorder %v208, 0.0
  %v214 = vmul.f32 %v201, 0.2
  %v215 = vmul.f32 %v203, 0.2
  %v216 = vmul.f32 %v206, 0.2
  %v217 = vmul.f32 %v208, 0.2
  %v218 = vsel %vm210, %v201, %v214
  %v219 = vsel %vm211, %v203, %v215
  %v220 = vsel %vm212, %v206, %v216
  %v221 = vsel %vm213, %v208, %v217
  %v222 = vpack.c.bf16 %v218, %v218
  %v223 = vpack.c.bf16 %v219, %v219
  %v224 = vpack.c.bf16 %v220, %v220
  %v225 = vpack.c.bf16 %v221, %v221
  %226 = vst [vmem:[%s3] sm:$0xf] %v222
  %227 = vst [vmem:[%s3 + $0x4] sm:$0xf] %v223
  %228 = vst [vmem:[%s3 + $0x8] sm:$0xf] %v224
  %229 = vst [vmem:[%s3 + $0xc] sm:$0xf] %v225
  %s230 = smul.u32 0, 32
  %v231 = vlaneseq
  %v232 = vshrl.u32 %v231, 7
  %v233 = vadd.s32 %v232, 8
  %v234 = vadd.s32 %v232, 16
  %v235 = vadd.s32 %v232, 24
  %v236 = vstv %s230
  %v237 = vadd.s32 %v236, %v232
  %v238 = vadd.s32 %v236, %v233
  %v239 = vadd.s32 %v236, %v234
  %v240 = vadd.s32 %v236, %v235
  %vm241 = vcmp.lt.s32.totalorder %v237, 32
  %vm242 = vcmp.lt.s32.totalorder %v238, 32
  %vm243 = vcmp.lt.s32.totalorder %v239, 32
  %vm244 = vcmp.lt.s32.totalorder %v240, 32
  %v245 = vsel %vm241, 1, 0
  %v246 = vsel %vm242, 1, 0
  %v247 = vsel %vm243, 1, 0
  %v248 = vsel %vm244, 1, 0
  %v249 = vcvt.s32.f32 %v245
  %v250 = vcvt.s32.f32 %v246
  %v251 = vcvt.s32.f32 %v247
  %v252 = vcvt.s32.f32 %v248
  %v253 = vmul.f32 %v218, %v249
  %v254 = vmul.f32 %v219, %v250
  %v255 = vmul.f32 %v220, %v251
  %v256 = vmul.f32 %v221, %v252
  %v257 = vadd.f32 %v253, %v254
  %v258 = vadd.f32 %v257, %v255
  %v259 = vadd.f32 %v258, %v256
  %v260 = vrot.slane %v259, 4
  %v261 = vadd.f32 %v259, %v260
  %v262 = vrot.slane %v261, 2
  %v263 = vadd.f32 %v261, %v262
  %v264 = vrot.slane %v263, 1
  %v265 = vadd.f32 %v263, %v264
  %v266 = vmul.f32 %v253, %v253
  %v267 = vmul.f32 %v254, %v254
  %v268 = vmul.f32 %v255, %v255
  %v269 = vmul.f32 %v256, %v256
  %v270 = vadd.f32 %v266, %v267
  %v271 = vadd.f32 %v270, %v268
  %v272 = vadd.f32 %v271, %v269
  %v273 = vrot.slane %v272, 4
  %v274 = vadd.f32 %v272, %v273
  %v275 = vrot.slane %v274, 2
  %v276 = vadd.f32 %v274, %v275
  %v277 = vrot.slane %v276, 1
  %v278 = vadd.f32 %v276, %v277
  %vm279 = vcmask 1040384
  %v280 = vsel %vm279, %v265, %v278
  %281 = vst [vmem:[%s4] sm:$0x3] %v280
  // Predicated region
  $region14: #{vae_forward.14} parent=0 // pred_check
    _
  $region15: #{vae_forward.14} parent=0 // pred_check_branch
    %283 = sbr.rel (0) target = $region17
  $region16: #{vae_forward.14} parent=0 // pred_region
    _
  $region17: #{vae_forward.14} parent=0 // pred_fallthru
    _
  // Predicated region
  $region18: #{vae_forward.14} parent=0 // pred_check
    _
  $region19: #{vae_forward.14} parent=0 // pred_check_branch
    %285 = sbr.rel (0) target = $region21
  $region20: #{vae_forward.14} parent=0 // pred_region
    _
  $region21: #{vae_forward.14} parent=0 // pred_fallthru
    _
  // Predicated region
  $region22: #{vae_forward.14} parent=0 // pred_check
    _
  $region23: #{vae_forward.14} parent=0 // pred_check_branch
    %287 = sbr.rel (0) target = $region25
  $region24: #{vae_forward.14} parent=0 // pred_region
    _
  $region25: #{vae_forward.14} parent=0 // pred_fallthru
    _
  // Predicated region
  $region26: #{vae_forward.14} parent=0 // pred_check
    _
  $region27: #{vae_forward.14} parent=0 // pred_check_branch
    %289 = sbr.rel (0) target = $region29
  $region28: #{vae_forward.14} parent=0 // pred_region
    _
  $region29: #{vae_forward.14} parent=0 // pred_fallthru
    _

// kernel: vae_forward.15
$region0: #{vae_forward.15}
  #allocation0 [shape = 'u32[]', space=smem, size = 0x4, offset = 0x4, fixed_abs, tag = 'smem constant byte address 0x4 - core index']
  #allocation1 [shape = 'u32[72,128]{1,0:T(1,128)}', space=vmem, size = 0x9000, scoped, tag = 'internal scratch']
  #allocation2 [shape = 'f32[16,128]{1,0:T(8,128)}', space=vmem, size = 0x2000, scoped, tag = 'scratch operand']
  %s0 = inlined_call_operand.vmem [shape: bf16[16,512], index: 0, kind: input, shape index: {}]
  %s1 = inlined_call_operand.vmem [shape: bf16[512,128], index: 1, kind: input, shape index: {}]
  %s2 = inlined_call_operand.vmem [shape: f32[1,128], index: 2, kind: input, shape index: {}]
  %s3 = inlined_call_operand.vmem [shape: bf16[16,128], index: 3, kind: output, shape index: {0}]
  %s4 = inlined_call_operand.vmem [shape: f32[1,2,128], index: 4, kind: output, shape index: {1}]
  %5 = xla_tuple %s3, %s4
  %s6 = sld [smem:[#allocation0]]
  $region30: #{vae_forward.15} parent=0
    _
  %s8 = ssub.s32 1, %s6
  %s9 = scalar_select 0, %s8, %s6
  // Predicated region
  $region2: #{vae_forward.15} parent=0 // pred_check
    _
  $region3: #{vae_forward.15} parent=0 // pred_check_branch
    %11 = sbr.rel (0) target = $region5
  $region4: #{vae_forward.15} parent=0 // pred_region
    _
  $region5: #{vae_forward.15} parent=0 // pred_fallthru
    _
  // Predicated region
  $region6: #{vae_forward.15} parent=0 // pred_check
    _
  $region7: #{vae_forward.15} parent=0 // pred_check_branch
    %13 = sbr.rel (0) target = $region9
  $region8: #{vae_forward.15} parent=0 // pred_region
    _
  $region9: #{vae_forward.15} parent=0 // pred_fallthru
    _
  // Predicated region
  $region10: #{vae_forward.15} parent=0 // pred_check
    _
  $region11: #{vae_forward.15} parent=0 // pred_check_branch
    %15 = sbr.rel (0) target = $region13
  $region12: #{vae_forward.15} parent=0 // pred_region
    _
  $region13: #{vae_forward.15} parent=0 // pred_fallthru
    _
  %v16 = vld [vmem:[%s0] sm:$0xff]
  %v17 = vld [vmem:[%s0 + $0x8] sm:$0xff]
  %v18 = vld [vmem:[%s0 + $0x10] sm:$0xff]
  %v19 = vld [vmem:[%s0 + $0x18] sm:$0xff]
  %v20 = vld [vmem:[%s1] sm:$0xf]
  %v21 = vld [vmem:[%s1 + $0x4] sm:$0xf]
  %v22 = vld [vmem:[%s1 + $0x8] sm:$0xf]
  %v23 = vld [vmem:[%s1 + $0xc] sm:$0xf]
  %v24 = vld [vmem:[%s1 + $0x10] sm:$0xf]
  %v25 = vld [vmem:[%s1 + $0x14] sm:$0xf]
  %v26 = vld [vmem:[%s1 + $0x18] sm:$0xf]
  %v27 = vld [vmem:[%s1 + $0x1c] sm:$0xf]
  %v28 = vld [vmem:[%s1 + $0x20] sm:$0xf]
  %v29 = vld [vmem:[%s1 + $0x24] sm:$0xf]
  %v30 = vld [vmem:[%s1 + $0x28] sm:$0xf]
  %v31 = vld [vmem:[%s1 + $0x2c] sm:$0xf]
  %v32 = vld [vmem:[%s1 + $0x30] sm:$0xf]
  %v33 = vld [vmem:[%s1 + $0x34] sm:$0xf]
  %v34 = vld [vmem:[%s1 + $0x38] sm:$0xf]
  %v35 = vld [vmem:[%s1 + $0x3c] sm:$0xf]
  %v36 = vld [vmem:[%s1 + $0x40] sm:$0xf]
  %v37 = vld [vmem:[%s1 + $0x44] sm:$0xf]
  %v38 = vld [vmem:[%s1 + $0x48] sm:$0xf]
  %v39 = vld [vmem:[%s1 + $0x4c] sm:$0xf]
  %v40 = vld [vmem:[%s1 + $0x50] sm:$0xf]
  %v41 = vld [vmem:[%s1 + $0x54] sm:$0xf]
  %v42 = vld [vmem:[%s1 + $0x58] sm:$0xf]
  %v43 = vld [vmem:[%s1 + $0x5c] sm:$0xf]
  %v44 = vld [vmem:[%s1 + $0x60] sm:$0xf]
  %v45 = vld [vmem:[%s1 + $0x64] sm:$0xf]
  %v46 = vld [vmem:[%s1 + $0x68] sm:$0xf]
  %v47 = vld [vmem:[%s1 + $0x6c] sm:$0xf]
  %v48 = vld [vmem:[%s1 + $0x70] sm:$0xf]
  %v49 = vld [vmem:[%s1 + $0x74] sm:$0xf]
  %v50 = vld [vmem:[%s1 + $0x78] sm:$0xf]
  %v51 = vld [vmem:[%s1 + $0x7c] sm:$0xf]
  %v52 = vld [vmem:[%s1 + $0x80] sm:$0xf]
  %v53 = vld [vmem:[%s1 + $0x84] sm:$0xf]
  %v54 = vld [vmem:[%s1 + $0x88] sm:$0xf]
  %v55 = vld [vmem:[%s1 + $0x8c] sm:$0xf]
  %v56 = vld [vmem:[%s1 + $0x90] sm:$0xf]
  %v57 = vld [vmem:[%s1 + $0x94] sm:$0xf]
  %v58 = vld [vmem:[%s1 + $0x98] sm:$0xf]
  %v59 = vld [vmem:[%s1 + $0x9c] sm:$0xf]
  %v60 = vld [vmem:[%s1 + $0xa0] sm:$0xf]
  %v61 = vld [vmem:[%s1 + $0xa4] sm:$0xf]
  %v62 = vld [vmem:[%s1 + $0xa8] sm:$0xf]
  %v63 = vld [vmem:[%s1 + $0xac] sm:$0xf]
  %v64 = vld [vmem:[%s1 + $0xb0] sm:$0xf]
  %v65 = vld [vmem:[%s1 + $0xb4] sm:$0xf]
  %v66 = vld [vmem:[%s1 + $0xb8] sm:$0xf]
  %v67 = vld [vmem:[%s1 + $0xbc] sm:$0xf]
  %v68 = vld [vmem:[%s1 + $0xc0] sm:$0xf]
  %v69 = vld [vmem:[%s1 + $0xc4] sm:$0xf]
  %v70 = vld [vmem:[%s1 + $0xc8] sm:$0xf]
  %v71 = vld [vmem:[%s1 + $0xcc] sm:$0xf]
  %v72 = vld [vmem:[%s1 + $0xd0] sm:$0xf]
  %v73 = vld [vmem:[%s1 + $0xd4] sm:$0xf]
  %v74 = vld [vmem:[%s1 + $0xd8] sm:$0xf]
  %v75 = vld [vmem:[%s1 + $0xdc] sm:$0xf]
  %v76 = vld [vmem:[%s1 + $0xe0] sm:$0xf]
  %v77 = vld [vmem:[%s1 + $0xe4] sm:$0xf]
  %v78 = vld [vmem:[%s1 + $0xe8] sm:$0xf]
  %v79 = vld [vmem:[%s1 + $0xec] sm:$0xf]
  %v80 = vld [vmem:[%s1 + $0xf0] sm:$0xf]
  %v81 = vld [vmem:[%s1 + $0xf4] sm:$0xf]
  %v82 = vld [vmem:[%s1 + $0xf8] sm:$0xf]
  %v83 = vld [vmem:[%s1 + $0xfc] sm:$0xf]
  %v84 = vld [vmem:[%s2] sm:$0x1]
  %v86 = vperm.slane %v84, 0
  %v92 = vunpack.c.l.b16 %v16
  %v93 = vunpack.c.h.b16 %v16
  %v94 = vunpack.c.l.b16 %v17
  %v95 = vunpack.c.h.b16 %v17
  %v96 = vunpack.c.l.b16 %v18
  %v97 = vunpack.c.h.b16 %v18
  %v98 = vunpack.c.l.b16 %v19
  %v99 = vunpack.c.h.b16 %v19
  %v100 = vpack.c.b16 %v96, %v92
  %v101 = vpack.c.b16 %v97, %v93
  %v102 = vpack.c.b16 %v98, %v94
  %v103 = vpack.c.b16 %v99, %v95
  %v172 = vunpack.c.l.b16 %v20
  %v173 = vunpack.c.l.b16 %v21
  %v174 = vunpack.c.l.b16 %v22
  %v175 = vunpack.c.l.b16 %v23
  %v176 = vunpack.c.l.b16 %v24
  %v177 = vunpack.c.l.b16 %v25
  %v178 = vunpack.c.l.b16 %v26
  %v179 = vunpack.c.l.b16 %v27
  %v180 = vunpack.c.l.b16 %v28
  %v181 = vunpack.c.l.b16 %v29
  %v182 = vunpack.c.l.b16 %v30
  %v183 = vunpack.c.l.b16 %v31
  %v184 = vunpack.c.l.b16 %v32
  %v185 = vunpack.c.l.b16 %v33
  %v186 = vunpack.c.l.b16 %v34
  %v187 = vunpack.c.l.b16 %v35
  %v188 = vunpack.c.l.b16 %v36
  %v189 = vunpack.c.l.b16 %v37
  %v190 = vunpack.c.l.b16 %v38
  %v191 = vunpack.c.l.b16 %v39
  %v192 = vunpack.c.l.b16 %v40
  %v193 = vunpack.c.l.b16 %v41
  %v194 = vunpack.c.l.b16 %v42
  %v195 = vunpack.c.l.b16 %v43
  %v196 = vunpack.c.l.b16 %v44
  %v197 = vunpack.c.l.b16 %v45
  %v198 = vunpack.c.l.b16 %v46
  %v199 = vunpack.c.l.b16 %v47
  %v200 = vunpack.c.l.b16 %v48
  %v201 = vunpack.c.l.b16 %v49
  %v202 = vunpack.c.l.b16 %v50
  %v203 = vunpack.c.l.b16 %v51
  %v204 = vunpack.c.l.b16 %v52
  %v205 = vunpack.c.l.b16 %v53
  %v206 = vunpack.c.l.b16 %v54
  %v207 = vunpack.c.l.b16 %v55
  %v208 = vunpack.c.l.b16 %v56
  %v209 = vunpack.c.l.b16 %v57
  %v210 = vunpack.c.l.b16 %v58
  %v211 = vunpack.c.l.b16 %v59
  %v212 = vunpack.c.l.b16 %v60
  %v213 = vunpack.c.l.b16 %v61
  %v214 = vunpack.c.l.b16 %v62
  %v215 = vunpack.c.l.b16 %v63
  %v216 = vunpack.c.l.b16 %v64
  %v217 = vunpack.c.l.b16 %v65
  %v218 = vunpack.c.l.b16 %v66
  %v219 = vunpack.c.l.b16 %v67
  %v220 = vunpack.c.l.b16 %v68
  %v221 = vunpack.c.l.b16 %v69
  %v222 = vunpack.c.l.b16 %v70
  %v223 = vunpack.c.l.b16 %v71
  %v224 = vunpack.c.l.b16 %v72
  %v225 = vunpack.c.l.b16 %v73
  %v226 = vunpack.c.l.b16 %v74
  %v227 = vunpack.c.l.b16 %v75
  %v228 = vunpack.c.l.b16 %v76
  %v229 = vunpack.c.l.b16 %v77
  %v230 = vunpack.c.l.b16 %v78
  %v231 = vunpack.c.l.b16 %v79
  %v232 = vunpack.c.l.b16 %v80
  %v233 = vunpack.c.l.b16 %v81
  %v234 = vunpack.c.l.b16 %v82
  %v235 = vunpack.c.l.b16 %v83
  %v236 = vpack.c.b16 %v173, %v172
  %v237 = vpack.c.b16 %v175, %v174
  %v238 = vpack.c.b16 %v177, %v176
  %v239 = vpack.c.b16 %v179, %v178
  %v240 = vpack.c.b16 %v181, %v180
  %v241 = vpack.c.b16 %v183, %v182
  %v242 = vpack.c.b16 %v185, %v184
  %v243 = vpack.c.b16 %v187, %v186
  %v244 = vpack.c.b16 %v189, %v188
  %v245 = vpack.c.b16 %v191, %v190
  %v246 = vpack.c.b16 %v193, %v192
  %v247 = vpack.c.b16 %v195, %v194
  %v248 = vpack.c.b16 %v197, %v196
  %v249 = vpack.c.b16 %v199, %v198
  %v250 = vpack.c.b16 %v201, %v200
  %v251 = vpack.c.b16 %v203, %v202
  %v252 = vpack.c.b16 %v205, %v204
  %v253 = vpack.c.b16 %v207, %v206
  %v254 = vpack.c.b16 %v209, %v208
  %v255 = vpack.c.b16 %v211, %v210
  %v256 = vpack.c.b16 %v213, %v212
  %v257 = vpack.c.b16 %v215, %v214
  %v258 = vpack.c.b16 %v217, %v216
  %v259 = vpack.c.b16 %v219, %v218
  %v260 = vpack.c.b16 %v221, %v220
  %v261 = vpack.c.b16 %v223, %v222
  %v262 = vpack.c.b16 %v225, %v224
  %v263 = vpack.c.b16 %v227, %v226
  %v264 = vpack.c.b16 %v229, %v228
  %v265 = vpack.c.b16 %v231, %v230
  %v266 = vpack.c.b16 %v233, %v232
  %v267 = vpack.c.b16 %v235, %v234
  %300 = vmatpush.bf16.msra.mxu0 %v243
  %301 = vmatpush.bf16.msra.mxu0 %v242
  %302 = vmatpush.bf16.msra.mxu0 %v241
  %303 = vmatpush.bf16.msra.mxu0 %v240
  %304 = vmatpush.bf16.msra.mxu0 %v239
  %305 = vmatpush.bf16.msra.mxu0 %v238
  %306 = vmatpush.bf16.msra.mxu0 %v237
  %307 = vmatpush.bf16.msra.mxu0 %v236
  %308 = vmatmul.bf16.gmra.mxu0 %v100
  %v309 = vpop.f32.mrf.mxu0
  %v310 = vadd.f32 %v86, %v309
  %v311 = vpop.f32.mrf.mxu0
  %v312 = vadd.f32 %v86, %v311
  %313 = vdwg.mxu0
  %314 = vmatpush.bf16.msra.mxu0 %v251
  %315 = vmatpush.bf16.msra.mxu0 %v250
  %316 = vmatpush.bf16.msra.mxu0 %v249
  %317 = vmatpush.bf16.msra.mxu0 %v248
  %318 = vmatpush.bf16.msra.mxu0 %v247
  %319 = vmatpush.bf16.msra.mxu0 %v246
  %320 = vmatpush.bf16.msra.mxu0 %v245
  %321 = vmatpush.bf16.msra.mxu0 %v244
  %322 = vmatmul.bf16.gmra.mxu0 %v101
  %v323 = vpop.f32.mrf.mxu0
  %v324 = vadd.f32 %v310, %v323
  %v325 = vpop.f32.mrf.mxu0
  %v326 = vadd.f32 %v312, %v325
  %327 = vdwg.mxu0
  %328 = vmatpush.bf16.msra.mxu0 %v259
  %329 = vmatpush.bf16.msra.mxu0 %v258
  %330 = vmatpush.bf16.msra.mxu0 %v257
  %331 = vmatpush.bf16.msra.mxu0 %v256
  %332 = vmatpush.bf16.msra.mxu0 %v255
  %333 = vmatpush.bf16.msra.mxu0 %v254
  %334 = vmatpush.bf16.msra.mxu0 %v253
  %335 = vmatpush.bf16.msra.mxu0 %v252
  %336 = vmatmul.bf16.gmra.mxu0 %v102
  %v337 = vpop.f32.mrf.mxu0
  %v338 = vadd.f32 %v324, %v337
  %v339 = vpop.f32.mrf.mxu0
  %v340 = vadd.f32 %v326, %v339
  %341 = vdwg.mxu0
  %342 = vmatpush.bf16.msra.mxu0 %v267
  %343 = vmatpush.bf16.msra.mxu0 %v266
  %344 = vmatpush.bf16.msra.mxu0 %v265
  %345 = vmatpush.bf16.msra.mxu0 %v264
  %346 = vmatpush.bf16.msra.mxu0 %v263
  %347 = vmatpush.bf16.msra.mxu0 %v262
  %348 = vmatpush.bf16.msra.mxu0 %v261
  %349 = vmatpush.bf16.msra.mxu0 %v260
  %350 = vmatmul.bf16.gmra.mxu0 %v103
  %v351 = vpop.f32.mrf.mxu0
  %v352 = vadd.f32 %v338, %v351
  %v353 = vpop.f32.mrf.mxu0
  %v354 = vadd.f32 %v340, %v353
  %355 = vdwg.mxu0
  %vm356 = vcmp.ge.f32.partialorder %v352, 0.0
  %vm357 = vcmp.ge.f32.partialorder %v354, 0.0
  %v358 = vmul.f32 %v352, 0.2
  %v359 = vmul.f32 %v354, 0.2
  %v360 = vsel %vm356, %v352, %v358
  %v361 = vsel %vm357, %v354, %v359
  %v362 = vpack.c.bf16 %v360, %v360
  %v363 = vpack.c.bf16 %v361, %v361
  %364 = vst [vmem:[%s3] sm:$0xf] %v362
  %365 = vst [vmem:[%s3 + $0x4] sm:$0xf] %v363
  %s366 = smul.u32 0, 16
  %v367 = vlaneseq
  %v368 = vshrl.u32 %v367, 7
  %v369 = vadd.s32 %v368, 8
  %v370 = vstv %s366
  %v371 = vadd.s32 %v370, %v368
  %v372 = vadd.s32 %v370, %v369
  %vm373 = vcmp.lt.s32.totalorder %v371, 8
  %vm374 = vcmp.lt.s32.totalorder %v372, 8
  %v375 = vsel %vm373, 1, 0
  %v376 = vsel %vm374, 1, 0
  %v377 = vcvt.s32.f32 %v375
  %v378 = vcvt.s32.f32 %v376
  %v379 = vmul.f32 %v360, %v377
  %v380 = vmul.f32 %v361, %v378
  %v381 = vadd.f32 %v379, %v380
  %v382 = vrot.slane %v381, 4
  %v383 = vadd.f32 %v381, %v382
  %v384 = vrot.slane %v383, 2
  %v385 = vadd.f32 %v383, %v384
  %v386 = vrot.slane %v385, 1
  %v387 = vadd.f32 %v385, %v386
  %v388 = vmul.f32 %v379, %v379
  %v389 = vmul.f32 %v380, %v380
  %v390 = vadd.f32 %v388, %v389
  %v391 = vrot.slane %v390, 4
  %v392 = vadd.f32 %v390, %v391
  %v393 = vrot.slane %v392, 2
  %v394 = vadd.f32 %v392, %v393
  %v395 = vrot.slane %v394, 1
  %v396 = vadd.f32 %v394, %v395
  %vm397 = vcmask 1040384
  %v398 = vsel %vm397, %v387, %v396
  %399 = vst [vmem:[%s4] sm:$0x3] %v398
  // Predicated region
  $region14: #{vae_forward.15} parent=0 // pred_check
    _
  $region15: #{vae_forward.15} parent=0 // pred_check_branch
    %401 = sbr.rel (0) target = $region17
  $region16: #{vae_forward.15} parent=0 // pred_region
    _
  $region17: #{vae_forward.15} parent=0 // pred_fallthru
    _
  // Predicated region
  $region18: #{vae_forward.15} parent=0 // pred_check
    _
  $region19: #{vae_forward.15} parent=0 // pred_check_branch
    %403 = sbr.rel (0) target = $region21
  $region20: #{vae_forward.15} parent=0 // pred_region
    _
  $region21: #{vae_forward.15} parent=0 // pred_fallthru
    _
  // Predicated region
  $region22: #{vae_forward.15} parent=0 // pred_check
    _
  $region23: #{vae_forward.15} parent=0 // pred_check_branch
    %405 = sbr.rel (0) target = $region25
  $region24: #{vae_forward.15} parent=0 // pred_region
    _
  $region25: #{vae_forward.15} parent=0 // pred_fallthru
    _
  // Predicated region
  $region26: #{vae_forward.15} parent=0 // pred_check
    _
  $region27: #{vae_forward.15} parent=0 // pred_check_branch
    %407 = sbr.rel (0) target = $region29
  $region28: #{vae_forward.15} parent=0 // pred_region
    _
  $region29: #{vae_forward.15} parent=0 // pred_fallthru
    _

// kernel: vae_forward.17
$region0: #{vae_forward.17}
  #allocation0 [shape = 'u32[]', space=smem, size = 0x4, offset = 0x4, fixed_abs, tag = 'smem constant byte address 0x4 - core index']
  #allocation1 [shape = 'u32[72,128]{1,0:T(1,128)}', space=vmem, size = 0x9000, scoped, tag = 'internal scratch']
  %s0 = inlined_call_operand.vmem [shape: f32[2,16], index: 0, kind: input, shape index: {}]
  %s1 = inlined_call_operand.vmem [shape: f32[2,16], index: 1, kind: input, shape index: {}]
  %s2 = inlined_call_operand.vmem [shape: f32[2,16], index: 2, kind: input, shape index: {}]
  %s3 = inlined_call_operand.vmem [shape: f32[2,16], index: 3, kind: output, shape index: {0}]
  %s4 = inlined_call_operand.vmem [shape: f32[2,1], index: 4, kind: output, shape index: {1}]
  %5 = xla_tuple %s3, %s4
  %s6 = sld [smem:[#allocation0]]
  $region30: #{vae_forward.17} parent=0
    _
  %s8 = ssub.s32 1, %s6
  %s9 = scalar_select 0, %s8, %s6
  // Predicated region
  $region2: #{vae_forward.17} parent=0 // pred_check
    _
  $region3: #{vae_forward.17} parent=0 // pred_check_branch
    %11 = sbr.rel (0) target = $region5
  $region4: #{vae_forward.17} parent=0 // pred_region
    _
  $region5: #{vae_forward.17} parent=0 // pred_fallthru
    _
  // Predicated region
  $region6: #{vae_forward.17} parent=0 // pred_check
    _
  $region7: #{vae_forward.17} parent=0 // pred_check_branch
    %13 = sbr.rel (0) target = $region9
  $region8: #{vae_forward.17} parent=0 // pred_region
    _
  $region9: #{vae_forward.17} parent=0 // pred_fallthru
    _
  // Predicated region
  $region10: #{vae_forward.17} parent=0 // pred_check
    _
  $region11: #{vae_forward.17} parent=0 // pred_check_branch
    %15 = sbr.rel (0) target = $region13
  $region12: #{vae_forward.17} parent=0 // pred_region
    _
  $region13: #{vae_forward.17} parent=0 // pred_fallthru
    _
  %v16 = vld [vmem:[%s0] sm:$0x3]
  %v17 = vld [vmem:[%s1] sm:$0x3]
  %v18 = vmax.f32 %v17, -30.0
  %v19 = vmin.f32 %v18, 20.0
  %v20 = vmul.f32 %v19, 0.5
  %v21 = vmul.f32 %v20, 1.442695
  %v22 = vpow.pop %v21
  %v23 = vmul.f32 %v19, 1.442695
  %v24 = vpow.pop %v23
  %v25 = vld [vmem:[%s2] sm:$0x3]
  %v26 = vmul.f32 %v22, %v25
  %v27 = vadd.f32 %v16, %v26
  %vm28 = vcmask 123904
  %29 = vst.msk [vmem:[%s3] sm:$0x3] %vm28, %v27
  %v30 = vmul.f32 %v16, %v16
  %v31 = vadd.f32 %v24, %v30
  %v32 = vsub.f32 %v31, 1.0
  %v33 = vsub.f32 %v32, %v19
  %v34 = vsel %vm28, %v33, 0.0
  %35 = vadd.xlane.f32.xlu0 %v34
  %v36 = vpop.xlane.xlu0 %35
  %v37 = vmul.f32 %v36, 0.5
  %vm38 = vcmask 1024
  %39 = vst.msk [vmem:[%s4] sm:$0x3] %vm38, %v37
  // Predicated region
  $region14: #{vae_forward.17} parent=0 // pred_check
    _
  $region15: #{vae_forward.17} parent=0 // pred_check_branch
    %41 = sbr.rel (0) target = $region17
  $region16: #{vae_forward.17} parent=0 // pred_region
    _
  $region17: #{vae_forward.17} parent=0 // pred_fallthru
    _
  // Predicated region
  $region18: #{vae_forward.17} parent=0 // pred_check
    _
  $region19: #{vae_forward.17} parent=0 // pred_check_branch
    %43 = sbr.rel (0) target = $region21
  $region20: #{vae_forward.17} parent=0 // pred_region
    _
  $region21: #{vae_forward.17} parent=0 // pred_fallthru
    _
  // Predicated region
  $region22: #{vae_forward.17} parent=0 // pred_check
    _
  $region23: #{vae_forward.17} parent=0 // pred_check_branch
    %45 = sbr.rel (0) target = $region25
  $region24: #{vae_forward.17} parent=0 // pred_region
    _
  $region25: #{vae_forward.17} parent=0 // pred_fallthru
    _
  // Predicated region
  $region26: #{vae_forward.17} parent=0 // pred_check
    _
  $region27: #{vae_forward.17} parent=0 // pred_check_branch
    %47 = sbr.rel (0) target = $region29
  $region28: #{vae_forward.17} parent=0 // pred_region
    _
  $region29: #{vae_forward.17} parent=0 // pred_fallthru
    _

// kernel: vae_forward.16
$region0: #{vae_forward.16}
  #allocation0 [shape = 'u32[]', space=smem, size = 0x4, offset = 0x4, fixed_abs, tag = 'smem constant byte address 0x4 - core index']
  #allocation1 [shape = 'u32[72,128]{1,0:T(1,128)}', space=vmem, size = 0x9000, scoped, tag = 'internal scratch']
  #allocation2 [shape = 'f32[16,128]{1,0:T(8,128)}', space=vmem, size = 0x2000, scoped, tag = 'scratch operand']
  %s0 = inlined_call_operand.vmem [shape: bf16[16,256], index: 0, kind: input, shape index: {}]
  %s1 = inlined_call_operand.vmem [shape: bf16[256,128], index: 1, kind: input, shape index: {}]
  %s2 = inlined_call_operand.vmem [shape: f32[1,128], index: 2, kind: input, shape index: {}]
  %s3 = inlined_call_operand.vmem [shape: f32[16,128], index: 3, kind: output, shape index: {}]
  %s4 = sld [smem:[#allocation0]]
  $region22: #{vae_forward.16} parent=0
    _
  %s6 = ssub.s32 1, %s4
  %s7 = scalar_select 0, %s6, %s4
  // Predicated region
  $region2: #{vae_forward.16} parent=0 // pred_check
    _
  $region3: #{vae_forward.16} parent=0 // pred_check_branch
    %9 = sbr.rel (0) target = $region5
  $region4: #{vae_forward.16} parent=0 // pred_region
    _
  $region5: #{vae_forward.16} parent=0 // pred_fallthru
    _
  // Predicated region
  $region6: #{vae_forward.16} parent=0 // pred_check
    _
  $region7: #{vae_forward.16} parent=0 // pred_check_branch
    %11 = sbr.rel (0) target = $region9
  $region8: #{vae_forward.16} parent=0 // pred_region
    _
  $region9: #{vae_forward.16} parent=0 // pred_fallthru
    _
  // Predicated region
  $region10: #{vae_forward.16} parent=0 // pred_check
    _
  $region11: #{vae_forward.16} parent=0 // pred_check_branch
    %13 = sbr.rel (0) target = $region13
  $region12: #{vae_forward.16} parent=0 // pred_region
    _
  $region13: #{vae_forward.16} parent=0 // pred_fallthru
    _
  %v14 = vld [vmem:[%s0] sm:$0xff]
  %v15 = vld [vmem:[%s0 + $0x8] sm:$0xff]
  %v16 = vld [vmem:[%s1] sm:$0xf]
  %v17 = vld [vmem:[%s1 + $0x4] sm:$0xf]
  %v18 = vld [vmem:[%s1 + $0x8] sm:$0xf]
  %v19 = vld [vmem:[%s1 + $0xc] sm:$0xf]
  %v20 = vld [vmem:[%s1 + $0x10] sm:$0xf]
  %v21 = vld [vmem:[%s1 + $0x14] sm:$0xf]
  %v22 = vld [vmem:[%s1 + $0x18] sm:$0xf]
  %v23 = vld [vmem:[%s1 + $0x1c] sm:$0xf]
  %v24 = vld [vmem:[%s1 + $0x20] sm:$0xf]
  %v25 = vld [vmem:[%s1 + $0x24] sm:$0xf]
  %v26 = vld [vmem:[%s1 + $0x28] sm:$0xf]
  %v27 = vld [vmem:[%s1 + $0x2c] sm:$0xf]
  %v28 = vld [vmem:[%s1 + $0x30] sm:$0xf]
  %v29 = vld [vmem:[%s1 + $0x34] sm:$0xf]
  %v30 = vld [vmem:[%s1 + $0x38] sm:$0xf]
  %v31 = vld [vmem:[%s1 + $0x3c] sm:$0xf]
  %v32 = vld [vmem:[%s1 + $0x40] sm:$0xf]
  %v33 = vld [vmem:[%s1 + $0x44] sm:$0xf]
  %v34 = vld [vmem:[%s1 + $0x48] sm:$0xf]
  %v35 = vld [vmem:[%s1 + $0x4c] sm:$0xf]
  %v36 = vld [vmem:[%s1 + $0x50] sm:$0xf]
  %v37 = vld [vmem:[%s1 + $0x54] sm:$0xf]
  %v38 = vld [vmem:[%s1 + $0x58] sm:$0xf]
  %v39 = vld [vmem:[%s1 + $0x5c] sm:$0xf]
  %v40 = vld [vmem:[%s1 + $0x60] sm:$0xf]
  %v41 = vld [vmem:[%s1 + $0x64] sm:$0xf]
  %v42 = vld [vmem:[%s1 + $0x68] sm:$0xf]
  %v43 = vld [vmem:[%s1 + $0x6c] sm:$0xf]
  %v44 = vld [vmem:[%s1 + $0x70] sm:$0xf]
  %v45 = vld [vmem:[%s1 + $0x74] sm:$0xf]
  %v46 = vld [vmem:[%s1 + $0x78] sm:$0xf]
  %v47 = vld [vmem:[%s1 + $0x7c] sm:$0xf]
  %v48 = vld [vmem:[%s2] sm:$0x1]
  %v50 = vperm.slane %v48, 0
  %v54 = vunpack.c.l.b16 %v14
  %v55 = vunpack.c.h.b16 %v14
  %v56 = vunpack.c.l.b16 %v15
  %v57 = vunpack.c.h.b16 %v15
  %v58 = vpack.c.b16 %v56, %v54
  %v59 = vpack.c.b16 %v57, %v55
  %v94 = vunpack.c.l.b16 %v16
  %v95 = vunpack.c.l.b16 %v17
  %v96 = vunpack.c.l.b16 %v18
  %v97 = vunpack.c.l.b16 %v19
  %v98 = vunpack.c.l.b16 %v20
  %v99 = vunpack.c.l.b16 %v21
  %v100 = vunpack.c.l.b16 %v22
  %v101 = vunpack.c.l.b16 %v23
  %v102 = vunpack.c.l.b16 %v24
  %v103 = vunpack.c.l.b16 %v25
  %v104 = vunpack.c.l.b16 %v26
  %v105 = vunpack.c.l.b16 %v27
  %v106 = vunpack.c.l.b16 %v28
  %v107 = vunpack.c.l.b16 %v29
  %v108 = vunpack.c.l.b16 %v30
  %v109 = vunpack.c.l.b16 %v31
  %v110 = vunpack.c.l.b16 %v32
  %v111 = vunpack.c.l.b16 %v33
  %v112 = vunpack.c.l.b16 %v34
  %v113 = vunpack.c.l.b16 %v35
  %v114 = vunpack.c.l.b16 %v36
  %v115 = vunpack.c.l.b16 %v37
  %v116 = vunpack.c.l.b16 %v38
  %v117 = vunpack.c.l.b16 %v39
  %v118 = vunpack.c.l.b16 %v40
  %v119 = vunpack.c.l.b16 %v41
  %v120 = vunpack.c.l.b16 %v42
  %v121 = vunpack.c.l.b16 %v43
  %v122 = vunpack.c.l.b16 %v44
  %v123 = vunpack.c.l.b16 %v45
  %v124 = vunpack.c.l.b16 %v46
  %v125 = vunpack.c.l.b16 %v47
  %v126 = vpack.c.b16 %v95, %v94
  %v127 = vpack.c.b16 %v97, %v96
  %v128 = vpack.c.b16 %v99, %v98
  %v129 = vpack.c.b16 %v101, %v100
  %v130 = vpack.c.b16 %v103, %v102
  %v131 = vpack.c.b16 %v105, %v104
  %v132 = vpack.c.b16 %v107, %v106
  %v133 = vpack.c.b16 %v109, %v108
  %v134 = vpack.c.b16 %v111, %v110
  %v135 = vpack.c.b16 %v113, %v112
  %v136 = vpack.c.b16 %v115, %v114
  %v137 = vpack.c.b16 %v117, %v116
  %v138 = vpack.c.b16 %v119, %v118
  %v139 = vpack.c.b16 %v121, %v120
  %v140 = vpack.c.b16 %v123, %v122
  %v141 = vpack.c.b16 %v125, %v124
  %158 = vmatpush.bf16.msra.mxu0 %v133
  %159 = vmatpush.bf16.msra.mxu0 %v132
  %160 = vmatpush.bf16.msra.mxu0 %v131
  %161 = vmatpush.bf16.msra.mxu0 %v130
  %162 = vmatpush.bf16.msra.mxu0 %v129
  %163 = vmatpush.bf16.msra.mxu0 %v128
  %164 = vmatpush.bf16.msra.mxu0 %v127
  %165 = vmatpush.bf16.msra.mxu0 %v126
  %166 = vmatmul.bf16.gmra.mxu0 %v58
  %v167 = vpop.f32.mrf.mxu0
  %v168 = vadd.f32 %v50, %v167
  %v169 = vpop.f32.mrf.mxu0
  %v170 = vadd.f32 %v50, %v169
  %171 = vdwg.mxu0
  %172 = vmatpush.bf16.msra.mxu0 %v141
  %173 = vmatpush.bf16.msra.mxu0 %v140
  %174 = vmatpush.bf16.msra.mxu0 %v139
  %175 = vmatpush.bf16.msra.mxu0 %v138
  %176 = vmatpush.bf16.msra.mxu0 %v137
  %177 = vmatpush.bf16.msra.mxu0 %v136
  %178 = vmatpush.bf16.msra.mxu0 %v135
  %179 = vmatpush.bf16.msra.mxu0 %v134
  %180 = vmatmul.bf16.gmra.mxu0 %v59
  %v181 = vpop.f32.mrf.mxu0
  %v182 = vadd.f32 %v168, %v181
  %v183 = vpop.f32.mrf.mxu0
  %v184 = vadd.f32 %v170, %v183
  %185 = vdwg.mxu0
  %186 = vst [vmem:[%s3] sm:$0xff] %v182
  %187 = vst [vmem:[%s3 + $0x8] sm:$0xff] %v184
  // Predicated region
  $region14: #{vae_forward.16} parent=0 // pred_check
    _
  $region15: #{vae_forward.16} parent=0 // pred_check_branch
    %189 = sbr.rel (0) target = $region17
  $region16: #{vae_forward.16} parent=0 // pred_region
    _
  $region17: #{vae_forward.16} parent=0 // pred_fallthru
    _
  // Predicated region
  $region18: #{vae_forward.16} parent=0 // pred_check
    _
  $region19: #{vae_forward.16} parent=0 // pred_check_branch
    %191 = sbr.rel (0) target = $region21
  $region20: #{vae_forward.16} parent=0 // pred_region
    _
  $region21: #{vae_forward.16} parent=0 // pred_fallthru
    _

// kernel: vae_forward.18
$region0: #{vae_forward.18}
  #allocation0 [shape = 'u32[]', space=smem, size = 0x4, offset = 0x4, fixed_abs, tag = 'smem constant byte address 0x4 - core index']
  #allocation1 [shape = 'u32[72,128]{1,0:T(1,128)}', space=vmem, size = 0x9000, scoped, tag = 'internal scratch']
  #allocation2 [shape = 'f32[16,256]{1,0:T(8,128)}', space=vmem, size = 0x4000, scoped, tag = 'scratch operand']
  %s0 = inlined_call_operand.vmem [shape: bf16[16,16], index: 0, kind: input, shape index: {}]
  %s1 = inlined_call_operand.vmem [shape: bf16[16,256], index: 1, kind: input, shape index: {}]
  %s2 = inlined_call_operand.vmem [shape: f32[1,256], index: 2, kind: input, shape index: {}]
  %s3 = inlined_call_operand.vmem [shape: bf16[16,256], index: 3, kind: output, shape index: {}]
  %s4 = sld [smem:[#allocation0]]
  $region22: #{vae_forward.18} parent=0
    _
  %s6 = ssub.s32 1, %s4
  %s7 = scalar_select 0, %s6, %s4
  // Predicated region
  $region2: #{vae_forward.18} parent=0 // pred_check
    _
  $region3: #{vae_forward.18} parent=0 // pred_check_branch
    %9 = sbr.rel (0) target = $region5
  $region4: #{vae_forward.18} parent=0 // pred_region
    _
  $region5: #{vae_forward.18} parent=0 // pred_fallthru
    _
  // Predicated region
  $region6: #{vae_forward.18} parent=0 // pred_check
    _
  $region7: #{vae_forward.18} parent=0 // pred_check_branch
    %11 = sbr.rel (0) target = $region9
  $region8: #{vae_forward.18} parent=0 // pred_region
    _
  $region9: #{vae_forward.18} parent=0 // pred_fallthru
    _
  // Predicated region
  $region10: #{vae_forward.18} parent=0 // pred_check
    _
  $region11: #{vae_forward.18} parent=0 // pred_check_branch
    %13 = sbr.rel (0) target = $region13
  $region12: #{vae_forward.18} parent=0 // pred_region
    _
  $region13: #{vae_forward.18} parent=0 // pred_fallthru
    _
  %v15 = vld [vmem:[%s0] sm:$0xf]
  %v16 = vld [vmem:[%s0 + $0x4] sm:$0xf]
  %v17 = vld [vmem:[%s1] sm:$0xff]
  %v18 = vld [vmem:[%s1 + $0x8] sm:$0xff]
  %v19 = vld [vmem:[%s2] sm:$0x3]
  %v21 = vperm.slane %v19, 0
  %v22 = vperm.slane %v19, 1
  %v27 = vunpack.c.l.b16 %v15
  %v28 = vunpack.c.l.b16 %v16
  %v29 = vpack.c.b16 %v28, %v27
  %v32 = vunpack.c.l.b16 %v17
  %v33 = vunpack.c.h.b16 %v17
  %v34 = vunpack.c.l.b16 %v18
  %v35 = vunpack.c.h.b16 %v18
  %v36 = vpack.c.b16 %v34, %v32
  %v37 = vpack.c.b16 %v35, %v33
  %vm40 = vcmask 130048
  %v42 = vsel %vm40, %v29, 0
  %44 = vmatpush.bf16.msra.mxu0 0
  %45 = vmatpush.bf16.msra.mxu0 0
  %46 = vmatpush.bf16.msra.mxu0 0
  %47 = vmatpush.bf16.msra.mxu0 0
  %48 = vmatpush.bf16.msra.mxu0 0
  %49 = vmatpush.bf16.msra.mxu0 0
  %50 = vmatpush.bf16.msra.mxu0 0
  %51 = vmatpush.bf16.msra.mxu0 %v36
  %52 = vmatmul.bf16.gmra.mxu0 %v42
  %v53 = vpop.f32.mrf.mxu0
  %v54 = vadd.f32 %v21, %v53
  %v55 = vpop.f32.mrf.mxu0
  %v56 = vadd.f32 %v21, %v55
  %57 = vdwg.mxu0
  %58 = vmatpush.bf16.msra.mxu0 0
  %59 = vmatpush.bf16.msra.mxu0 0
  %60 = vmatpush.bf16.msra.mxu0 0
  %61 = vmatpush.bf16.msra.mxu0 0
  %62 = vmatpush.bf16.msra.mxu0 0
  %63 = vmatpush.bf16.msra.mxu0 0
  %64 = vmatpush.bf16.msra.mxu0 0
  %65 = vmatpush.bf16.msra.mxu0 %v37
  %66 = vmatmul.bf16.gmra.mxu0 %v42
  %v67 = vpop.f32.mrf.mxu0
  %v68 = vadd.f32 %v22, %v67
  %v69 = vpop.f32.mrf.mxu0
  %v70 = vadd.f32 %v22, %v69
  %71 = vdwg.mxu0
  %v72 = vmax.f32 %v54, 0.0
  %v73 = vmax.f32 %v68, 0.0
  %v74 = vmax.f32 %v56, 0.0
  %v75 = vmax.f32 %v70, 0.0
  %v76 = vpack.c.bf16 %v73, %v72
  %v77 = vpack.c.bf16 %v75, %v74
  %78 = vst [vmem:[%s3] sm:$0xff] %v76
  %79 = vst [vmem:[%s3 + $0x8] sm:$0xff] %v77
  // Predicated region
  $region14: #{vae_forward.18} parent=0 // pred_check
    _
  $region15: #{vae_forward.18} parent=0 // pred_check_branch
    %81 = sbr.rel (0) target = $region17
  $region16: #{vae_forward.18} parent=0 // pred_region
    _
  $region17: #{vae_forward.18} parent=0 // pred_fallthru
    _
  // Predicated region
  $region18: #{vae_forward.18} parent=0 // pred_check
    _
  $region19: #{vae_forward.18} parent=0 // pred_check_branch
    %83 = sbr.rel (0) target = $region21
  $region20: #{vae_forward.18} parent=0 // pred_region
    _
  $region21: #{vae_forward.18} parent=0 // pred_fallthru
    _

// kernel: vae_forward.19
$region0: #{vae_forward.19}
  #allocation0 [shape = 'u32[]', space=smem, size = 0x4, offset = 0x4, fixed_abs, tag = 'smem constant byte address 0x4 - core index']
  #allocation1 [shape = 'u32[72,128]{1,0:T(1,128)}', space=vmem, size = 0x9000, scoped, tag = 'internal scratch']
  #allocation2 [shape = 'f32[16,128]{1,0:T(8,128)}', space=vmem, size = 0x2000, scoped, tag = 'scratch operand']
  %s0 = inlined_call_operand.vmem [shape: bf16[16,576], index: 0, kind: input, shape index: {}]
  %s1 = inlined_call_operand.vmem [shape: bf16[576,128], index: 1, kind: input, shape index: {}]
  %s2 = inlined_call_operand.vmem [shape: f32[1,128], index: 2, kind: input, shape index: {}]
  %s3 = inlined_call_operand.vmem [shape: bf16[16,128], index: 3, kind: output, shape index: {}]
  %s4 = sld [smem:[#allocation0]]
  $region22: #{vae_forward.19} parent=0
    _
  %s6 = ssub.s32 1, %s4
  %s7 = scalar_select 0, %s6, %s4
  // Predicated region
  $region2: #{vae_forward.19} parent=0 // pred_check
    _
  $region3: #{vae_forward.19} parent=0 // pred_check_branch
    %9 = sbr.rel (0) target = $region5
  $region4: #{vae_forward.19} parent=0 // pred_region
    _
  $region5: #{vae_forward.19} parent=0 // pred_fallthru
    _
  // Predicated region
  $region6: #{vae_forward.19} parent=0 // pred_check
    _
  $region7: #{vae_forward.19} parent=0 // pred_check_branch
    %11 = sbr.rel (0) target = $region9
  $region8: #{vae_forward.19} parent=0 // pred_region
    _
  $region9: #{vae_forward.19} parent=0 // pred_fallthru
    _
  // Predicated region
  $region10: #{vae_forward.19} parent=0 // pred_check
    _
  $region11: #{vae_forward.19} parent=0 // pred_check_branch
    %13 = sbr.rel (0) target = $region13
  $region12: #{vae_forward.19} parent=0 // pred_region
    _
  $region13: #{vae_forward.19} parent=0 // pred_fallthru
    _
  %v15 = vld [vmem:[%s0] sm:$0xff]
  %v16 = vld [vmem:[%s0 + $0x8] sm:$0xff]
  %v17 = vld [vmem:[%s0 + $0x10] sm:$0xf]
  %v18 = vld [vmem:[%s0 + $0x14] sm:$0xff]
  %v19 = vld [vmem:[%s0 + $0x1c] sm:$0xff]
  %v20 = vld [vmem:[%s0 + $0x24] sm:$0xf]
  %v21 = vld [vmem:[%s1] sm:$0xf]
  %v22 = vld [vmem:[%s1 + $0x4] sm:$0xf]
  %v23 = vld [vmem:[%s1 + $0x8] sm:$0xf]
  %v24 = vld [vmem:[%s1 + $0xc] sm:$0xf]
  %v25 = vld [vmem:[%s1 + $0x10] sm:$0xf]
  %v26 = vld [vmem:[%s1 + $0x14] sm:$0xf]
  %v27 = vld [vmem:[%s1 + $0x18] sm:$0xf]
  %v28 = vld [vmem:[%s1 + $0x1c] sm:$0xf]
  %v29 = vld [vmem:[%s1 + $0x20] sm:$0xf]
  %v30 = vld [vmem:[%s1 + $0x24] sm:$0xf]
  %v31 = vld [vmem:[%s1 + $0x28] sm:$0xf]
  %v32 = vld [vmem:[%s1 + $0x2c] sm:$0xf]
  %v33 = vld [vmem:[%s1 + $0x30] sm:$0xf]
  %v34 = vld [vmem:[%s1 + $0x34] sm:$0xf]
  %v35 = vld [vmem:[%s1 + $0x38] sm:$0xf]
  %v36 = vld [vmem:[%s1 + $0x3c] sm:$0xf]
  %v37 = vld [vmem:[%s1 + $0x40] sm:$0xf]
  %v38 = vld [vmem:[%s1 + $0x44] sm:$0xf]
  %v39 = vld [vmem:[%s1 + $0x48] sm:$0xf]
  %v40 = vld [vmem:[%s1 + $0x4c] sm:$0xf]
  %v41 = vld [vmem:[%s1 + $0x50] sm:$0xf]
  %v42 = vld [vmem:[%s1 + $0x54] sm:$0xf]
  %v43 = vld [vmem:[%s1 + $0x58] sm:$0xf]
  %v44 = vld [vmem:[%s1 + $0x5c] sm:$0xf]
  %v45 = vld [vmem:[%s1 + $0x60] sm:$0xf]
  %v46 = vld [vmem:[%s1 + $0x64] sm:$0xf]
  %v47 = vld [vmem:[%s1 + $0x68] sm:$0xf]
  %v48 = vld [vmem:[%s1 + $0x6c] sm:$0xf]
  %v49 = vld [vmem:[%s1 + $0x70] sm:$0xf]
  %v50 = vld [vmem:[%s1 + $0x74] sm:$0xf]
  %v51 = vld [vmem:[%s1 + $0x78] sm:$0xf]
  %v52 = vld [vmem:[%s1 + $0x7c] sm:$0xf]
  %v53 = vld [vmem:[%s1 + $0x80] sm:$0xf]
  %v54 = vld [vmem:[%s1 + $0x84] sm:$0xf]
  %v55 = vld [vmem:[%s1 + $0x88] sm:$0xf]
  %v56 = vld [vmem:[%s1 + $0x8c] sm:$0xf]
  %v57 = vld [vmem:[%s1 + $0x90] sm:$0xf]
  %v58 = vld [vmem:[%s1 + $0x94] sm:$0xf]
  %v59 = vld [vmem:[%s1 + $0x98] sm:$0xf]
  %v60 = vld [vmem:[%s1 + $0x9c] sm:$0xf]
  %v61 = vld [vmem:[%s1 + $0xa0] sm:$0xf]
  %v62 = vld [vmem:[%s1 + $0xa4] sm:$0xf]
  %v63 = vld [vmem:[%s1 + $0xa8] sm:$0xf]
  %v64 = vld [vmem:[%s1 + $0xac] sm:$0xf]
  %v65 = vld [vmem:[%s1 + $0xb0] sm:$0xf]
  %v66 = vld [vmem:[%s1 + $0xb4] sm:$0xf]
  %v67 = vld [vmem:[%s1 + $0xb8] sm:$0xf]
  %v68 = vld [vmem:[%s1 + $0xbc] sm:$0xf]
  %v69 = vld [vmem:[%s1 + $0xc0] sm:$0xf]
  %v70 = vld [vmem:[%s1 + $0xc4] sm:$0xf]
  %v71 = vld [vmem:[%s1 + $0xc8] sm:$0xf]
  %v72 = vld [vmem:[%s1 + $0xcc] sm:$0xf]
  %v73 = vld [vmem:[%s1 + $0xd0] sm:$0xf]
  %v74 = vld [vmem:[%s1 + $0xd4] sm:$0xf]
  %v75 = vld [vmem:[%s1 + $0xd8] sm:$0xf]
  %v76 = vld [vmem:[%s1 + $0xdc] sm:$0xf]
  %v77 = vld [vmem:[%s1 + $0xe0] sm:$0xf]
  %v78 = vld [vmem:[%s1 + $0xe4] sm:$0xf]
  %v79 = vld [vmem:[%s1 + $0xe8] sm:$0xf]
  %v80 = vld [vmem:[%s1 + $0xec] sm:$0xf]
  %v81 = vld [vmem:[%s1 + $0xf0] sm:$0xf]
  %v82 = vld [vmem:[%s1 + $0xf4] sm:$0xf]
  %v83 = vld [vmem:[%s1 + $0xf8] sm:$0xf]
  %v84 = vld [vmem:[%s1 + $0xfc] sm:$0xf]
  %v85 = vld [vmem:[%s1 + $0x100] sm:$0xf]
  %v86 = vld [vmem:[%s1 + $0x104] sm:$0xf]
  %v87 = vld [vmem:[%s1 + $0x108] sm:$0xf]
  %v88 = vld [vmem:[%s1 + $0x10c] sm:$0xf]
  %v89 = vld [vmem:[%s1 + $0x110] sm:$0xf]
  %v90 = vld [vmem:[%s1 + $0x114] sm:$0xf]
  %v91 = vld [vmem:[%s1 + $0x118] sm:$0xf]
  %v92 = vld [vmem:[%s1 + $0x11c] sm:$0xf]
  %v93 = vld [vmem:[%s2] sm:$0x1]
  %v95 = vperm.slane %v93, 0
  %v103 = vunpack.c.l.b16 %v15
  %v104 = vunpack.c.h.b16 %v15
  %v105 = vunpack.c.l.b16 %v16
  %v106 = vunpack.c.h.b16 %v16
  %v107 = vunpack.c.l.b16 %v17
  %v108 = vunpack.c.l.b16 %v18
  %v109 = vunpack.c.h.b16 %v18
  %v110 = vunpack.c.l.b16 %v19
  %v111 = vunpack.c.h.b16 %v19
  %v112 = vunpack.c.l.b16 %v20
  %v113 = vpack.c.b16 %v108, %v103
  %v114 = vpack.c.b16 %v109, %v104
  %v115 = vpack.c.b16 %v110, %v105
  %v116 = vpack.c.b16 %v111, %v106
  %v117 = vpack.c.b16 %v112, %v107
  %v194 = vunpack.c.l.b16 %v21
  %v195 = vunpack.c.l.b16 %v22
  %v196 = vunpack.c.l.b16 %v23
  %v197 = vunpack.c.l.b16 %v24
  %v198 = vunpack.c.l.b16 %v25
  %v199 = vunpack.c.l.b16 %v26
  %v200 = vunpack.c.l.b16 %v27
  %v201 = vunpack.c.l.b16 %v28
  %v202 = vunpack.c.l.b16 %v29
  %v203 = vunpack.c.l.b16 %v30
  %v204 = vunpack.c.l.b16 %v31
  %v205 = vunpack.c.l.b16 %v32
  %v206 = vunpack.c.l.b16 %v33
  %v207 = vunpack.c.l.b16 %v34
  %v208 = vunpack.c.l.b16 %v35
  %v209 = vunpack.c.l.b16 %v36
  %v210 = vunpack.c.l.b16 %v37
  %v211 = vunpack.c.l.b16 %v38
  %v212 = vunpack.c.l.b16 %v39
  %v213 = vunpack.c.l.b16 %v40
  %v214 = vunpack.c.l.b16 %v41
  %v215 = vunpack.c.l.b16 %v42
  %v216 = vunpack.c.l.b16 %v43
  %v217 = vunpack.c.l.b16 %v44
  %v218 = vunpack.c.l.b16 %v45
  %v219 = vunpack.c.l.b16 %v46
  %v220 = vunpack.c.l.b16 %v47
  %v221 = vunpack.c.l.b16 %v48
  %v222 = vunpack.c.l.b16 %v49
  %v223 = vunpack.c.l.b16 %v50
  %v224 = vunpack.c.l.b16 %v51
  %v225 = vunpack.c.l.b16 %v52
  %v226 = vunpack.c.l.b16 %v53
  %v227 = vunpack.c.l.b16 %v54
  %v228 = vunpack.c.l.b16 %v55
  %v229 = vunpack.c.l.b16 %v56
  %v230 = vunpack.c.l.b16 %v57
  %v231 = vunpack.c.l.b16 %v58
  %v232 = vunpack.c.l.b16 %v59
  %v233 = vunpack.c.l.b16 %v60
  %v234 = vunpack.c.l.b16 %v61
  %v235 = vunpack.c.l.b16 %v62
  %v236 = vunpack.c.l.b16 %v63
  %v237 = vunpack.c.l.b16 %v64
  %v238 = vunpack.c.l.b16 %v65
  %v239 = vunpack.c.l.b16 %v66
  %v240 = vunpack.c.l.b16 %v67
  %v241 = vunpack.c.l.b16 %v68
  %v242 = vunpack.c.l.b16 %v69
  %v243 = vunpack.c.l.b16 %v70
  %v244 = vunpack.c.l.b16 %v71
  %v245 = vunpack.c.l.b16 %v72
  %v246 = vunpack.c.l.b16 %v73
  %v247 = vunpack.c.l.b16 %v74
  %v248 = vunpack.c.l.b16 %v75
  %v249 = vunpack.c.l.b16 %v76
  %v250 = vunpack.c.l.b16 %v77
  %v251 = vunpack.c.l.b16 %v78
  %v252 = vunpack.c.l.b16 %v79
  %v253 = vunpack.c.l.b16 %v80
  %v254 = vunpack.c.l.b16 %v81
  %v255 = vunpack.c.l.b16 %v82
  %v256 = vunpack.c.l.b16 %v83
  %v257 = vunpack.c.l.b16 %v84
  %v258 = vunpack.c.l.b16 %v85
  %v259 = vunpack.c.l.b16 %v86
  %v260 = vunpack.c.l.b16 %v87
  %v261 = vunpack.c.l.b16 %v88
  %v262 = vunpack.c.l.b16 %v89
  %v263 = vunpack.c.l.b16 %v90
  %v264 = vunpack.c.l.b16 %v91
  %v265 = vunpack.c.l.b16 %v92
  %v266 = vpack.c.b16 %v195, %v194
  %v267 = vpack.c.b16 %v197, %v196
  %v268 = vpack.c.b16 %v199, %v198
  %v269 = vpack.c.b16 %v201, %v200
  %v270 = vpack.c.b16 %v203, %v202
  %v271 = vpack.c.b16 %v205, %v204
  %v272 = vpack.c.b16 %v207, %v206
  %v273 = vpack.c.b16 %v209, %v208
  %v274 = vpack.c.b16 %v211, %v210
  %v275 = vpack.c.b16 %v213, %v212
  %v276 = vpack.c.b16 %v215, %v214
  %v277 = vpack.c.b16 %v217, %v216
  %v278 = vpack.c.b16 %v219, %v218
  %v279 = vpack.c.b16 %v221, %v220
  %v280 = vpack.c.b16 %v223, %v222
  %v281 = vpack.c.b16 %v225, %v224
  %v282 = vpack.c.b16 %v227, %v226
  %v283 = vpack.c.b16 %v229, %v228
  %v284 = vpack.c.b16 %v231, %v230
  %v285 = vpack.c.b16 %v233, %v232
  %v286 = vpack.c.b16 %v235, %v234
  %v287 = vpack.c.b16 %v237, %v236
  %v288 = vpack.c.b16 %v239, %v238
  %v289 = vpack.c.b16 %v241, %v240
  %v290 = vpack.c.b16 %v243, %v242
  %v291 = vpack.c.b16 %v245, %v244
  %v292 = vpack.c.b16 %v247, %v246
  %v293 = vpack.c.b16 %v249, %v248
  %v294 = vpack.c.b16 %v251, %v250
  %v295 = vpack.c.b16 %v253, %v252
  %v296 = vpack.c.b16 %v255, %v254
  %v297 = vpack.c.b16 %v257, %v256
  %v298 = vpack.c.b16 %v259, %v258
  %v299 = vpack.c.b16 %v261, %v260
  %v300 = vpack.c.b16 %v263, %v262
  %v301 = vpack.c.b16 %v265, %v264
  %vm338 = vcmask 523264
  %v340 = vsel %vm338, %v117, 0
  %342 = vmatpush.bf16.msra.mxu0 %v273
  %343 = vmatpush.bf16.msra.mxu0 %v272
  %344 = vmatpush.bf16.msra.mxu0 %v271
  %345 = vmatpush.bf16.msra.mxu0 %v270
  %346 = vmatpush.bf16.msra.mxu0 %v269
  %347 = vmatpush.bf16.msra.mxu0 %v268
  %348 = vmatpush.bf16.msra.mxu0 %v267
  %349 = vmatpush.bf16.msra.mxu0 %v266
  %350 = vmatmul.bf16.gmra.mxu0 %v113
  %v351 = vpop.f32.mrf.mxu0
  %v352 = vadd.f32 %v95, %v351
  %v353 = vpop.f32.mrf.mxu0
  %v354 = vadd.f32 %v95, %v353
  %355 = vdwg.mxu0
  %356 = vmatpush.bf16.msra.mxu0 %v281
  %357 = vmatpush.bf16.msra.mxu0 %v280
  %358 = vmatpush.bf16.msra.mxu0 %v279
  %359 = vmatpush.bf16.msra.mxu0 %v278
  %360 = vmatpush.bf16.msra.mxu0 %v277
  %361 = vmatpush.bf16.msra.mxu0 %v276
  %362 = vmatpush.bf16.msra.mxu0 %v275
  %363 = vmatpush.bf16.msra.mxu0 %v274
  %364 = vmatmul.bf16.gmra.mxu0 %v114
  %v365 = vpop.f32.mrf.mxu0
  %v366 = vadd.f32 %v352, %v365
  %v367 = vpop.f32.mrf.mxu0
  %v368 = vadd.f32 %v354, %v367
  %369 = vdwg.mxu0
  %370 = vmatpush.bf16.msra.mxu0 %v289
  %371 = vmatpush.bf16.msra.mxu0 %v288
  %372 = vmatpush.bf16.msra.mxu0 %v287
  %373 = vmatpush.bf16.msra.mxu0 %v286
  %374 = vmatpush.bf16.msra.mxu0 %v285
  %375 = vmatpush.bf16.msra.mxu0 %v284
  %376 = vmatpush.bf16.msra.mxu0 %v283
  %377 = vmatpush.bf16.msra.mxu0 %v282
  %378 = vmatmul.bf16.gmra.mxu0 %v115
  %v379 = vpop.f32.mrf.mxu0
  %v380 = vadd.f32 %v366, %v379
  %v381 = vpop.f32.mrf.mxu0
  %v382 = vadd.f32 %v368, %v381
  %383 = vdwg.mxu0
  %384 = vmatpush.bf16.msra.mxu0 %v297
  %385 = vmatpush.bf16.msra.mxu0 %v296
  %386 = vmatpush.bf16.msra.mxu0 %v295
  %387 = vmatpush.bf16.msra.mxu0 %v294
  %388 = vmatpush.bf16.msra.mxu0 %v293
  %389 = vmatpush.bf16.msra.mxu0 %v292
  %390 = vmatpush.bf16.msra.mxu0 %v291
  %391 = vmatpush.bf16.msra.mxu0 %v290
  %392 = vmatmul.bf16.gmra.mxu0 %v116
  %v393 = vpop.f32.mrf.mxu0
  %v394 = vadd.f32 %v380, %v393
  %v395 = vpop.f32.mrf.mxu0
  %v396 = vadd.f32 %v382, %v395
  %397 = vdwg.mxu0
  %398 = vmatpush.bf16.msra.mxu0 0
  %399 = vmatpush.bf16.msra.mxu0 0
  %400 = vmatpush.bf16.msra.mxu0 0
  %401 = vmatpush.bf16.msra.mxu0 0
  %402 = vmatpush.bf16.msra.mxu0 %v301
  %403 = vmatpush.bf16.msra.mxu0 %v300
  %404 = vmatpush.bf16.msra.mxu0 %v299
  %405 = vmatpush.bf16.msra.mxu0 %v298
  %406 = vmatmul.bf16.gmra.mxu0 %v340
  %v407 = vpop.f32.mrf.mxu0
  %v408 = vadd.f32 %v394, %v407
  %v409 = vpop.f32.mrf.mxu0
  %v410 = vadd.f32 %v396, %v409
  %411 = vdwg.mxu0
  %vm412 = vcmp.ge.f32.partialorder %v408, 0.0
  %vm413 = vcmp.ge.f32.partialorder %v410, 0.0
  %v414 = vmul.f32 %v408, 0.2
  %v415 = vmul.f32 %v410, 0.2
  %v416 = vsel %vm412, %v408, %v414
  %v417 = vsel %vm413, %v410, %v415
  %v418 = vpack.c.bf16 %v416, %v416
  %v419 = vpack.c.bf16 %v417, %v417
  %420 = vst [vmem:[%s3] sm:$0xf] %v418
  %421 = vst [vmem:[%s3 + $0x4] sm:$0xf] %v419
  // Predicated region
  $region14: #{vae_forward.19} parent=0 // pred_check
    _
  $region15: #{vae_forward.19} parent=0 // pred_check_branch
    %423 = sbr.rel (0) target = $region17
  $region16: #{vae_forward.19} parent=0 // pred_region
    _
  $region17: #{vae_forward.19} parent=0 // pred_fallthru
    _
  // Predicated region
  $region18: #{vae_forward.19} parent=0 // pred_check
    _
  $region19: #{vae_forward.19} parent=0 // pred_check_branch
    %425 = sbr.rel (0) target = $region21
  $region20: #{vae_forward.19} parent=0 // pred_region
    _
  $region21: #{vae_forward.19} parent=0 // pred_fallthru
    _

// kernel: vae_forward.20
$region0: #{vae_forward.20}
  #allocation0 [shape = 'u32[]', space=smem, size = 0x4, offset = 0x4, fixed_abs, tag = 'smem constant byte address 0x4 - core index']
  #allocation1 [shape = 'u32[72,128]{1,0:T(1,128)}', space=vmem, size = 0x9000, scoped, tag = 'internal scratch']
  #allocation2 [shape = 'f32[32,128]{1,0:T(8,128)}', space=vmem, size = 0x4000, scoped, tag = 'scratch operand']
  %s0 = inlined_call_operand.vmem [shape: bf16[32,288], index: 0, kind: input, shape index: {}]
  %s1 = inlined_call_operand.vmem [shape: bf16[288,128], index: 1, kind: input, shape index: {}]
  %s2 = inlined_call_operand.vmem [shape: f32[1,128], index: 2, kind: input, shape index: {}]
  %s3 = inlined_call_operand.vmem [shape: bf16[32,128], index: 3, kind: output, shape index: {}]
  %s4 = sld [smem:[#allocation0]]
  $region22: #{vae_forward.20} parent=0
    _
  %s6 = ssub.s32 1, %s4
  %s7 = scalar_select 0, %s6, %s4
  // Predicated region
  $region2: #{vae_forward.20} parent=0 // pred_check
    _
  $region3: #{vae_forward.20} parent=0 // pred_check_branch
    %9 = sbr.rel (0) target = $region5
  $region4: #{vae_forward.20} parent=0 // pred_region
    _
  $region5: #{vae_forward.20} parent=0 // pred_fallthru
    _
  // Predicated region
  $region6: #{vae_forward.20} parent=0 // pred_check
    _
  $region7: #{vae_forward.20} parent=0 // pred_check_branch
    %11 = sbr.rel (0) target = $region9
  $region8: #{vae_forward.20} parent=0 // pred_region
    _
  $region9: #{vae_forward.20} parent=0 // pred_fallthru
    _
  // Predicated region
  $region10: #{vae_forward.20} parent=0 // pred_check
    _
  $region11: #{vae_forward.20} parent=0 // pred_check_branch
    %13 = sbr.rel (0) target = $region13
  $region12: #{vae_forward.20} parent=0 // pred_region
    _
  $region13: #{vae_forward.20} parent=0 // pred_fallthru
    _
  %v15 = vld [vmem:[%s0] sm:$0xff]
  %v16 = vld [vmem:[%s0 + $0x8] sm:$0xf]
  %v17 = vld [vmem:[%s0 + $0xc] sm:$0xff]
  %v18 = vld [vmem:[%s0 + $0x14] sm:$0xf]
  %v19 = vld [vmem:[%s0 + $0x18] sm:$0xff]
  %v20 = vld [vmem:[%s0 + $0x20] sm:$0xf]
  %v21 = vld [vmem:[%s0 + $0x24] sm:$0xff]
  %v22 = vld [vmem:[%s0 + $0x2c] sm:$0xf]
  %v23 = vld [vmem:[%s1] sm:$0xf]
  %v24 = vld [vmem:[%s1 + $0x4] sm:$0xf]
  %v25 = vld [vmem:[%s1 + $0x8] sm:$0xf]
  %v26 = vld [vmem:[%s1 + $0xc] sm:$0xf]
  %v27 = vld [vmem:[%s1 + $0x10] sm:$0xf]
  %v28 = vld [vmem:[%s1 + $0x14] sm:$0xf]
  %v29 = vld [vmem:[%s1 + $0x18] sm:$0xf]
  %v30 = vld [vmem:[%s1 + $0x1c] sm:$0xf]
  %v31 = vld [vmem:[%s1 + $0x20] sm:$0xf]
  %v32 = vld [vmem:[%s1 + $0x24] sm:$0xf]
  %v33 = vld [vmem:[%s1 + $0x28] sm:$0xf]
  %v34 = vld [vmem:[%s1 + $0x2c] sm:$0xf]
  %v35 = vld [vmem:[%s1 + $0x30] sm:$0xf]
  %v36 = vld [vmem:[%s1 + $0x34] sm:$0xf]
  %v37 = vld [vmem:[%s1 + $0x38] sm:$0xf]
  %v38 = vld [vmem:[%s1 + $0x3c] sm:$0xf]
  %v39 = vld [vmem:[%s1 + $0x40] sm:$0xf]
  %v40 = vld [vmem:[%s1 + $0x44] sm:$0xf]
  %v41 = vld [vmem:[%s1 + $0x48] sm:$0xf]
  %v42 = vld [vmem:[%s1 + $0x4c] sm:$0xf]
  %v43 = vld [vmem:[%s1 + $0x50] sm:$0xf]
  %v44 = vld [vmem:[%s1 + $0x54] sm:$0xf]
  %v45 = vld [vmem:[%s1 + $0x58] sm:$0xf]
  %v46 = vld [vmem:[%s1 + $0x5c] sm:$0xf]
  %v47 = vld [vmem:[%s1 + $0x60] sm:$0xf]
  %v48 = vld [vmem:[%s1 + $0x64] sm:$0xf]
  %v49 = vld [vmem:[%s1 + $0x68] sm:$0xf]
  %v50 = vld [vmem:[%s1 + $0x6c] sm:$0xf]
  %v51 = vld [vmem:[%s1 + $0x70] sm:$0xf]
  %v52 = vld [vmem:[%s1 + $0x74] sm:$0xf]
  %v53 = vld [vmem:[%s1 + $0x78] sm:$0xf]
  %v54 = vld [vmem:[%s1 + $0x7c] sm:$0xf]
  %v55 = vld [vmem:[%s1 + $0x80] sm:$0xf]
  %v56 = vld [vmem:[%s1 + $0x84] sm:$0xf]
  %v57 = vld [vmem:[%s1 + $0x88] sm:$0xf]
  %v58 = vld [vmem:[%s1 + $0x8c] sm:$0xf]
  %v59 = vld [vmem:[%s2] sm:$0x1]
  %v61 = vperm.slane %v59, 0
  %v71 = vunpack.c.l.b16 %v15
  %v72 = vunpack.c.h.b16 %v15
  %v73 = vunpack.c.l.b16 %v16
  %v74 = vunpack.c.l.b16 %v17
  %v75 = vunpack.c.h.b16 %v17
  %v76 = vunpack.c.l.b16 %v18
  %v77 = vunpack.c.l.b16 %v19
  %v78 = vunpack.c.h.b16 %v19
  %v79 = vunpack.c.l.b16 %v20
  %v80 = vunpack.c.l.b16 %v21
  %v81 = vunpack.c.h.b16 %v21
  %v82 = vunpack.c.l.b16 %v22
  %v83 = vpack.c.b16 %v74, %v71
  %v84 = vpack.c.b16 %v75, %v72
  %v85 = vpack.c.b16 %v76, %v73
  %v86 = vpack.c.b16 %v80, %v77
  %v87 = vpack.c.b16 %v81, %v78
  %v88 = vpack.c.b16 %v82, %v79
  %v129 = vunpack.c.l.b16 %v23
  %v130 = vunpack.c.l.b16 %v24
  %v131 = vunpack.c.l.b16 %v25
  %v132 = vunpack.c.l.b16 %v26
  %v133 = vunpack.c.l.b16 %v27
  %v134 = vunpack.c.l.b16 %v28
  %v135 = vunpack.c.l.b16 %v29
  %v136 = vunpack.c.l.b16 %v30
  %v137 = vunpack.c.l.b16 %v31
  %v138 = vunpack.c.l.b16 %v32
  %v139 = vunpack.c.l.b16 %v33
  %v140 = vunpack.c.l.b16 %v34
  %v141 = vunpack.c.l.b16 %v35
  %v142 = vunpack.c.l.b16 %v36
  %v143 = vunpack.c.l.b16 %v37
  %v144 = vunpack.c.l.b16 %v38
  %v145 = vunpack.c.l.b16 %v39
  %v146 = vunpack.c.l.b16 %v40
  %v147 = vunpack.c.l.b16 %v41
  %v148 = vunpack.c.l.b16 %v42
  %v149 = vunpack.c.l.b16 %v43
  %v150 = vunpack.c.l.b16 %v44
  %v151 = vunpack.c.l.b16 %v45
  %v152 = vunpack.c.l.b16 %v46
  %v153 = vunpack.c.l.b16 %v47
  %v154 = vunpack.c.l.b16 %v48
  %v155 = vunpack.c.l.b16 %v49
  %v156 = vunpack.c.l.b16 %v50
  %v157 = vunpack.c.l.b16 %v51
  %v158 = vunpack.c.l.b16 %v52
  %v159 = vunpack.c.l.b16 %v53
  %v160 = vunpack.c.l.b16 %v54
  %v161 = vunpack.c.l.b16 %v55
  %v162 = vunpack.c.l.b16 %v56
  %v163 = vunpack.c.l.b16 %v57
  %v164 = vunpack.c.l.b16 %v58
  %v165 = vpack.c.b16 %v130, %v129
  %v166 = vpack.c.b16 %v132, %v131
  %v167 = vpack.c.b16 %v134, %v133
  %v168 = vpack.c.b16 %v136, %v135
  %v169 = vpack.c.b16 %v138, %v137
  %v170 = vpack.c.b16 %v140, %v139
  %v171 = vpack.c.b16 %v142, %v141
  %v172 = vpack.c.b16 %v144, %v143
  %v173 = vpack.c.b16 %v146, %v145
  %v174 = vpack.c.b16 %v148, %v147
  %v175 = vpack.c.b16 %v150, %v149
  %v176 = vpack.c.b16 %v152, %v151
  %v177 = vpack.c.b16 %v154, %v153
  %v178 = vpack.c.b16 %v156, %v155
  %v179 = vpack.c.b16 %v158, %v157
  %v180 = vpack.c.b16 %v160, %v159
  %v181 = vpack.c.b16 %v162, %v161
  %v182 = vpack.c.b16 %v164, %v163
  %vm201 = vcmask 261120
  %v203 = vsel %vm201, %v85, 0
  %v206 = vsel %vm201, %v88, 0
  %208 = vmatpush.bf16.msra.mxu0 %v172
  %209 = vmatpush.bf16.msra.mxu0 %v171
  %210 = vmatpush.bf16.msra.mxu0 %v170
  %211 = vmatpush.bf16.msra.mxu0 %v169
  %212 = vmatpush.bf16.msra.mxu0 %v168
  %213 = vmatpush.bf16.msra.mxu0 %v167
  %214 = vmatpush.bf16.msra.mxu0 %v166
  %215 = vmatpush.bf16.msra.mxu0 %v165
  %216 = vmatmul.bf16.gmra.mxu0 %v83
  %v217 = vpop.f32.mrf.mxu0
  %v218 = vadd.f32 %v61, %v217
  %v219 = vpop.f32.mrf.mxu0
  %v220 = vadd.f32 %v61, %v219
  %221 = vmatmul.bf16.gmra.mxu0 %v86
  %v222 = vpop.f32.mrf.mxu0
  %v223 = vadd.f32 %v61, %v222
  %v224 = vpop.f32.mrf.mxu0
  %v225 = vadd.f32 %v61, %v224
  %226 = vdwg.mxu0
  %227 = vmatpush.bf16.msra.mxu0 %v180
  %228 = vmatpush.bf16.msra.mxu0 %v179
  %229 = vmatpush.bf16.msra.mxu0 %v178
  %230 = vmatpush.bf16.msra.mxu0 %v177
  %231 = vmatpush.bf16.msra.mxu0 %v176
  %232 = vmatpush.bf16.msra.mxu0 %v175
  %233 = vmatpush.bf16.msra.mxu0 %v174
  %234 = vmatpush.bf16.msra.mxu0 %v173
  %235 = vmatmul.bf16.gmra.mxu0 %v84
  %v236 = vpop.f32.mrf.mxu0
  %v237 = vadd.f32 %v218, %v236
  %v238 = vpop.f32.mrf.mxu0
  %v239 = vadd.f32 %v220, %v238
  %240 = vmatmul.bf16.gmra.mxu0 %v87
  %v241 = vpop.f32.mrf.mxu0
  %v242 = vadd.f32 %v223, %v241
  %v243 = vpop.f32.mrf.mxu0
  %v244 = vadd.f32 %v225, %v243
  %245 = vdwg.mxu0
  %246 = vmatpush.bf16.msra.mxu0 0
  %247 = vmatpush.bf16.msra.mxu0 0
  %248 = vmatpush.bf16.msra.mxu0 0
  %249 = vmatpush.bf16.msra.mxu0 0
  %250 = vmatpush.bf16.msra.mxu0 0
  %251 = vmatpush.bf16.msra.mxu0 0
  %252 = vmatpush.bf16.msra.mxu0 %v182
  %253 = vmatpush.bf16.msra.mxu0 %v181
  %254 = vmatmul.bf16.gmra.mxu0 %v203
  %v255 = vpop.f32.mrf.mxu0
  %v256 = vadd.f32 %v237, %v255
  %v257 = vpop.f32.mrf.mxu0
  %v258 = vadd.f32 %v239, %v257
  %259 = vmatmul.bf16.gmra.mxu0 %v206
  %v260 = vpop.f32.mrf.mxu0
  %v261 = vadd.f32 %v242, %v260
  %v262 = vpop.f32.mrf.mxu0
  %v263 = vadd.f32 %v244, %v262
  %264 = vdwg.mxu0
  %vm265 = vcmp.ge.f32.partialorder %v256, 0.0
  %vm266 = vcmp.ge.f32.partialorder %v258, 0.0
  %vm267 = vcmp.ge.f32.partialorder %v261, 0.0
  %vm268 = vcmp.ge.f32.partialorder %v263, 0.0
  %v269 = vmul.f32 %v256, 0.2
  %v270 = vmul.f32 %v258, 0.2
  %v271 = vmul.f32 %v261, 0.2
  %v272 = vmul.f32 %v263, 0.2
  %v273 = vsel %vm265, %v256, %v269
  %v274 = vsel %vm266, %v258, %v270
  %v275 = vsel %vm267, %v261, %v271
  %v276 = vsel %vm268, %v263, %v272
  %v277 = vpack.c.bf16 %v273, %v273
  %v278 = vpack.c.bf16 %v274, %v274
  %v279 = vpack.c.bf16 %v275, %v275
  %v280 = vpack.c.bf16 %v276, %v276
  %281 = vst [vmem:[%s3] sm:$0xf] %v277
  %282 = vst [vmem:[%s3 + $0x4] sm:$0xf] %v278
  %283 = vst [vmem:[%s3 + $0x8] sm:$0xf] %v279
  %284 = vst [vmem:[%s3 + $0xc] sm:$0xf] %v280
  // Predicated region
  $region14: #{vae_forward.20} parent=0 // pred_check
    _
  $region15: #{vae_forward.20} parent=0 // pred_check_branch
    %286 = sbr.rel (0) target = $region17
  $region16: #{vae_forward.20} parent=0 // pred_region
    _
  $region17: #{vae_forward.20} parent=0 // pred_fallthru
    _
  // Predicated region
  $region18: #{vae_forward.20} parent=0 // pred_check
    _
  $region19: #{vae_forward.20} parent=0 // pred_check_branch
    %288 = sbr.rel (0) target = $region21
  $region20: #{vae_forward.20} parent=0 // pred_region
    _
  $region21: #{vae_forward.20} parent=0 // pred_fallthru
    _

// kernel: vae_forward.21
$region0: #{vae_forward.21}
  #allocation0 [shape = 'u32[]', space=smem, size = 0x4, offset = 0x4, fixed_abs, tag = 'smem constant byte address 0x4 - core index']
  #allocation1 [shape = 'u32[72,128]{1,0:T(1,128)}', space=vmem, size = 0x9000, scoped, tag = 'internal scratch']
  #allocation2 [shape = 'f32[128,128]{1,0:T(8,128)}', space=vmem, size = 0x10000, scoped, tag = 'scratch operand']
  %s0 = inlined_call_operand.vmem [shape: bf16[128,144], index: 0, kind: input, shape index: {}]
  %s1 = inlined_call_operand.vmem [shape: bf16[144,128], index: 1, kind: input, shape index: {}]
  %s2 = inlined_call_operand.vmem [shape: f32[1,128], index: 2, kind: input, shape index: {}]
  %s3 = inlined_call_operand.vmem [shape: bf16[128,128], index: 3, kind: output, shape index: {}]
  %s4 = sld [smem:[#allocation0]]
  $region22: #{vae_forward.21} parent=0
    _
  %s6 = ssub.s32 1, %s4
  %s7 = scalar_select 0, %s6, %s4
  // Predicated region
  $region2: #{vae_forward.21} parent=0 // pred_check
    _
  $region3: #{vae_forward.21} parent=0 // pred_check_branch
    %9 = sbr.rel (0) target = $region5
  $region4: #{vae_forward.21} parent=0 // pred_region
    _
  $region5: #{vae_forward.21} parent=0 // pred_fallthru
    _
  // Predicated region
  $region6: #{vae_forward.21} parent=0 // pred_check
    _
  $region7: #{vae_forward.21} parent=0 // pred_check_branch
    %11 = sbr.rel (0) target = $region9
  $region8: #{vae_forward.21} parent=0 // pred_region
    _
  $region9: #{vae_forward.21} parent=0 // pred_fallthru
    _
  // Predicated region
  $region10: #{vae_forward.21} parent=0 // pred_check
    _
  $region11: #{vae_forward.21} parent=0 // pred_check_branch
    %13 = sbr.rel (0) target = $region13
  $region12: #{vae_forward.21} parent=0 // pred_region
    _
  $region13: #{vae_forward.21} parent=0 // pred_fallthru
    _
  %v15 = vld [vmem:[%s0] sm:$0xff]
  %v16 = vld [vmem:[%s0 + $0x8] sm:$0xff]
  %v17 = vld [vmem:[%s0 + $0x10] sm:$0xff]
  %v18 = vld [vmem:[%s0 + $0x18] sm:$0xff]
  %v19 = vld [vmem:[%s0 + $0x20] sm:$0xff]
  %v20 = vld [vmem:[%s0 + $0x28] sm:$0xff]
  %v21 = vld [vmem:[%s0 + $0x30] sm:$0xff]
  %v22 = vld [vmem:[%s0 + $0x38] sm:$0xff]
  %v23 = vld [vmem:[%s0 + $0x40] sm:$0xff]
  %v24 = vld [vmem:[%s0 + $0x48] sm:$0xff]
  %v25 = vld [vmem:[%s0 + $0x50] sm:$0xff]
  %v26 = vld [vmem:[%s0 + $0x58] sm:$0xff]
  %v27 = vld [vmem:[%s0 + $0x60] sm:$0xff]
  %v28 = vld [vmem:[%s0 + $0x68] sm:$0xff]
  %v29 = vld [vmem:[%s0 + $0x70] sm:$0xff]
  %v30 = vld [vmem:[%s0 + $0x78] sm:$0xff]
  %v31 = vld [vmem:[%s1] sm:$0xf]
  %v32 = vld [vmem:[%s1 + $0x4] sm:$0xf]
  %v33 = vld [vmem:[%s1 + $0x8] sm:$0xf]
  %v34 = vld [vmem:[%s1 + $0xc] sm:$0xf]
  %v35 = vld [vmem:[%s1 + $0x10] sm:$0xf]
  %v36 = vld [vmem:[%s1 + $0x14] sm:$0xf]
  %v37 = vld [vmem:[%s1 + $0x18] sm:$0xf]
  %v38 = vld [vmem:[%s1 + $0x1c] sm:$0xf]
  %v39 = vld [vmem:[%s1 + $0x20] sm:$0xf]
  %v40 = vld [vmem:[%s1 + $0x24] sm:$0xf]
  %v41 = vld [vmem:[%s1 + $0x28] sm:$0xf]
  %v42 = vld [vmem:[%s1 + $0x2c] sm:$0xf]
  %v43 = vld [vmem:[%s1 + $0x30] sm:$0xf]
  %v44 = vld [vmem:[%s1 + $0x34] sm:$0xf]
  %v45 = vld [vmem:[%s1 + $0x38] sm:$0xf]
  %v46 = vld [vmem:[%s1 + $0x3c] sm:$0xf]
  %v47 = vld [vmem:[%s1 + $0x40] sm:$0xf]
  %v48 = vld [vmem:[%s1 + $0x44] sm:$0xf]
  %v49 = vld [vmem:[%s2] sm:$0x1]
  %v51 = vperm.slane %v49, 0
  %v69 = vunpack.c.l.b16 %v15
  %v70 = vunpack.c.h.b16 %v15
  %v71 = vunpack.c.l.b16 %v16
  %v72 = vunpack.c.h.b16 %v16
  %v73 = vunpack.c.l.b16 %v17
  %v74 = vunpack.c.h.b16 %v17
  %v75 = vunpack.c.l.b16 %v18
  %v76 = vunpack.c.h.b16 %v18
  %v77 = vunpack.c.l.b16 %v19
  %v78 = vunpack.c.h.b16 %v19
  %v79 = vunpack.c.l.b16 %v20
  %v80 = vunpack.c.h.b16 %v20
  %v81 = vunpack.c.l.b16 %v21
  %v82 = vunpack.c.h.b16 %v21
  %v83 = vunpack.c.l.b16 %v22
  %v84 = vunpack.c.h.b16 %v22
  %v85 = vunpack.c.l.b16 %v23
  %v86 = vunpack.c.h.b16 %v23
  %v87 = vunpack.c.l.b16 %v24
  %v88 = vunpack.c.h.b16 %v24
  %v89 = vunpack.c.l.b16 %v25
  %v90 = vunpack.c.h.b16 %v25
  %v91 = vunpack.c.l.b16 %v26
  %v92 = vunpack.c.h.b16 %v26
  %v93 = vunpack.c.l.b16 %v27
  %v94 = vunpack.c.h.b16 %v27
  %v95 = vunpack.c.l.b16 %v28
  %v96 = vunpack.c.h.b16 %v28
  %v97 = vunpack.c.l.b16 %v29
  %v98 = vunpack.c.h.b16 %v29
  %v99 = vunpack.c.l.b16 %v30
  %v100 = vunpack.c.h.b16 %v30
  %v101 = vpack.c.b16 %v71, %v69
  %v102 = vpack.c.b16 %v72, %v70
  %v103 = vpack.c.b16 %v75, %v73
  %v104 = vpack.c.b16 %v76, %v74
  %v105 = vpack.c.b16 %v79, %v77
  %v106 = vpack.c.b16 %v80, %v78
  %v107 = vpack.c.b16 %v83, %v81
  %v108 = vpack.c.b16 %v84, %v82
  %v109 = vpack.c.b16 %v87, %v85
  %v110 = vpack.c.b16 %v88, %v86
  %v111 = vpack.c.b16 %v91, %v89
  %v112 = vpack.c.b16 %v92, %v90
  %v113 = vpack.c.b16 %v95, %v93
  %v114 = vpack.c.b16 %v96, %v94
  %v115 = vpack.c.b16 %v99, %v97
  %v116 = vpack.c.b16 %v100, %v98
  %v143 = vunpack.c.l.b16 %v31
  %v144 = vunpack.c.l.b16 %v32
  %v145 = vunpack.c.l.b16 %v33
  %v146 = vunpack.c.l.b16 %v34
  %v147 = vunpack.c.l.b16 %v35
  %v148 = vunpack.c.l.b16 %v36
  %v149 = vunpack.c.l.b16 %v37
  %v150 = vunpack.c.l.b16 %v38
  %v151 = vunpack.c.l.b16 %v39
  %v152 = vunpack.c.l.b16 %v40
  %v153 = vunpack.c.l.b16 %v41
  %v154 = vunpack.c.l.b16 %v42
  %v155 = vunpack.c.l.b16 %v43
  %v156 = vunpack.c.l.b16 %v44
  %v157 = vunpack.c.l.b16 %v45
  %v158 = vunpack.c.l.b16 %v46
  %v159 = vunpack.c.l.b16 %v47
  %v160 = vunpack.c.l.b16 %v48
  %v161 = vpack.c.b16 %v144, %v143
  %v162 = vpack.c.b16 %v146, %v145
  %v163 = vpack.c.b16 %v148, %v147
  %v164 = vpack.c.b16 %v150, %v149
  %v165 = vpack.c.b16 %v152, %v151
  %v166 = vpack.c.b16 %v154, %v153
  %v167 = vpack.c.b16 %v156, %v155
  %v168 = vpack.c.b16 %v158, %v157
  %v169 = vpack.c.b16 %v160, %v159
  %vm179 = vcmask 130048
  %v181 = vsel %vm179, %v102, 0
  %v184 = vsel %vm179, %v104, 0
  %v187 = vsel %vm179, %v106, 0
  %v190 = vsel %vm179, %v108, 0
  %v193 = vsel %vm179, %v110, 0
  %v196 = vsel %vm179, %v112, 0
  %v199 = vsel %vm179, %v114, 0
  %v202 = vsel %vm179, %v116, 0
  %204 = vmatpush.bf16.msra.mxu0 %v168
  %205 = vmatpush.bf16.msra.mxu0 %v167
  %206 = vmatpush.bf16.msra.mxu0 %v166
  %207 = vmatpush.bf16.msra.mxu0 %v165
  %208 = vmatpush.bf16.msra.mxu0 %v164
  %209 = vmatpush.bf16.msra.mxu0 %v163
  %210 = vmatpush.bf16.msra.mxu0 %v162
  %211 = vmatpush.bf16.msra.mxu0 %v161
  %212 = vmatmul.bf16.gmra.mxu0 %v101
  %v213 = vpop.f32.mrf.mxu0
  %v214 = vadd.f32 %v51, %v213
  %v215 = vpop.f32.mrf.mxu0
  %v216 = vadd.f32 %v51, %v215
  %217 = vmatmul.bf16.gmra.mxu0 %v103
  %v218 = vpop.f32.mrf.mxu0
  %v219 = vadd.f32 %v51, %v218
  %v220 = vpop.f32.mrf.mxu0
  %v221 = vadd.f32 %v51, %v220
  %222 = vmatmul.bf16.gmra.mxu0 %v105
  %v223 = vpop.f32.mrf.mxu0
  %v224 = vadd.f32 %v51, %v223
  %v225 = vpop.f32.mrf.mxu0
  %v226 = vadd.f32 %v51, %v225
  %227 = vmatmul.bf16.gmra.mxu0 %v107
  %v228 = vpop.f32.mrf.mxu0
  %v229 = vadd.f32 %v51, %v228
  %v230 = vpop.f32.mrf.mxu0
  %v231 = vadd.f32 %v51, %v230
  %232 = vmatmul.bf16.gmra.mxu0 %v109
  %v233 = vpop.f32.mrf.mxu0
  %v234 = vadd.f32 %v51, %v233
  %v235 = vpop.f32.mrf.mxu0
  %v236 = vadd.f32 %v51, %v235
  %237 = vmatmul.bf16.gmra.mxu0 %v111
  %v238 = vpop.f32.mrf.mxu0
  %v239 = vadd.f32 %v51, %v238
  %v240 = vpop.f32.mrf.mxu0
  %v241 = vadd.f32 %v51, %v240
  %242 = vmatmul.bf16.gmra.mxu0 %v113
  %v243 = vpop.f32.mrf.mxu0
  %v244 = vadd.f32 %v51, %v243
  %v245 = vpop.f32.mrf.mxu0
  %v246 = vadd.f32 %v51, %v245
  %247 = vmatmul.bf16.gmra.mxu0 %v115
  %v248 = vpop.f32.mrf.mxu0
  %v249 = vadd.f32 %v51, %v248
  %v250 = vpop.f32.mrf.mxu0
  %v251 = vadd.f32 %v51, %v250
  %252 = vdwg.mxu0
  %253 = vmatpush.bf16.msra.mxu0 0
  %254 = vmatpush.bf16.msra.mxu0 0
  %255 = vmatpush.bf16.msra.mxu0 0
  %256 = vmatpush.bf16.msra.mxu0 0
  %257 = vmatpush.bf16.msra.mxu0 0
  %258 = vmatpush.bf16.msra.mxu0 0
  %259 = vmatpush.bf16.msra.mxu0 0
  %260 = vmatpush.bf16.msra.mxu0 %v169
  %261 = vmatmul.bf16.gmra.mxu0 %v181
  %v262 = vpop.f32.mrf.mxu0
  %v263 = vadd.f32 %v214, %v262
  %v264 = vpop.f32.mrf.mxu0
  %v265 = vadd.f32 %v216, %v264
  %266 = vmatmul.bf16.gmra.mxu0 %v184
  %v267 = vpop.f32.mrf.mxu0
  %v268 = vadd.f32 %v219, %v267
  %v269 = vpop.f32.mrf.mxu0
  %v270 = vadd.f32 %v221, %v269
  %271 = vmatmul.bf16.gmra.mxu0 %v187
  %v272 = vpop.f32.mrf.mxu0
  %v273 = vadd.f32 %v224, %v272
  %v274 = vpop.f32.mrf.mxu0
  %v275 = vadd.f32 %v226, %v274
  %276 = vmatmul.bf16.gmra.mxu0 %v190
  %v277 = vpop.f32.mrf.mxu0
  %v278 = vadd.f32 %v229, %v277
  %v279 = vpop.f32.mrf.mxu0
  %v280 = vadd.f32 %v231, %v279
  %281 = vmatmul.bf16.gmra.mxu0 %v193
  %v282 = vpop.f32.mrf.mxu0
  %v283 = vadd.f32 %v234, %v282
  %v284 = vpop.f32.mrf.mxu0
  %v285 = vadd.f32 %v236, %v284
  %286 = vmatmul.bf16.gmra.mxu0 %v196
  %v287 = vpop.f32.mrf.mxu0
  %v288 = vadd.f32 %v239, %v287
  %v289 = vpop.f32.mrf.mxu0
  %v290 = vadd.f32 %v241, %v289
  %291 = vmatmul.bf16.gmra.mxu0 %v199
  %v292 = vpop.f32.mrf.mxu0
  %v293 = vadd.f32 %v244, %v292
  %v294 = vpop.f32.mrf.mxu0
  %v295 = vadd.f32 %v246, %v294
  %296 = vmatmul.bf16.gmra.mxu0 %v202
  %v297 = vpop.f32.mrf.mxu0
  %v298 = vadd.f32 %v249, %v297
  %v299 = vpop.f32.mrf.mxu0
  %v300 = vadd.f32 %v251, %v299
  %301 = vdwg.mxu0
  %vm302 = vcmp.ge.f32.partialorder %v263, 0.0
  %vm303 = vcmp.ge.f32.partialorder %v265, 0.0
  %vm304 = vcmp.ge.f32.partialorder %v268, 0.0
  %vm305 = vcmp.ge.f32.partialorder %v270, 0.0
  %vm306 = vcmp.ge.f32.partialorder %v273, 0.0
  %vm307 = vcmp.ge.f32.partialorder %v275, 0.0
  %vm308 = vcmp.ge.f32.partialorder %v278, 0.0
  %vm309 = vcmp.ge.f32.partialorder %v280, 0.0
  %vm310 = vcmp.ge.f32.partialorder %v283, 0.0
  %vm311 = vcmp.ge.f32.partialorder %v285, 0.0
  %vm312 = vcmp.ge.f32.partialorder %v288, 0.0
  %vm313 = vcmp.ge.f32.partialorder %v290, 0.0
  %vm314 = vcmp.ge.f32.partialorder %v293, 0.0
  %vm315 = vcmp.ge.f32.partialorder %v295, 0.0
  %vm316 = vcmp.ge.f32.partialorder %v298, 0.0
  %vm317 = vcmp.ge.f32.partialorder %v300, 0.0
  %v318 = vmul.f32 %v263, 0.2
  %v319 = vmul.f32 %v265, 0.2
  %v320 = vmul.f32 %v268, 0.2
  %v321 = vmul.f32 %v270, 0.2
  %v322 = vmul.f32 %v273, 0.2
  %v323 = vmul.f32 %v275, 0.2
  %v324 = vmul.f32 %v278, 0.2
  %v325 = vmul.f32 %v280, 0.2
  %v326 = vmul.f32 %v283, 0.2
  %v327 = vmul.f32 %v285, 0.2
  %v328 = vmul.f32 %v288, 0.2
  %v329 = vmul.f32 %v290, 0.2
  %v330 = vmul.f32 %v293, 0.2
  %v331 = vmul.f32 %v295, 0.2
  %v332 = vmul.f32 %v298, 0.2
  %v333 = vmul.f32 %v300, 0.2
  %v334 = vsel %vm302, %v263, %v318
  %v335 = vsel %vm303, %v265, %v319
  %v336 = vsel %vm304, %v268, %v320
  %v337 = vsel %vm305, %v270, %v321
  %v338 = vsel %vm306, %v273, %v322
  %v339 = vsel %vm307, %v275, %v323
  %v340 = vsel %vm308, %v278, %v324
  %v341 = vsel %vm309, %v280, %v325
  %v342 = vsel %vm310, %v283, %v326
  %v343 = vsel %vm311, %v285, %v327
  %v344 = vsel %vm312, %v288, %v328
  %v345 = vsel %vm313, %v290, %v329
  %v346 = vsel %vm314, %v293, %v330
  %v347 = vsel %vm315, %v295, %v331
  %v348 = vsel %vm316, %v298, %v332
  %v349 = vsel %vm317, %v300, %v333
  %v350 = vpack.c.bf16 %v334, %v334
  %v351 = vpack.c.bf16 %v335, %v335
  %v352 = vpack.c.bf16 %v336, %v336
  %v353 = vpack.c.bf16 %v337, %v337
  %v354 = vpack.c.bf16 %v338, %v338
  %v355 = vpack.c.bf16 %v339, %v339
  %v356 = vpack.c.bf16 %v340, %v340
  %v357 = vpack.c.bf16 %v341, %v341
  %v358 = vpack.c.bf16 %v342, %v342
  %v359 = vpack.c.bf16 %v343, %v343
  %v360 = vpack.c.bf16 %v344, %v344
  %v361 = vpack.c.bf16 %v345, %v345
  %v362 = vpack.c.bf16 %v346, %v346
  %v363 = vpack.c.bf16 %v347, %v347
  %v364 = vpack.c.bf16 %v348, %v348
  %v365 = vpack.c.bf16 %v349, %v349
  %366 = vst [vmem:[%s3] sm:$0xf] %v350
  %367 = vst [vmem:[%s3 + $0x4] sm:$0xf] %v351
  %368 = vst [vmem:[%s3 + $0x8] sm:$0xf] %v352
  %369 = vst [vmem:[%s3 + $0xc] sm:$0xf] %v353
  %370 = vst [vmem:[%s3 + $0x10] sm:$0xf] %v354
  %371 = vst [vmem:[%s3 + $0x14] sm:$0xf] %v355
  %372 = vst [vmem:[%s3 + $0x18] sm:$0xf] %v356
  %373 = vst [vmem:[%s3 + $0x1c] sm:$0xf] %v357
  %374 = vst [vmem:[%s3 + $0x20] sm:$0xf] %v358
  %375 = vst [vmem:[%s3 + $0x24] sm:$0xf] %v359
  %376 = vst [vmem:[%s3 + $0x28] sm:$0xf] %v360
  %377 = vst [vmem:[%s3 + $0x2c] sm:$0xf] %v361
  %378 = vst [vmem:[%s3 + $0x30] sm:$0xf] %v362
  %379 = vst [vmem:[%s3 + $0x34] sm:$0xf] %v363
  %380 = vst [vmem:[%s3 + $0x38] sm:$0xf] %v364
  %381 = vst [vmem:[%s3 + $0x3c] sm:$0xf] %v365
  // Predicated region
  $region14: #{vae_forward.21} parent=0 // pred_check
    _
  $region15: #{vae_forward.21} parent=0 // pred_check_branch
    %383 = sbr.rel (0) target = $region17
  $region16: #{vae_forward.21} parent=0 // pred_region
    _
  $region17: #{vae_forward.21} parent=0 // pred_fallthru
    _
  // Predicated region
  $region18: #{vae_forward.21} parent=0 // pred_check
    _
  $region19: #{vae_forward.21} parent=0 // pred_check_branch
    %385 = sbr.rel (0) target = $region21
  $region20: #{vae_forward.21} parent=0 // pred_region
    _
  $region21: #{vae_forward.21} parent=0 // pred_fallthru
    _

// kernel: vae_forward.22
$region0: #{vae_forward.22}
  #allocation0 [shape = 'u32[]', space=smem, size = 0x4, offset = 0x4, fixed_abs, tag = 'smem constant byte address 0x4 - core index']
  #allocation1 [shape = 'u32[72,128]{1,0:T(1,128)}', space=vmem, size = 0x9000, scoped, tag = 'internal scratch']
  #allocation2 [shape = 'f32[512,128]{1,0:T(8,128)}', space=vmem, size = 0x40000, scoped, tag = 'scratch operand']
  %s0 = inlined_call_operand.vmem [shape: bf16[512,72], index: 0, kind: input, shape index: {}]
  %s1 = inlined_call_operand.vmem [shape: bf16[72,128], index: 1, kind: input, shape index: {}]
  %s2 = inlined_call_operand.vmem [shape: f32[1,128], index: 2, kind: input, shape index: {}]
  %s3 = inlined_call_operand.vmem [shape: f32[512,128], index: 3, kind: output, shape index: {}]
  %s4 = sld [smem:[#allocation0]]
  $region22: #{vae_forward.22} parent=0
    _
  %s6 = ssub.s32 1, %s4
  %s7 = scalar_select 0, %s6, %s4
  // Predicated region
  $region2: #{vae_forward.22} parent=0 // pred_check
    _
  $region3: #{vae_forward.22} parent=0 // pred_check_branch
    %9 = sbr.rel (0) target = $region5
  $region4: #{vae_forward.22} parent=0 // pred_region
    _
  $region5: #{vae_forward.22} parent=0 // pred_fallthru
    _
  // Predicated region
  $region6: #{vae_forward.22} parent=0 // pred_check
    _
  $region7: #{vae_forward.22} parent=0 // pred_check_branch
    %11 = sbr.rel (0) target = $region9
  $region8: #{vae_forward.22} parent=0 // pred_region
    _
  $region9: #{vae_forward.22} parent=0 // pred_fallthru
    _
  // Predicated region
  $region10: #{vae_forward.22} parent=0 // pred_check
    _
  $region11: #{vae_forward.22} parent=0 // pred_check_branch
    %13 = sbr.rel (0) target = $region13
  $region12: #{vae_forward.22} parent=0 // pred_region
    _
  $region13: #{vae_forward.22} parent=0 // pred_fallthru
    _
  %v15 = vld [vmem:[%s0] sm:$0xf]
  %v16 = vld [vmem:[%s0 + $0x4] sm:$0xf]
  %v17 = vld [vmem:[%s0 + $0x8] sm:$0xf]
  %v18 = vld [vmem:[%s0 + $0xc] sm:$0xf]
  %v19 = vld [vmem:[%s0 + $0x10] sm:$0xf]
  %v20 = vld [vmem:[%s0 + $0x14] sm:$0xf]
  %v21 = vld [vmem:[%s0 + $0x18] sm:$0xf]
  %v22 = vld [vmem:[%s0 + $0x1c] sm:$0xf]
  %v23 = vld [vmem:[%s0 + $0x20] sm:$0xf]
  %v24 = vld [vmem:[%s0 + $0x24] sm:$0xf]
  %v25 = vld [vmem:[%s0 + $0x28] sm:$0xf]
  %v26 = vld [vmem:[%s0 + $0x2c] sm:$0xf]
  %v27 = vld [vmem:[%s0 + $0x30] sm:$0xf]
  %v28 = vld [vmem:[%s0 + $0x34] sm:$0xf]
  %v29 = vld [vmem:[%s0 + $0x38] sm:$0xf]
  %v30 = vld [vmem:[%s0 + $0x3c] sm:$0xf]
  %v31 = vld [vmem:[%s0 + $0x40] sm:$0xf]
  %v32 = vld [vmem:[%s0 + $0x44] sm:$0xf]
  %v33 = vld [vmem:[%s0 + $0x48] sm:$0xf]
  %v34 = vld [vmem:[%s0 + $0x4c] sm:$0xf]
  %v35 = vld [vmem:[%s0 + $0x50] sm:$0xf]
  %v36 = vld [vmem:[%s0 + $0x54] sm:$0xf]
  %v37 = vld [vmem:[%s0 + $0x58] sm:$0xf]
  %v38 = vld [vmem:[%s0 + $0x5c] sm:$0xf]
  %v39 = vld [vmem:[%s0 + $0x60] sm:$0xf]
  %v40 = vld [vmem:[%s0 + $0x64] sm:$0xf]
  %v41 = vld [vmem:[%s0 + $0x68] sm:$0xf]
  %v42 = vld [vmem:[%s0 + $0x6c] sm:$0xf]
  %v43 = vld [vmem:[%s0 + $0x70] sm:$0xf]
  %v44 = vld [vmem:[%s0 + $0x74] sm:$0xf]
  %v45 = vld [vmem:[%s0 + $0x78] sm:$0xf]
  %v46 = vld [vmem:[%s0 + $0x7c] sm:$0xf]
  %v47 = vld [vmem:[%s0 + $0x80] sm:$0xf]
  %v48 = vld [vmem:[%s0 + $0x84] sm:$0xf]
  %v49 = vld [vmem:[%s0 + $0x88] sm:$0xf]
  %v50 = vld [vmem:[%s0 + $0x8c] sm:$0xf]
  %v51 = vld [vmem:[%s0 + $0x90] sm:$0xf]
  %v52 = vld [vmem:[%s0 + $0x94] sm:$0xf]
  %v53 = vld [vmem:[%s0 + $0x98] sm:$0xf]
  %v54 = vld [vmem:[%s0 + $0x9c] sm:$0xf]
  %v55 = vld [vmem:[%s0 + $0xa0] sm:$0xf]
  %v56 = vld [vmem:[%s0 + $0xa4] sm:$0xf]
  %v57 = vld [vmem:[%s0 + $0xa8] sm:$0xf]
  %v58 = vld [vmem:[%s0 + $0xac] sm:$0xf]
  %v59 = vld [vmem:[%s0 + $0xb0] sm:$0xf]
  %v60 = vld [vmem:[%s0 + $0xb4] sm:$0xf]
  %v61 = vld [vmem:[%s0 + $0xb8] sm:$0xf]
  %v62 = vld [vmem:[%s0 + $0xbc] sm:$0xf]
  %v63 = vld [vmem:[%s0 + $0xc0] sm:$0xf]
  %v64 = vld [vmem:[%s0 + $0xc4] sm:$0xf]
  %v65 = vld [vmem:[%s0 + $0xc8] sm:$0xf]
  %v66 = vld [vmem:[%s0 + $0xcc] sm:$0xf]
  %v67 = vld [vmem:[%s0 + $0xd0] sm:$0xf]
  %v68 = vld [vmem:[%s0 + $0xd4] sm:$0xf]
  %v69 = vld [vmem:[%s0 + $0xd8] sm:$0xf]
  %v70 = vld [vmem:[%s0 + $0xdc] sm:$0xf]
  %v71 = vld [vmem:[%s0 + $0xe0] sm:$0xf]
  %v72 = vld [vmem:[%s0 + $0xe4] sm:$0xf]
  %v73 = vld [vmem:[%s0 + $0xe8] sm:$0xf]
  %v74 = vld [vmem:[%s0 + $0xec] sm:$0xf]
  %v75 = vld [vmem:[%s0 + $0xf0] sm:$0xf]
  %v76 = vld [vmem:[%s0 + $0xf4] sm:$0xf]
  %v77 = vld [vmem:[%s0 + $0xf8] sm:$0xf]
  %v78 = vld [vmem:[%s0 + $0xfc] sm:$0xf]
  %v79 = vld [vmem:[%s1] sm:$0xf]
  %v80 = vld [vmem:[%s1 + $0x4] sm:$0xf]
  %v81 = vld [vmem:[%s1 + $0x8] sm:$0xf]
  %v82 = vld [vmem:[%s1 + $0xc] sm:$0xf]
  %v83 = vld [vmem:[%s1 + $0x10] sm:$0xf]
  %v84 = vld [vmem:[%s1 + $0x14] sm:$0xf]
  %v85 = vld [vmem:[%s1 + $0x18] sm:$0xf]
  %v86 = vld [vmem:[%s1 + $0x1c] sm:$0xf]
  %v87 = vld [vmem:[%s1 + $0x20] sm:$0xf]
  %v88 = vld [vmem:[%s2] sm:$0x1]
  %v90 = vperm.slane %v88, 0
  %v156 = vunpack.c.l.b16 %v15
  %v157 = vunpack.c.l.b16 %v16
  %v158 = vunpack.c.l.b16 %v17
  %v159 = vunpack.c.l.b16 %v18
  %v160 = vunpack.c.l.b16 %v19
  %v161 = vunpack.c.l.b16 %v20
  %v162 = vunpack.c.l.b16 %v21
  %v163 = vunpack.c.l.b16 %v22
  %v164 = vunpack.c.l.b16 %v23
  %v165 = vunpack.c.l.b16 %v24
  %v166 = vunpack.c.l.b16 %v25
  %v167 = vunpack.c.l.b16 %v26
  %v168 = vunpack.c.l.b16 %v27
  %v169 = vunpack.c.l.b16 %v28
  %v170 = vunpack.c.l.b16 %v29
  %v171 = vunpack.c.l.b16 %v30
  %v172 = vunpack.c.l.b16 %v31
  %v173 = vunpack.c.l.b16 %v32
  %v174 = vunpack.c.l.b16 %v33
  %v175 = vunpack.c.l.b16 %v34
  %v176 = vunpack.c.l.b16 %v35
  %v177 = vunpack.c.l.b16 %v36
  %v178 = vunpack.c.l.b16 %v37
  %v179 = vunpack.c.l.b16 %v38
  %v180 = vunpack.c.l.b16 %v39
  %v181 = vunpack.c.l.b16 %v40
  %v182 = vunpack.c.l.b16 %v41
  %v183 = vunpack.c.l.b16 %v42
  %v184 = vunpack.c.l.b16 %v43
  %v185 = vunpack.c.l.b16 %v44
  %v186 = vunpack.c.l.b16 %v45
  %v187 = vunpack.c.l.b16 %v46
  %v188 = vunpack.c.l.b16 %v47
  %v189 = vunpack.c.l.b16 %v48
  %v190 = vunpack.c.l.b16 %v49
  %v191 = vunpack.c.l.b16 %v50
  %v192 = vunpack.c.l.b16 %v51
  %v193 = vunpack.c.l.b16 %v52
  %v194 = vunpack.c.l.b16 %v53
  %v195 = vunpack.c.l.b16 %v54
  %v196 = vunpack.c.l.b16 %v55
  %v197 = vunpack.c.l.b16 %v56
  %v198 = vunpack.c.l.b16 %v57
  %v199 = vunpack.c.l.b16 %v58
  %v200 = vunpack.c.l.b16 %v59
  %v201 = vunpack.c.l.b16 %v60
  %v202 = vunpack.c.l.b16 %v61
  %v203 = vunpack.c.l.b16 %v62
  %v204 = vunpack.c.l.b16 %v63
  %v205 = vunpack.c.l.b16 %v64
  %v206 = vunpack.c.l.b16 %v65
  %v207 = vunpack.c.l.b16 %v66
  %v208 = vunpack.c.l.b16 %v67
  %v209 = vunpack.c.l.b16 %v68
  %v210 = vunpack.c.l.b16 %v69
  %v211 = vunpack.c.l.b16 %v70
  %v212 = vunpack.c.l.b16 %v71
  %v213 = vunpack.c.l.b16 %v72
  %v214 = vunpack.c.l.b16 %v73
  %v215 = vunpack.c.l.b16 %v74
  %v216 = vunpack.c.l.b16 %v75
  %v217 = vunpack.c.l.b16 %v76
  %v218 = vunpack.c.l.b16 %v77
  %v219 = vunpack.c.l.b16 %v78
  %v220 = vpack.c.b16 %v157, %v156
  %v221 = vpack.c.b16 %v159, %v158
  %v222 = vpack.c.b16 %v161, %v160
  %v223 = vpack.c.b16 %v163, %v162
  %v224 = vpack.c.b16 %v165, %v164
  %v225 = vpack.c.b16 %v167, %v166
  %v226 = vpack.c.b16 %v169, %v168
  %v227 = vpack.c.b16 %v171, %v170
  %v228 = vpack.c.b16 %v173, %v172
  %v229 = vpack.c.b16 %v175, %v174
  %v230 = vpack.c.b16 %v177, %v176
  %v231 = vpack.c.b16 %v179, %v178
  %v232 = vpack.c.b16 %v181, %v180
  %v233 = vpack.c.b16 %v183, %v182
  %v234 = vpack.c.b16 %v185, %v184
  %v235 = vpack.c.b16 %v187, %v186
  %v236 = vpack.c.b16 %v189, %v188
  %v237 = vpack.c.b16 %v191, %v190
  %v238 = vpack.c.b16 %v193, %v192
  %v239 = vpack.c.b16 %v195, %v194
  %v240 = vpack.c.b16 %v197, %v196
  %v241 = vpack.c.b16 %v199, %v198
  %v242 = vpack.c.b16 %v201, %v200
  %v243 = vpack.c.b16 %v203, %v202
  %v244 = vpack.c.b16 %v205, %v204
  %v245 = vpack.c.b16 %v207, %v206
  %v246 = vpack.c.b16 %v209, %v208
  %v247 = vpack.c.b16 %v211, %v210
  %v248 = vpack.c.b16 %v213, %v212
  %v249 = vpack.c.b16 %v215, %v214
  %v250 = vpack.c.b16 %v217, %v216
  %v251 = vpack.c.b16 %v219, %v218
  %v261 = vunpack.c.l.b16 %v79
  %v262 = vunpack.c.l.b16 %v80
  %v263 = vunpack.c.l.b16 %v81
  %v264 = vunpack.c.l.b16 %v82
  %v265 = vunpack.c.l.b16 %v83
  %v266 = vunpack.c.l.b16 %v84
  %v267 = vunpack.c.l.b16 %v85
  %v268 = vunpack.c.l.b16 %v86
  %v269 = vunpack.c.l.b16 %v87
  %v270 = vpack.c.b16 %v262, %v261
  %v271 = vpack.c.b16 %v264, %v263
  %v272 = vpack.c.b16 %v266, %v265
  %v273 = vpack.c.b16 %v268, %v267
  %v274 = vpack.c.b16 %v269, %v269
  %vm279 = vcmask 588800
  %v281 = vsel %vm279, %v220, 0
  %v284 = vsel %vm279, %v221, 0
  %v287 = vsel %vm279, %v222, 0
  %v290 = vsel %vm279, %v223, 0
  %v293 = vsel %vm279, %v224, 0
  %v296 = vsel %vm279, %v225, 0
  %v299 = vsel %vm279, %v226, 0
  %v302 = vsel %vm279, %v227, 0
  %v305 = vsel %vm279, %v228, 0
  %v308 = vsel %vm279, %v229, 0
  %v311 = vsel %vm279, %v230, 0
  %v314 = vsel %vm279, %v231, 0
  %v317 = vsel %vm279, %v232, 0
  %v320 = vsel %vm279, %v233, 0
  %v323 = vsel %vm279, %v234, 0
  %v326 = vsel %vm279, %v235, 0
  %v329 = vsel %vm279, %v236, 0
  %v332 = vsel %vm279, %v237, 0
  %v335 = vsel %vm279, %v238, 0
  %v338 = vsel %vm279, %v239, 0
  %v341 = vsel %vm279, %v240, 0
  %v344 = vsel %vm279, %v241, 0
  %v347 = vsel %vm279, %v242, 0
  %v350 = vsel %vm279, %v243, 0
  %v353 = vsel %vm279, %v244, 0
  %v356 = vsel %vm279, %v245, 0
  %v359 = vsel %vm279, %v246, 0
  %v362 = vsel %vm279, %v247, 0
  %v365 = vsel %vm279, %v248, 0
  %v368 = vsel %vm279, %v249, 0
  %v371 = vsel %vm279, %v250, 0
  %v374 = vsel %vm279, %v251, 0
  %vm376 = vcmask 1043456
  %v378 = vsel %vm376, %v274, 0
  %380 = vmatpush.bf16.msra.mxu0 0
  %381 = vmatpush.bf16.msra.mxu0 0
  %382 = vmatpush.bf16.msra.mxu0 0
  %383 = vmatpush.bf16.msra.mxu0 %v378
  %384 = vmatpush.bf16.msra.mxu0 %v273
  %385 = vmatpush.bf16.msra.mxu0 %v272
  %386 = vmatpush.bf16.msra.mxu0 %v271
  %387 = vmatpush.bf16.msra.mxu0 %v270
  %388 = vmatmul.bf16.gmra.mxu0 %v281
  %v389 = vpop.f32.mrf.mxu0
  %v390 = vadd.f32 %v90, %v389
  %v391 = vpop.f32.mrf.mxu0
  %v392 = vadd.f32 %v90, %v391
  %393 = vmatmul.bf16.gmra.mxu0 %v284
  %v394 = vpop.f32.mrf.mxu0
  %v395 = vadd.f32 %v90, %v394
  %v396 = vpop.f32.mrf.mxu0
  %v397 = vadd.f32 %v90, %v396
  %398 = vmatmul.bf16.gmra.mxu0 %v287
  %v399 = vpop.f32.mrf.mxu0
  %v400 = vadd.f32 %v90, %v399
  %v401 = vpop.f32.mrf.mxu0
  %v402 = vadd.f32 %v90, %v401
  %403 = vmatmul.bf16.gmra.mxu0 %v290
  %v404 = vpop.f32.mrf.mxu0
  %v405 = vadd.f32 %v90, %v404
  %v406 = vpop.f32.mrf.mxu0
  %v407 = vadd.f32 %v90, %v406
  %408 = vmatmul.bf16.gmra.mxu0 %v293
  %v409 = vpop.f32.mrf.mxu0
  %v410 = vadd.f32 %v90, %v409
  %v411 = vpop.f32.mrf.mxu0
  %v412 = vadd.f32 %v90, %v411
  %413 = vmatmul.bf16.gmra.mxu0 %v296
  %v414 = vpop.f32.mrf.mxu0
  %v415 = vadd.f32 %v90, %v414
  %v416 = vpop.f32.mrf.mxu0
  %v417 = vadd.f32 %v90, %v416
  %418 = vmatmul.bf16.gmra.mxu0 %v299
  %v419 = vpop.f32.mrf.mxu0
  %v420 = vadd.f32 %v90, %v419
  %v421 = vpop.f32.mrf.mxu0
  %v422 = vadd.f32 %v90, %v421
  %423 = vmatmul.bf16.gmra.mxu0 %v302
  %v424 = vpop.f32.mrf.mxu0
  %v425 = vadd.f32 %v90, %v424
  %v426 = vpop.f32.mrf.mxu0
  %v427 = vadd.f32 %v90, %v426
  %428 = vmatmul.bf16.gmra.mxu0 %v305
  %v429 = vpop.f32.mrf.mxu0
  %v430 = vadd.f32 %v90, %v429
  %v431 = vpop.f32.mrf.mxu0
  %v432 = vadd.f32 %v90, %v431
  %433 = vmatmul.bf16.gmra.mxu0 %v308
  %v434 = vpop.f32.mrf.mxu0
  %v435 = vadd.f32 %v90, %v434
  %v436 = vpop.f32.mrf.mxu0
  %v437 = vadd.f32 %v90, %v436
  %438 = vmatmul.bf16.gmra.mxu0 %v311
  %v439 = vpop.f32.mrf.mxu0
  %v440 = vadd.f32 %v90, %v439
  %v441 = vpop.f32.mrf.mxu0
  %v442 = vadd.f32 %v90, %v441
  %443 = vmatmul.bf16.gmra.mxu0 %v314
  %v444 = vpop.f32.mrf.mxu0
  %v445 = vadd.f32 %v90, %v444
  %v446 = vpop.f32.mrf.mxu0
  %v447 = vadd.f32 %v90, %v446
  %448 = vmatmul.bf16.gmra.mxu0 %v317
  %v449 = vpop.f32.mrf.mxu0
  %v450 = vadd.f32 %v90, %v449
  %v451 = vpop.f32.mrf.mxu0
  %v452 = vadd.f32 %v90, %v451
  %453 = vmatmul.bf16.gmra.mxu0 %v320
  %v454 = vpop.f32.mrf.mxu0
  %v455 = vadd.f32 %v90, %v454
  %v456 = vpop.f32.mrf.mxu0
  %v457 = vadd.f32 %v90, %v456
  %458 = vmatmul.bf16.gmra.mxu0 %v323
  %v459 = vpop.f32.mrf.mxu0
  %v460 = vadd.f32 %v90, %v459
  %v461 = vpop.f32.mrf.mxu0
  %v462 = vadd.f32 %v90, %v461
  %463 = vmatmul.bf16.gmra.mxu0 %v326
  %v464 = vpop.f32.mrf.mxu0
  %v465 = vadd.f32 %v90, %v464
  %v466 = vpop.f32.mrf.mxu0
  %v467 = vadd.f32 %v90, %v466
  %468 = vmatmul.bf16.gmra.mxu0 %v329
  %v469 = vpop.f32.mrf.mxu0
  %v470 = vadd.f32 %v90, %v469
  %v471 = vpop.f32.mrf.mxu0
  %v472 = vadd.f32 %v90, %v471
  %473 = vmatmul.bf16.gmra.mxu0 %v332
  %v474 = vpop.f32.mrf.mxu0
  %v475 = vadd.f32 %v90, %v474
  %v476 = vpop.f32.mrf.mxu0
  %v477 = vadd.f32 %v90, %v476
  %478 = vmatmul.bf16.gmra.mxu0 %v335
  %v479 = vpop.f32.mrf.mxu0
  %v480 = vadd.f32 %v90, %v479
  %v481 = vpop.f32.mrf.mxu0
  %v482 = vadd.f32 %v90, %v481
  %483 = vmatmul.bf16.gmra.mxu0 %v338
  %v484 = vpop.f32.mrf.mxu0
  %v485 = vadd.f32 %v90, %v484
  %v486 = vpop.f32.mrf.mxu0
  %v487 = vadd.f32 %v90, %v486
  %488 = vmatmul.bf16.gmra.mxu0 %v341
  %v489 = vpop.f32.mrf.mxu0
  %v490 = vadd.f32 %v90, %v489
  %v491 = vpop.f32.mrf.mxu0
  %v492 = vadd.f32 %v90, %v491
  %493 = vmatmul.bf16.gmra.mxu0 %v344
  %v494 = vpop.f32.mrf.mxu0
  %v495 = vadd.f32 %v90, %v494
  %v496 = vpop.f32.mrf.mxu0
  %v497 = vadd.f32 %v90, %v496
  %498 = vmatmul.bf16.gmra.mxu0 %v347
  %v499 = vpop.f32.mrf.mxu0
  %v500 = vadd.f32 %v90, %v499
  %v501 = vpop.f32.mrf.mxu0
  %v502 = vadd.f32 %v90, %v501
  %503 = vmatmul.bf16.gmra.mxu0 %v350
  %v504 = vpop.f32.mrf.mxu0
  %v505 = vadd.f32 %v90, %v504
  %v506 = vpop.f32.mrf.mxu0
  %v507 = vadd.f32 %v90, %v506
  %508 = vmatmul.bf16.gmra.mxu0 %v353
  %v509 = vpop.f32.mrf.mxu0
  %v510 = vadd.f32 %v90, %v509
  %v511 = vpop.f32.mrf.mxu0
  %v512 = vadd.f32 %v90, %v511
  %513 = vmatmul.bf16.gmra.mxu0 %v356
  %v514 = vpop.f32.mrf.mxu0
  %v515 = vadd.f32 %v90, %v514
  %v516 = vpop.f32.mrf.mxu0
  %v517 = vadd.f32 %v90, %v516
  %518 = vmatmul.bf16.gmra.mxu0 %v359
  %v519 = vpop.f32.mrf.mxu0
  %v520 = vadd.f32 %v90, %v519
  %v521 = vpop.f32.mrf.mxu0
  %v522 = vadd.f32 %v90, %v521
  %523 = vmatmul.bf16.gmra.mxu0 %v362
  %v524 = vpop.f32.mrf.mxu0
  %v525 = vadd.f32 %v90, %v524
  %v526 = vpop.f32.mrf.mxu0
  %v527 = vadd.f32 %v90, %v526
  %528 = vmatmul.bf16.gmra.mxu0 %v365
  %v529 = vpop.f32.mrf.mxu0
  %v530 = vadd.f32 %v90, %v529
  %v531 = vpop.f32.mrf.mxu0
  %v532 = vadd.f32 %v90, %v531
  %533 = vmatmul.bf16.gmra.mxu0 %v368
  %v534 = vpop.f32.mrf.mxu0
  %v535 = vadd.f32 %v90, %v534
  %v536 = vpop.f32.mrf.mxu0
  %v537 = vadd.f32 %v90, %v536
  %538 = vmatmul.bf16.gmra.mxu0 %v371
  %v539 = vpop.f32.mrf.mxu0
  %v540 = vadd.f32 %v90, %v539
  %v541 = vpop.f32.mrf.mxu0
  %v542 = vadd.f32 %v90, %v541
  %543 = vmatmul.bf16.gmra.mxu0 %v374
  %v544 = vpop.f32.mrf.mxu0
  %v545 = vadd.f32 %v90, %v544
  %v546 = vpop.f32.mrf.mxu0
  %v547 = vadd.f32 %v90, %v546
  %548 = vdwg.mxu0
  %549 = vst [vmem:[%s3] sm:$0xff] %v390
  %550 = vst [vmem:[%s3 + $0x8] sm:$0xff] %v392
  %551 = vst [vmem:[%s3 + $0x10] sm:$0xff] %v395
  %552 = vst [vmem:[%s3 + $0x18] sm:$0xff] %v397
  %553 = vst [vmem:[%s3 + $0x20] sm:$0xff] %v400
  %554 = vst [vmem:[%s3 + $0x28] sm:$0xff] %v402
  %555 = vst [vmem:[%s3 + $0x30] sm:$0xff] %v405
  %556 = vst [vmem:[%s3 + $0x38] sm:$0xff] %v407
  %557 = vst [vmem:[%s3 + $0x40] sm:$0xff] %v410
  %558 = vst [vmem:[%s3 + $0x48] sm:$0xff] %v412
  %559 = vst [vmem:[%s3 + $0x50] sm:$0xff] %v415
  %560 = vst [vmem:[%s3 + $0x58] sm:$0xff] %v417
  %561 = vst [vmem:[%s3 + $0x60] sm:$0xff] %v420
  %562 = vst [vmem:[%s3 + $0x68] sm:$0xff] %v422
  %563 = vst [vmem:[%s3 + $0x70] sm:$0xff] %v425
  %564 = vst [vmem:[%s3 + $0x78] sm:$0xff] %v427
  %565 = vst [vmem:[%s3 + $0x80] sm:$0xff] %v430
  %566 = vst [vmem:[%s3 + $0x88] sm:$0xff] %v432
  %567 = vst [vmem:[%s3 + $0x90] sm:$0xff] %v435
  %568 = vst [vmem:[%s3 + $0x98] sm:$0xff] %v437
  %569 = vst [vmem:[%s3 + $0xa0] sm:$0xff] %v440
  %570 = vst [vmem:[%s3 + $0xa8] sm:$0xff] %v442
  %571 = vst [vmem:[%s3 + $0xb0] sm:$0xff] %v445
  %572 = vst [vmem:[%s3 + $0xb8] sm:$0xff] %v447
  %573 = vst [vmem:[%s3 + $0xc0] sm:$0xff] %v450
  %574 = vst [vmem:[%s3 + $0xc8] sm:$0xff] %v452
  %575 = vst [vmem:[%s3 + $0xd0] sm:$0xff] %v455
  %576 = vst [vmem:[%s3 + $0xd8] sm:$0xff] %v457
  %577 = vst [vmem:[%s3 + $0xe0] sm:$0xff] %v460
  %578 = vst [vmem:[%s3 + $0xe8] sm:$0xff] %v462
  %579 = vst [vmem:[%s3 + $0xf0] sm:$0xff] %v465
  %580 = vst [vmem:[%s3 + $0xf8] sm:$0xff] %v467
  %581 = vst [vmem:[%s3 + $0x100] sm:$0xff] %v470
  %582 = vst [vmem:[%s3 + $0x108] sm:$0xff] %v472
  %583 = vst [vmem:[%s3 + $0x110] sm:$0xff] %v475
  %584 = vst [vmem:[%s3 + $0x118] sm:$0xff] %v477
  %585 = vst [vmem:[%s3 + $0x120] sm:$0xff] %v480
  %586 = vst [vmem:[%s3 + $0x128] sm:$0xff] %v482
  %587 = vst [vmem:[%s3 + $0x130] sm:$0xff] %v485
  %588 = vst [vmem:[%s3 + $0x138] sm:$0xff] %v487
  %589 = vst [vmem:[%s3 + $0x140] sm:$0xff] %v490
  %590 = vst [vmem:[%s3 + $0x148] sm:$0xff] %v492
  %591 = vst [vmem:[%s3 + $0x150] sm:$0xff] %v495
  %592 = vst [vmem:[%s3 + $0x158] sm:$0xff] %v497
  %593 = vst [vmem:[%s3 + $0x160] sm:$0xff] %v500
  %594 = vst [vmem:[%s3 + $0x168] sm:$0xff] %v502
  %595 = vst [vmem:[%s3 + $0x170] sm:$0xff] %v505
  %596 = vst [vmem:[%s3 + $0x178] sm:$0xff] %v507
  %597 = vst [vmem:[%s3 + $0x180] sm:$0xff] %v510
  %598 = vst [vmem:[%s3 + $0x188] sm:$0xff] %v512
  %599 = vst [vmem:[%s3 + $0x190] sm:$0xff] %v515
  %600 = vst [vmem:[%s3 + $0x198] sm:$0xff] %v517
  %601 = vst [vmem:[%s3 + $0x1a0] sm:$0xff] %v520
  %602 = vst [vmem:[%s3 + $0x1a8] sm:$0xff] %v522
  %603 = vst [vmem:[%s3 + $0x1b0] sm:$0xff] %v525
  %604 = vst [vmem:[%s3 + $0x1b8] sm:$0xff] %v527
  %605 = vst [vmem:[%s3 + $0x1c0] sm:$0xff] %v530
  %606 = vst [vmem:[%s3 + $0x1c8] sm:$0xff] %v532
  %607 = vst [vmem:[%s3 + $0x1d0] sm:$0xff] %v535
  %608 = vst [vmem:[%s3 + $0x1d8] sm:$0xff] %v537
  %609 = vst [vmem:[%s3 + $0x1e0] sm:$0xff] %v540
  %610 = vst [vmem:[%s3 + $0x1e8] sm:$0xff] %v542
  %611 = vst [vmem:[%s3 + $0x1f0] sm:$0xff] %v545
  %612 = vst [vmem:[%s3 + $0x1f8] sm:$0xff] %v547
  // Predicated region
  $region14: #{vae_forward.22} parent=0 // pred_check
    _
  $region15: #{vae_forward.22} parent=0 // pred_check_branch
    %614 = sbr.rel (0) target = $region17
  $region16: #{vae_forward.22} parent=0 // pred_region
    _
  $region17: #{vae_forward.22} parent=0 // pred_fallthru
    _
  // Predicated region
  $region18: #{vae_forward.22} parent=0 // pred_check
    _
  $region19: #{vae_forward.22} parent=0 // pred_check_branch
    %616 = sbr.rel (0) target = $region21
  $region20: #{vae_forward.22} parent=0 // pred_region
    _
  $region21: #{vae_forward.22} parent=0 // pred_fallthru
    _

// kernel: vae_forward.23
$region0: #{vae_forward.23}
  #allocation0 [shape = 'u32[]', space=smem, size = 0x4, offset = 0x4, fixed_abs, tag = 'smem constant byte address 0x4 - core index']
  #allocation1 [shape = 'u32[72,128]{1,0:T(1,128)}', space=vmem, size = 0x9000, scoped, tag = 'internal scratch']
  %s0 = inlined_call_operand.vmem [shape: f32[2,3072], index: 0, kind: input, shape index: {}]
  %s1 = inlined_call_operand.vmem [shape: f32[2,3072], index: 1, kind: input, shape index: {}]
  %s2 = inlined_call_operand.vmem [shape: f32[2,1], index: 2, kind: output, shape index: {}]
  %s3 = sld [smem:[#allocation0]]
  $region22: #{vae_forward.23} parent=0
    _
  %s5 = ssub.s32 1, %s3
  %s6 = scalar_select 0, %s5, %s3
  // Predicated region
  $region2: #{vae_forward.23} parent=0 // pred_check
    _
  $region3: #{vae_forward.23} parent=0 // pred_check_branch
    %8 = sbr.rel (0) target = $region5
  $region4: #{vae_forward.23} parent=0 // pred_region
    _
  $region5: #{vae_forward.23} parent=0 // pred_fallthru
    _
  // Predicated region
  $region6: #{vae_forward.23} parent=0 // pred_check
    _
  $region7: #{vae_forward.23} parent=0 // pred_check_branch
    %10 = sbr.rel (0) target = $region9
  $region8: #{vae_forward.23} parent=0 // pred_region
    _
  $region9: #{vae_forward.23} parent=0 // pred_fallthru
    _
  %p11 = scmp.eq.s32.totalorder 0, 0
  // Predicated region
  $region10: #{vae_forward.23} parent=0 // pred_check
    %p12 = pneg %p11
  $region11: #{vae_forward.23} parent=0 // pred_check_branch
    %14 = sbr.rel (%p12) target = $region13
  $region12: #{vae_forward.23} parent=0 // pred_region
    %vm15 = vcmask 1024
    %16 = vst.msk [vmem:[%s2] sm:$0x3] %vm15, 0.0
  $region13: #{vae_forward.23} parent=0 // pred_fallthru
    _
  %v17 = vld [vmem:[%s0] sm:$0xff]
  %v18 = vld [vmem:[%s0 + $0x8] sm:$0xff]
  %v19 = vld [vmem:[%s0 + $0x10] sm:$0xff]
  %v20 = vld [vmem:[%s0 + $0x18] sm:$0xff]
  %v21 = vld [vmem:[%s0 + $0x20] sm:$0xff]
  %v22 = vld [vmem:[%s0 + $0x28] sm:$0xff]
  %v23 = vld [vmem:[%s1] sm:$0xff]
  %v24 = vld [vmem:[%s1 + $0x8] sm:$0xff]
  %v25 = vld [vmem:[%s1 + $0x10] sm:$0xff]
  %v26 = vld [vmem:[%s1 + $0x18] sm:$0xff]
  %v27 = vld [vmem:[%s1 + $0x20] sm:$0xff]
  %v28 = vld [vmem:[%s1 + $0x28] sm:$0xff]
  %v29 = vsub.f32 %v17, %v23
  %v30 = vsub.f32 %v18, %v24
  %v31 = vsub.f32 %v19, %v25
  %v32 = vsub.f32 %v20, %v26
  %v33 = vsub.f32 %v21, %v27
  %v34 = vsub.f32 %v22, %v28
  %v35 = vld [vmem:[%s2] sm:$0x3]
  %v36 = vmul.f32 %v29, %v29
  %v37 = vmul.f32 %v30, %v30
  %v38 = vmul.f32 %v31, %v31
  %v39 = vmul.f32 %v32, %v32
  %v40 = vmul.f32 %v33, %v33
  %v41 = vmul.f32 %v34, %v34
  %48 = vst [vmem:[#allocation1] ss:$4 sm:$0xff] %v36
  %s49 = scalar_lea.vmem [#allocation1], 32
  %50 = vst [vmem:[%s49] ss:$4 sm:$0xff] %v37
  %v51 = vld.sshfl [vmem:[#allocation1] sm:$0xff pattern:$0x73625140]
  %v52 = vld.sshfl [vmem:[#allocation1 + $0x8] sm:$0xff pattern:$0x73625140]
  %v53 = vld.sshfl [vmem:[#allocation1 + $0x10] sm:$0xff pattern:$0x73625140]
  %v54 = vld.sshfl [vmem:[#allocation1 + $0x18] sm:$0xff pattern:$0x73625140]
  %v55 = vld.sshfl [vmem:[#allocation1 + $0x20] sm:$0xff pattern:$0x73625140]
  %v56 = vld.sshfl [vmem:[#allocation1 + $0x28] sm:$0xff pattern:$0x73625140]
  %v57 = vld.sshfl [vmem:[#allocation1 + $0x30] sm:$0xff pattern:$0x73625140]
  %v58 = vld.sshfl [vmem:[#allocation1 + $0x38] sm:$0xff pattern:$0x73625140]
  %59 = vst [vmem:[#allocation1] ss:$4 sm:$0xff] %v38
  %60 = vst [vmem:[%s49] ss:$4 sm:$0xff] %v39
  %v61 = vld.sshfl [vmem:[#allocation1] sm:$0xff pattern:$0x73625140]
  %v62 = vld.sshfl [vmem:[#allocation1 + $0x8] sm:$0xff pattern:$0x73625140]
  %v63 = vld.sshfl [vmem:[#allocation1 + $0x10] sm:$0xff pattern:$0x73625140]
  %v64 = vld.sshfl [vmem:[#allocation1 + $0x18] sm:$0xff pattern:$0x73625140]
  %v65 = vld.sshfl [vmem:[#allocation1 + $0x20] sm:$0xff pattern:$0x73625140]
  %v66 = vld.sshfl [vmem:[#allocation1 + $0x28] sm:$0xff pattern:$0x73625140]
  %v67 = vld.sshfl [vmem:[#allocation1 + $0x30] sm:$0xff pattern:$0x73625140]
  %v68 = vld.sshfl [vmem:[#allocation1 + $0x38] sm:$0xff pattern:$0x73625140]
  %69 = vst [vmem:[#allocation1] ss:$4 sm:$0xff] %v40
  %70 = vst [vmem:[%s49] ss:$4 sm:$0xff] %v41
  %v71 = vld.sshfl [vmem:[#allocation1] sm:$0xff pattern:$0x73625140]
  %v72 = vld.sshfl [vmem:[#allocation1 + $0x8] sm:$0xff pattern:$0x73625140]
  %v73 = vld.sshfl [vmem:[#allocation1 + $0x10] sm:$0xff pattern:$0x73625140]
  %v74 = vld.sshfl [vmem:[#allocation1 + $0x18] sm:$0xff pattern:$0x73625140]
  %v75 = vld.sshfl [vmem:[#allocation1 + $0x20] sm:$0xff pattern:$0x73625140]
  %v76 = vld.sshfl [vmem:[#allocation1 + $0x28] sm:$0xff pattern:$0x73625140]
  %v77 = vld.sshfl [vmem:[#allocation1 + $0x30] sm:$0xff pattern:$0x73625140]
  %v78 = vld.sshfl [vmem:[#allocation1 + $0x38] sm:$0xff pattern:$0x73625140]
  %vm103 = vcmask 1041408
  %v104 = vsel %vm103, %v51, 0.0
  %v105 = vsel %vm103, %v52, 0.0
  %v106 = vadd.f32 %v104, %v105
  %v107 = vsel %vm103, %v53, 0.0
  %v108 = vadd.f32 %v106, %v107
  %v109 = vsel %vm103, %v54, 0.0
  %v110 = vadd.f32 %v108, %v109
  %v111 = vsel %vm103, %v55, 0.0
  %v112 = vadd.f32 %v110, %v111
  %v113 = vsel %vm103, %v56, 0.0
  %v114 = vadd.f32 %v112, %v113
  %v115 = vsel %vm103, %v57, 0.0
  %v116 = vadd.f32 %v114, %v115
  %v117 = vsel %vm103, %v58, 0.0
  %v118 = vadd.f32 %v116, %v117
  %v119 = vsel %vm103, %v61, 0.0
  %v120 = vadd.f32 %v118, %v119
  %v121 = vsel %vm103, %v62, 0.0
  %v122 = vadd.f32 %v120, %v121
  %v123 = vsel %vm103, %v63, 0.0
  %v124 = vadd.f32 %v122, %v123
  %v125 = vsel %vm103, %v64, 0.0
  %v126 = vadd.f32 %v124, %v125
  %v127 = vsel %vm103, %v65, 0.0
  %v128 = vadd.f32 %v126, %v127
  %v129 = vsel %vm103, %v66, 0.0
  %v130 = vadd.f32 %v128, %v129
  %v131 = vsel %vm103, %v67, 0.0
  %v132 = vadd.f32 %v130, %v131
  %v133 = vsel %vm103, %v68, 0.0
  %v134 = vadd.f32 %v132, %v133
  %v135 = vsel %vm103, %v71, 0.0
  %v136 = vadd.f32 %v134, %v135
  %v137 = vsel %vm103, %v72, 0.0
  %v138 = vadd.f32 %v136, %v137
  %v139 = vsel %vm103, %v73, 0.0
  %v140 = vadd.f32 %v138, %v139
  %v141 = vsel %vm103, %v74, 0.0
  %v142 = vadd.f32 %v140, %v141
  %v143 = vsel %vm103, %v75, 0.0
  %v144 = vadd.f32 %v142, %v143
  %v145 = vsel %vm103, %v76, 0.0
  %v146 = vadd.f32 %v144, %v145
  %v147 = vsel %vm103, %v77, 0.0
  %v148 = vadd.f32 %v146, %v147
  %v149 = vsel %vm103, %v78, 0.0
  %v150 = vadd.f32 %v148, %v149
  %151 = vadd.xlane.f32.xlu0 %v150
  %v152 = vpop.xlane.xlu0 %151
  %v153 = vmul.f32 %v152, 0.5
  %v154 = vadd.f32 %v35, %v153
  %vm155 = vcmask 1024
  %156 = vst.msk [vmem:[%s2] sm:$0x3] %vm155, %v154
  // Predicated region
  $region14: #{vae_forward.23} parent=0 // pred_check
    _
  $region15: #{vae_forward.23} parent=0 // pred_check_branch
    %158 = sbr.rel (0) target = $region17
  $region16: #{vae_forward.23} parent=0 // pred_region
    _
  $region17: #{vae_forward.23} parent=0 // pred_fallthru
    _
  // Predicated region
  $region18: #{vae_forward.23} parent=0 // pred_check
    _
  $region19: #{vae_forward.23} parent=0 // pred_check_branch
    %160 = sbr.rel (0) target = $region21
  $region20: #{vae_forward.23} parent=0 // pred_region
    _
  $region21: #{vae_forward.23} parent=0 // pred_fallthru
    _

</llo_original>
